<compile_context>
chip_gen: v6e
topology: v6e:2x2x1
jax: 0.10.0
libtpu: 0.0.40
codegen_flags: <defaults>
</compile_context>

<pallas_src>
import math
from functools import partial

import jax
import jax.numpy as jnp
from jax.experimental import pallas as pl
from jax.experimental.pallas import tpu as pltpu


def _cdiv(a: int, b: int) -> int:
    return -(-a // b)


def _round_up(x: int, m: int) -> int:
    return ((x + m - 1) // m) * m


def _pe_gather_kernel(idx_ref, pe_ref, out_ref, *, pack, d_sub):
    """Gather pe rows for a chunk of indices via one-hot MXU matmuls on the packed table.

    idx_ref: (chunk_rows, pack) int32 - index at (row j, lane group p) is flat_idx[j*pack+p].
    pe_ref:  (table_rows, pack*d_sub) f32 - packed table; row g holds pe[g*pack:(g+1)*pack].
    out_ref: (chunk_rows, pack*d_sub) f32 - out[j, p*d_sub + c] = pe[flat_idx[j*pack+p], c].
    """
    chunk_rows = idx_ref.shape[0]
    table_rows = pe_ref.shape[0]
    lane_width = out_ref.shape[1]

    pe = pe_ref[...]                                                    # resident table
    idx = idx_ref[...]                                                  # (chunk_rows, pack)
    row_iota = jax.lax.broadcasted_iota(jnp.int32, (chunk_rows, table_rows), 1)
    lane = jax.lax.broadcasted_iota(jnp.int32, (chunk_rows, lane_width), 1)
    shift_bits = pack.bit_length() - 1                                  # pack is a power of 2

    out = jnp.zeros((chunk_rows, lane_width), jnp.float32)
    for p in range(pack):
        idx_p = idx[:, p:p + 1]                                         # (chunk_rows, 1)
        g = idx_p >> shift_bits                                         # packed-table row
        s = idx_p & (pack - 1)                                          # lane group in that row
        # Row gather as one-hot MXU matmul; exact 0/1 lhs + HIGHEST => bit-exact gather.
        one_hot = (row_iota == g).astype(jnp.float32)                   # (chunk_rows, K=256)
        res = jnp.dot(one_hot, pe, preferred_element_type=jnp.float32,
                      precision=jax.lax.Precision.HIGHEST)              # (chunk_rows, 128)
        # res[j, s'*d_sub + c] = pe[pack*g_j + s', c]; keep group s_j, place at group p.
        in_group_p = (lane >= p * d_sub) & (lane < (p + 1) * d_sub)
        for s_val in range(pack):
            shift = (d_sub * (p - s_val)) % lane_width                  # static lane rotate
            moved = pltpu.roll(res, shift=shift, axis=1) if shift else res
            out = jnp.where(in_group_p & (s == s_val), moved, out)
    out_ref[...] = out


class PositionalEncoding:
    """Pallas-TPU equivalent of the PyTorch module: __call__(x) == pe[x]."""

    def __init__(self, d_model: int, max_len: int = 1000, target_chunk_indices: int = 1024):
        self.d_model = d_model
        self.max_len = max_len
        self._target_chunk = target_chunk_indices

        # Lane-packing factor: how many pe rows share one 128-lane output/table row.
        if d_model <= 128 and 128 % d_model == 0:
            pack, d_sub = 128 // d_model, d_model
        else:
            # TODO(synk): d_model not dividing 128 falls back to an unpacked (lane-padded)
            # table; still correct, just without the 4x K / writeback reduction.
            pack, d_sub = 1, _round_up(d_model, 128)
        self._pack = pack
        self._d_sub = d_sub
        self._lane_width = pack * d_sub
        self._table_rows = _round_up(_cdiv(max_len, pack), 128)
        padded_len = self._table_rows * pack

        # Build the sinusoidal table directly at its packed shape (registered-buffer
        # analogue): no per-forward pad/copy (review opt #6).
        position = jnp.arange(padded_len, dtype=jnp.float32)[:, None]           # (L_pad, 1)
        div_term = jnp.exp(jnp.arange(0, d_model, 2, dtype=jnp.float32)
                           * (-math.log(10000.0) / d_model))                    # (d/2,)
        ang = position * div_term
        pe = jnp.zeros((padded_len, d_sub), jnp.float32)
        pe = pe.at[:, 0:d_model:2].set(jnp.sin(ang))
        pe = pe.at[:, 1:d_model:2].set(jnp.cos(ang))
        # TODO(synk): like the PyTorch original, this assumes even d_model.
        pe = jnp.where(position < max_len, pe, 0.0)                             # zero pad rows
        self.pe_packed = pe.reshape(self._table_rows, self._lane_width)         # packed buffer

        self._forward = jax.jit(self._forward_impl)

    def __call__(self, x_idx):
        return self._forward(x_idx)

    def _forward_impl(self, x_idx):
        pack, d_sub, lane_width = self._pack, self._d_sub, self._lane_width
        table_rows, d_model = self._table_rows, self.d_model

        flat = x_idx.reshape(-1).astype(jnp.int32)
        n = flat.shape[0]

        # Chunking (review opts #4/#5): ~1024 indices per grid step, single step for small
        # inputs, even chunk count for large ones so "parallel" shards across v7x's two TCs.
        rows_needed = max(_cdiv(n, pack), 1)
        target_rows = max(self._target_chunk // pack, 8)
        if rows_needed <= target_rows:
            num_chunks = 1
        else:
            num_chunks = _cdiv(rows_needed, target_rows)
            if num_chunks % 2:
                num_chunks += 1
        chunk_rows = _round_up(_cdiv(rows_needed, num_chunks), 8)
        rows_pad = chunk_rows * num_chunks
        n_pad = rows_pad * pack

        # Indices, padded and reshaped so row j / lane-group p holds flat index j*pack + p.
        idx_pad = jnp.zeros((n_pad,), jnp.int32).at[:n].set(flat).reshape(rows_pad, pack)

        kernel = partial(_pe_gather_kernel, pack=pack, d_sub=d_sub)
        out_pad = pl.pallas_call(
            kernel,
            out_shape=jax.ShapeDtypeStruct((rows_pad, lane_width), jnp.float32),
            grid=(num_chunks,),
            in_specs=[
                # Chunk of packed index rows per grid step.
                pl.BlockSpec((chunk_rows, pack), lambda i: (i, 0)),
                # Whole packed table, constant block index -> DMA'd once, VMEM-resident.
                pl.BlockSpec((table_rows, lane_width), lambda i: (0, 0)),
            ],
            out_specs=pl.BlockSpec((chunk_rows, lane_width), lambda i: (i, 0)),
            compiler_params=pltpu.CompilerParams(
                dimension_semantics=("parallel",),          # independent chunks (2 TCs on v7x)
                vmem_limit_bytes=32 * 1024 * 1024,
            ),
        )(idx_pad, self.pe_packed)

        # Unpack lane groups back to rows; only trailing pad rows to drop when packed
        # (column slice is a no-op for pack > 1).
        out = out_pad.reshape(rows_pad * pack, d_sub)[:n, :d_model]
        return out.reshape(x_idx.shape + (d_model,))


if __name__ == "__main__":
    d_model = 32
    max_len = 1000
    B, S = 2, 8

    module = PositionalEncoding(d_model, max_len=max_len)

    key = jax.random.PRNGKey(0)
    # Integer "timestep" indices, exactly what the PyTorch module is indexed with.
    x = jax.random.randint(key, (B, S), minval=0, maxval=max_len, dtype=jnp.int32)

    out = module(x)
    out = jax.block_until_ready(out)

    # Reference: plain-JAX table + gather (same formula / semantics as torch's pe[x]).
    position = jnp.arange(max_len, dtype=jnp.float32)[:, None]
    div_term = jnp.exp(jnp.arange(0, d_model, 2, dtype=jnp.float32)
                       * (-math.log(10000.0) / d_model))
    pe_ref = jnp.zeros((max_len, d_model), jnp.float32)
    pe_ref = pe_ref.at[:, 0::2].set(jnp.sin(position * div_term))
    pe_ref = pe_ref.at[:, 1::2].set(jnp.cos(position * div_term))
    ref = pe_ref[x]

    assert out.shape == (B, S, d_model), out.shape
    assert out.dtype == jnp.float32, out.dtype
    assert jnp.allclose(out, ref, atol=1e-5, rtol=1e-5), "mismatch vs reference gather"

    print("KERNEL_OK")
</pallas_src>

<mosaic_0001>
module attributes {stable_mosaic.version = 11 : i64} {
  func.func @_pe_gather_kernel(%arg0: i32, %arg1: memref<8x4xi32, #tpu.memory_space<vmem>>, %arg2: memref<256x128xf32, #tpu.memory_space<vmem>>, %arg3: memref<8x128xf32, #tpu.memory_space<vmem>>) attributes {dimension_semantics = [#tpu.dimension_semantics<parallel>], iteration_bounds = array<i64: 1>, scalar_prefetch = 0 : i64, scratch_operands = 0 : i64, tpu.core_type = #tpu.core_type<tc>, window_params = [{transform_indices = @transform_0, window_bounds = array<i64: 8, 4>}, {pipeline_mode = #tpu.pipeline_mode<synchronous>, transform_indices = @transform_1, window_bounds = array<i64: 256, 128>}, {transform_indices = @transform_2, window_bounds = array<i64: 8, 128>}]} {
    %c0 = arith.constant 0 : index
    %c0_0 = arith.constant 0 : index
    %0 = vector.load %arg2[%c0, %c0_0] : memref<256x128xf32, #tpu.memory_space<vmem>>, vector<256x128xf32>
    %c0_1 = arith.constant 0 : index
    %c0_2 = arith.constant 0 : index
    %1 = vector.load %arg1[%c0_1, %c0_2] : memref<8x4xi32, #tpu.memory_space<vmem>>, vector<8x4xi32>
    %2 = tpu.iota {dimensions = array<i32: 1>} : vector<8x256xi32>
    %3 = tpu.iota {dimensions = array<i32: 1>} : vector<8x128xi32>
    %cst = arith.constant 0.000000e+00 : f32
    %4 = vector.broadcast %cst : f32 to vector<8x128xf32>
    %5 = vector.extract_strided_slice %1 {offsets = [0, 0], sizes = [8, 1], strides = [1, 1]} : vector<8x4xi32> to vector<8x1xi32>
    %c2_i32 = arith.constant 2 : i32
    %6 = vector.broadcast %c2_i32 : i32 to vector<8x1xi32>
    %7 = arith.shrsi %5, %6 : vector<8x1xi32>
    %c3_i32 = arith.constant 3 : i32
    %8 = vector.broadcast %c3_i32 : i32 to vector<8x1xi32>
    %9 = arith.andi %5, %8 : vector<8x1xi32>
    %10 = vector.broadcast %7 : vector<8x1xi32> to vector<8x256xi32>
    %11 = arith.cmpi eq, %2, %10 : vector<8x256xi32>
    %12 = arith.extui %11 : vector<8x256xi1> to vector<8x256xi32>
    %13 = arith.sitofp %12 : vector<8x256xi32> to vector<8x256xf32>
    %cst_3 = arith.constant dense<0.000000e+00> : vector<8x128xf32>
    %14 = tpu.matmul %13, %0, %cst_3 {dimension_numbers = #tpu.dot_dimension_numbers<[1], [0], [0], [1], [0, 0, 1, 1], [], []>, precision = #tpu.contract_precision<fp32>} : vector<8x256xf32>, vector<256x128xf32>, vector<8x128xf32> -> vector<8x128xf32>
    %c0_i32 = arith.constant 0 : i32
    %15 = vector.broadcast %c0_i32 : i32 to vector<8x128xi32>
    %16 = arith.cmpi sge, %3, %15 : vector<8x128xi32>
    %c32_i32 = arith.constant 32 : i32
    %17 = vector.broadcast %c32_i32 : i32 to vector<8x128xi32>
    %18 = arith.cmpi slt, %3, %17 : vector<8x128xi32>
    %19 = arith.andi %16, %18 : vector<8x128xi1>
    %c0_i32_4 = arith.constant 0 : i32
    %20 = vector.broadcast %c0_i32_4 : i32 to vector<8x1xi32>
    %21 = arith.cmpi eq, %9, %20 : vector<8x1xi32>
    %22 = vector.broadcast %21 : vector<8x1xi1> to vector<8x128xi1>
    %23 = arith.andi %19, %22 : vector<8x128xi1>
    %24 = arith.select %23, %14, %4 : vector<8x128xi1>, vector<8x128xf32>
    %c96_i32 = arith.constant 96 : i32
    %25 = tpu.dynamic_rotate %14 by %c96_i32 dim 1 : vector<8x128xf32>, i32 -> vector<8x128xf32>
    %c1_i32 = arith.constant 1 : i32
    %26 = vector.broadcast %c1_i32 : i32 to vector<8x1xi32>
    %27 = arith.cmpi eq, %9, %26 : vector<8x1xi32>
    %28 = vector.broadcast %27 : vector<8x1xi1> to vector<8x128xi1>
    %29 = arith.andi %19, %28 : vector<8x128xi1>
    %30 = arith.select %29, %25, %24 : vector<8x128xi1>, vector<8x128xf32>
    %c64_i32 = arith.constant 64 : i32
    %31 = tpu.dynamic_rotate %14 by %c64_i32 dim 1 : vector<8x128xf32>, i32 -> vector<8x128xf32>
    %c2_i32_5 = arith.constant 2 : i32
    %32 = vector.broadcast %c2_i32_5 : i32 to vector<8x1xi32>
    %33 = arith.cmpi eq, %9, %32 : vector<8x1xi32>
    %34 = vector.broadcast %33 : vector<8x1xi1> to vector<8x128xi1>
    %35 = arith.andi %19, %34 : vector<8x128xi1>
    %36 = arith.select %35, %31, %30 : vector<8x128xi1>, vector<8x128xf32>
    %c32_i32_6 = arith.constant 32 : i32
    %37 = tpu.dynamic_rotate %14 by %c32_i32_6 dim 1 : vector<8x128xf32>, i32 -> vector<8x128xf32>
    %c3_i32_7 = arith.constant 3 : i32
    %38 = vector.broadcast %c3_i32_7 : i32 to vector<8x1xi32>
    %39 = arith.cmpi eq, %9, %38 : vector<8x1xi32>
    %40 = vector.broadcast %39 : vector<8x1xi1> to vector<8x128xi1>
    %41 = arith.andi %19, %40 : vector<8x128xi1>
    %42 = arith.select %41, %37, %36 : vector<8x128xi1>, vector<8x128xf32>
    %43 = vector.extract_strided_slice %1 {offsets = [0, 1], sizes = [8, 1], strides = [1, 1]} : vector<8x4xi32> to vector<8x1xi32>
    %c2_i32_8 = arith.constant 2 : i32
    %44 = vector.broadcast %c2_i32_8 : i32 to vector<8x1xi32>
    %45 = arith.shrsi %43, %44 : vector<8x1xi32>
    %c3_i32_9 = arith.constant 3 : i32
    %46 = vector.broadcast %c3_i32_9 : i32 to vector<8x1xi32>
    %47 = arith.andi %43, %46 : vector<8x1xi32>
    %48 = vector.broadcast %45 : vector<8x1xi32> to vector<8x256xi32>
    %49 = arith.cmpi eq, %2, %48 : vector<8x256xi32>
    %50 = arith.extui %49 : vector<8x256xi1> to vector<8x256xi32>
    %51 = arith.sitofp %50 : vector<8x256xi32> to vector<8x256xf32>
    %cst_10 = arith.constant dense<0.000000e+00> : vector<8x128xf32>
    %52 = tpu.matmul %51, %0, %cst_10 {dimension_numbers = #tpu.dot_dimension_numbers<[1], [0], [0], [1], [0, 0, 1, 1], [], []>, precision = #tpu.contract_precision<fp32>} : vector<8x256xf32>, vector<256x128xf32>, vector<8x128xf32> -> vector<8x128xf32>
    %c32_i32_11 = arith.constant 32 : i32
    %53 = vector.broadcast %c32_i32_11 : i32 to vector<8x128xi32>
    %54 = arith.cmpi sge, %3, %53 : vector<8x128xi32>
    %c64_i32_12 = arith.constant 64 : i32
    %55 = vector.broadcast %c64_i32_12 : i32 to vector<8x128xi32>
    %56 = arith.cmpi slt, %3, %55 : vector<8x128xi32>
    %57 = arith.andi %54, %56 : vector<8x128xi1>
    %c32_i32_13 = arith.constant 32 : i32
    %58 = tpu.dynamic_rotate %52 by %c32_i32_13 dim 1 : vector<8x128xf32>, i32 -> vector<8x128xf32>
    %c0_i32_14 = arith.constant 0 : i32
    %59 = vector.broadcast %c0_i32_14 : i32 to vector<8x1xi32>
    %60 = arith.cmpi eq, %47, %59 : vector<8x1xi32>
    %61 = vector.broadcast %60 : vector<8x1xi1> to vector<8x128xi1>
    %62 = arith.andi %57, %61 : vector<8x128xi1>
    %63 = arith.select %62, %58, %42 : vector<8x128xi1>, vector<8x128xf32>
    %c1_i32_15 = arith.constant 1 : i32
    %64 = vector.broadcast %c1_i32_15 : i32 to vector<8x1xi32>
    %65 = arith.cmpi eq, %47, %64 : vector<8x1xi32>
    %66 = vector.broadcast %65 : vector<8x1xi1> to vector<8x128xi1>
    %67 = arith.andi %57, %66 : vector<8x128xi1>
    %68 = arith.select %67, %52, %63 : vector<8x128xi1>, vector<8x128xf32>
    %c96_i32_16 = arith.constant 96 : i32
    %69 = tpu.dynamic_rotate %52 by %c96_i32_16 dim 1 : vector<8x128xf32>, i32 -> vector<8x128xf32>
    %c2_i32_17 = arith.constant 2 : i32
    %70 = vector.broadcast %c2_i32_17 : i32 to vector<8x1xi32>
    %71 = arith.cmpi eq, %47, %70 : vector<8x1xi32>
    %72 = vector.broadcast %71 : vector<8x1xi1> to vector<8x128xi1>
    %73 = arith.andi %57, %72 : vector<8x128xi1>
    %74 = arith.select %73, %69, %68 : vector<8x128xi1>, vector<8x128xf32>
    %c64_i32_18 = arith.constant 64 : i32
    %75 = tpu.dynamic_rotate %52 by %c64_i32_18 dim 1 : vector<8x128xf32>, i32 -> vector<8x128xf32>
    %c3_i32_19 = arith.constant 3 : i32
    %76 = vector.broadcast %c3_i32_19 : i32 to vector<8x1xi32>
    %77 = arith.cmpi eq, %47, %76 : vector<8x1xi32>
    %78 = vector.broadcast %77 : vector<8x1xi1> to vector<8x128xi1>
    %79 = arith.andi %57, %78 : vector<8x128xi1>
    %80 = arith.select %79, %75, %74 : vector<8x128xi1>, vector<8x128xf32>
    %81 = vector.extract_strided_slice %1 {offsets = [0, 2], sizes = [8, 1], strides = [1, 1]} : vector<8x4xi32> to vector<8x1xi32>
    %c2_i32_20 = arith.constant 2 : i32
    %82 = vector.broadcast %c2_i32_20 : i32 to vector<8x1xi32>
    %83 = arith.shrsi %81, %82 : vector<8x1xi32>
    %c3_i32_21 = arith.constant 3 : i32
    %84 = vector.broadcast %c3_i32_21 : i32 to vector<8x1xi32>
    %85 = arith.andi %81, %84 : vector<8x1xi32>
    %86 = vector.broadcast %83 : vector<8x1xi32> to vector<8x256xi32>
    %87 = arith.cmpi eq, %2, %86 : vector<8x256xi32>
    %88 = arith.extui %87 : vector<8x256xi1> to vector<8x256xi32>
    %89 = arith.sitofp %88 : vector<8x256xi32> to vector<8x256xf32>
    %cst_22 = arith.constant dense<0.000000e+00> : vector<8x128xf32>
    %90 = tpu.matmul %89, %0, %cst_22 {dimension_numbers = #tpu.dot_dimension_numbers<[1], [0], [0], [1], [0, 0, 1, 1], [], []>, precision = #tpu.contract_precision<fp32>} : vector<8x256xf32>, vector<256x128xf32>, vector<8x128xf32> -> vector<8x128xf32>
    %c64_i32_23 = arith.constant 64 : i32
    %91 = vector.broadcast %c64_i32_23 : i32 to vector<8x128xi32>
    %92 = arith.cmpi sge, %3, %91 : vector<8x128xi32>
    %c96_i32_24 = arith.constant 96 : i32
    %93 = vector.broadcast %c96_i32_24 : i32 to vector<8x128xi32>
    %94 = arith.cmpi slt, %3, %93 : vector<8x128xi32>
    %95 = arith.andi %92, %94 : vector<8x128xi1>
    %c64_i32_25 = arith.constant 64 : i32
    %96 = tpu.dynamic_rotate %90 by %c64_i32_25 dim 1 : vector<8x128xf32>, i32 -> vector<8x128xf32>
    %c0_i32_26 = arith.constant 0 : i32
    %97 = vector.broadcast %c0_i32_26 : i32 to vector<8x1xi32>
    %98 = arith.cmpi eq, %85, %97 : vector<8x1xi32>
    %99 = vector.broadcast %98 : vector<8x1xi1> to vector<8x128xi1>
    %100 = arith.andi %95, %99 : vector<8x128xi1>
    %101 = arith.select %100, %96, %80 : vector<8x128xi1>, vector<8x128xf32>
    %c32_i32_27 = arith.constant 32 : i32
    %102 = tpu.dynamic_rotate %90 by %c32_i32_27 dim 1 : vector<8x128xf32>, i32 -> vector<8x128xf32>
    %c1_i32_28 = arith.constant 1 : i32
    %103 = vector.broadcast %c1_i32_28 : i32 to vector<8x1xi32>
    %104 = arith.cmpi eq, %85, %103 : vector<8x1xi32>
    %105 = vector.broadcast %104 : vector<8x1xi1> to vector<8x128xi1>
    %106 = arith.andi %95, %105 : vector<8x128xi1>
    %107 = arith.select %106, %102, %101 : vector<8x128xi1>, vector<8x128xf32>
    %c2_i32_29 = arith.constant 2 : i32
    %108 = vector.broadcast %c2_i32_29 : i32 to vector<8x1xi32>
    %109 = arith.cmpi eq, %85, %108 : vector<8x1xi32>
    %110 = vector.broadcast %109 : vector<8x1xi1> to vector<8x128xi1>
    %111 = arith.andi %95, %110 : vector<8x128xi1>
    %112 = arith.select %111, %90, %107 : vector<8x128xi1>, vector<8x128xf32>
    %c96_i32_30 = arith.constant 96 : i32
    %113 = tpu.dynamic_rotate %90 by %c96_i32_30 dim 1 : vector<8x128xf32>, i32 -> vector<8x128xf32>
    %c3_i32_31 = arith.constant 3 : i32
    %114 = vector.broadcast %c3_i32_31 : i32 to vector<8x1xi32>
    %115 = arith.cmpi eq, %85, %114 : vector<8x1xi32>
    %116 = vector.broadcast %115 : vector<8x1xi1> to vector<8x128xi1>
    %117 = arith.andi %95, %116 : vector<8x128xi1>
    %118 = arith.select %117, %113, %112 : vector<8x128xi1>, vector<8x128xf32>
    %119 = vector.extract_strided_slice %1 {offsets = [0, 3], sizes = [8, 1], strides = [1, 1]} : vector<8x4xi32> to vector<8x1xi32>
    %c2_i32_32 = arith.constant 2 : i32
    %120 = vector.broadcast %c2_i32_32 : i32 to vector<8x1xi32>
    %121 = arith.shrsi %119, %120 : vector<8x1xi32>
    %c3_i32_33 = arith.constant 3 : i32
    %122 = vector.broadcast %c3_i32_33 : i32 to vector<8x1xi32>
    %123 = arith.andi %119, %122 : vector<8x1xi32>
    %124 = vector.broadcast %121 : vector<8x1xi32> to vector<8x256xi32>
    %125 = arith.cmpi eq, %2, %124 : vector<8x256xi32>
    %126 = arith.extui %125 : vector<8x256xi1> to vector<8x256xi32>
    %127 = arith.sitofp %126 : vector<8x256xi32> to vector<8x256xf32>
    %cst_34 = arith.constant dense<0.000000e+00> : vector<8x128xf32>
    %128 = tpu.matmul %127, %0, %cst_34 {dimension_numbers = #tpu.dot_dimension_numbers<[1], [0], [0], [1], [0, 0, 1, 1], [], []>, precision = #tpu.contract_precision<fp32>} : vector<8x256xf32>, vector<256x128xf32>, vector<8x128xf32> -> vector<8x128xf32>
    %c96_i32_35 = arith.constant 96 : i32
    %129 = vector.broadcast %c96_i32_35 : i32 to vector<8x128xi32>
    %130 = arith.cmpi sge, %3, %129 : vector<8x128xi32>
    %c128_i32 = arith.constant 128 : i32
    %131 = vector.broadcast %c128_i32 : i32 to vector<8x128xi32>
    %132 = arith.cmpi slt, %3, %131 : vector<8x128xi32>
    %133 = arith.andi %130, %132 : vector<8x128xi1>
    %c96_i32_36 = arith.constant 96 : i32
    %134 = tpu.dynamic_rotate %128 by %c96_i32_36 dim 1 : vector<8x128xf32>, i32 -> vector<8x128xf32>
    %c0_i32_37 = arith.constant 0 : i32
    %135 = vector.broadcast %c0_i32_37 : i32 to vector<8x1xi32>
    %136 = arith.cmpi eq, %123, %135 : vector<8x1xi32>
    %137 = vector.broadcast %136 : vector<8x1xi1> to vector<8x128xi1>
    %138 = arith.andi %133, %137 : vector<8x128xi1>
    %139 = arith.select %138, %134, %118 : vector<8x128xi1>, vector<8x128xf32>
    %c64_i32_38 = arith.constant 64 : i32
    %140 = tpu.dynamic_rotate %128 by %c64_i32_38 dim 1 : vector<8x128xf32>, i32 -> vector<8x128xf32>
    %c1_i32_39 = arith.constant 1 : i32
    %141 = vector.broadcast %c1_i32_39 : i32 to vector<8x1xi32>
    %142 = arith.cmpi eq, %123, %141 : vector<8x1xi32>
    %143 = vector.broadcast %142 : vector<8x1xi1> to vector<8x128xi1>
    %144 = arith.andi %133, %143 : vector<8x128xi1>
    %145 = arith.select %144, %140, %139 : vector<8x128xi1>, vector<8x128xf32>
    %c32_i32_40 = arith.constant 32 : i32
    %146 = tpu.dynamic_rotate %128 by %c32_i32_40 dim 1 : vector<8x128xf32>, i32 -> vector<8x128xf32>
    %c2_i32_41 = arith.constant 2 : i32
    %147 = vector.broadcast %c2_i32_41 : i32 to vector<8x1xi32>
    %148 = arith.cmpi eq, %123, %147 : vector<8x1xi32>
    %149 = vector.broadcast %148 : vector<8x1xi1> to vector<8x128xi1>
    %150 = arith.andi %133, %149 : vector<8x128xi1>
    %151 = arith.select %150, %146, %145 : vector<8x128xi1>, vector<8x128xf32>
    %c3_i32_42 = arith.constant 3 : i32
    %152 = vector.broadcast %c3_i32_42 : i32 to vector<8x1xi32>
    %153 = arith.cmpi eq, %123, %152 : vector<8x1xi32>
    %154 = vector.broadcast %153 : vector<8x1xi1> to vector<8x128xi1>
    %155 = arith.andi %133, %154 : vector<8x128xi1>
    %156 = arith.select %155, %128, %151 : vector<8x128xi1>, vector<8x128xf32>
    %c0_43 = arith.constant 0 : index
    %c0_44 = arith.constant 0 : index
    %157 = vector.load %arg3[%c0_43, %c0_44] : memref<8x128xf32, #tpu.memory_space<vmem>>, vector<8x128xf32>
    tpu.vector_store %arg3[%c0_43, %c0_44], %156 {strides = array<i32>} : memref<8x128xf32, #tpu.memory_space<vmem>>, vector<8x128xf32>,
    return
  }
  func.func @transform_0(%arg0: i32) -> (i32, i32) {
    %c0_i32 = arith.constant 0 : i32
    %c0_i32_0 = arith.constant 0 : i32
    return %arg0, %c0_i32 : i32, i32
  }
  func.func @transform_1(%arg0: i32) -> (i32, i32) {
    %c0_i32 = arith.constant 0 : i32
    %c0_i32_0 = arith.constant 0 : i32
    %c0_i32_1 = arith.constant 0 : i32
    return %c0_i32, %c0_i32_0 : i32, i32
  }
  func.func @transform_2(%arg0: i32) -> (i32, i32) {
    %c0_i32 = arith.constant 0 : i32
    %c0_i32_0 = arith.constant 0 : i32
    return %arg0, %c0_i32 : i32, i32
  }
}

</mosaic_0001>

<llo_original>
// kernel: _forward_impl.1
$region0: #{_forward_impl.1}
  #allocation0 [shape = 'u32[]', space=smem, size = 0x4, offset = 0x4, fixed_abs, tag = 'smem constant byte address 0x4 - core index']
  #allocation1 [shape = 'u32[144,128]{1,0:T(1,128)}', space=vmem, size = 0x12000, scoped, tag = 'internal scratch']
  %s0 = inlined_call_operand.vmem [shape: s32[8,4], index: 0, kind: input, shape index: {}]
  %s1 = inlined_call_operand.hbm [shape: f32[256,128], index: 1, kind: input, shape index: {}]
  %s2 = inlined_call_operand.vmem [shape: f32[8,128], index: 2, kind: output, shape index: {}]
  %s3 = sld [smem:[#allocation0]]
  $region22: #{_forward_impl.1} parent=0
    _
  %s5 = ssub.s32 1, %s3
  %s6 = scalar_select 0, %s5, %s3
  $region1: #{_forward_impl.1} parent=0
    #allocation2 [shape = 'u8[131072]{0}', space=vmem, size = 0x20000, scoped, tag = 'input window, operand 1, single buffered']
    #allocation3 [shape = 's32[1]{0}', space=sflag, size = 0x4, scoped, tag = 'scoped memory for _forward_impl.1']
    %7 = vsyncpa [#allocation3], 0
    // Predicated region
    $region2: #{_forward_impl.1} parent=1 // pred_check
      _
    $region3: #{_forward_impl.1} parent=1 // pred_check_branch
      %9 = sbr.rel (0) target = $region5
    $region4: #{_forward_impl.1} parent=1 // pred_region
      _
    $region5: #{_forward_impl.1} parent=1 // pred_fallthru
      _
    // Predicated region
    $region6: #{_forward_impl.1} parent=1 // pred_check
      _
    $region7: #{_forward_impl.1} parent=1 // pred_check_branch
      %11 = sbr.rel (0) target = $region9
    $region8: #{_forward_impl.1} parent=1 // pred_region
      %s13 = ssub.s32 4096, 4096
      %14 = vsyncadd [#allocation3], %s13
      %s15 = sshll.u32 [#allocation2], 4
      %s16 = int_to_ptr.vmem [resolvable:$true] %s15
      %21 = dma.hbm_to_vmem [thread:$0]  %s1, 4096, %s16, [#allocation3], 128, 128, 8
    $region9: #{_forward_impl.1} parent=1 // pred_fallthru
      _
    // Predicated region
    $region10: #{_forward_impl.1} parent=1 // pred_check
      _
    $region11: #{_forward_impl.1} parent=1 // pred_check_branch
      %23 = sbr.rel (0) target = $region13
    $region12: #{_forward_impl.1} parent=1 // pred_region
      %24 = dma.done [#allocation3], 4096
    $region13: #{_forward_impl.1} parent=1 // pred_fallthru
      _
    %v25 = vld [vmem:[#allocation2] sm:$0xff]
    %v26 = vld [vmem:[#allocation2 + $0x8] sm:$0xff]
    %v27 = vld [vmem:[#allocation2 + $0x10] sm:$0xff]
    %v28 = vld [vmem:[#allocation2 + $0x18] sm:$0xff]
    %v29 = vld [vmem:[#allocation2 + $0x20] sm:$0xff]
    %v30 = vld [vmem:[#allocation2 + $0x28] sm:$0xff]
    %v31 = vld [vmem:[#allocation2 + $0x30] sm:$0xff]
    %v32 = vld [vmem:[#allocation2 + $0x38] sm:$0xff]
    %v33 = vld [vmem:[#allocation2 + $0x40] sm:$0xff]
    %v34 = vld [vmem:[#allocation2 + $0x48] sm:$0xff]
    %v35 = vld [vmem:[#allocation2 + $0x50] sm:$0xff]
    %v36 = vld [vmem:[#allocation2 + $0x58] sm:$0xff]
    %v37 = vld [vmem:[#allocation2 + $0x60] sm:$0xff]
    %v38 = vld [vmem:[#allocation2 + $0x68] sm:$0xff]
    %v39 = vld [vmem:[#allocation2 + $0x70] sm:$0xff]
    %v40 = vld [vmem:[#allocation2 + $0x78] sm:$0xff]
    %v41 = vld [vmem:[#allocation2 + $0x80] sm:$0xff]
    %v42 = vld [vmem:[#allocation2 + $0x88] sm:$0xff]
    %v43 = vld [vmem:[#allocation2 + $0x90] sm:$0xff]
    %v44 = vld [vmem:[#allocation2 + $0x98] sm:$0xff]
    %v45 = vld [vmem:[#allocation2 + $0xa0] sm:$0xff]
    %v46 = vld [vmem:[#allocation2 + $0xa8] sm:$0xff]
    %v47 = vld [vmem:[#allocation2 + $0xb0] sm:$0xff]
    %v48 = vld [vmem:[#allocation2 + $0xb8] sm:$0xff]
    %v49 = vld [vmem:[#allocation2 + $0xc0] sm:$0xff]
    %v50 = vld [vmem:[#allocation2 + $0xc8] sm:$0xff]
    %v51 = vld [vmem:[#allocation2 + $0xd0] sm:$0xff]
    %v52 = vld [vmem:[#allocation2 + $0xd8] sm:$0xff]
    %v53 = vld [vmem:[#allocation2 + $0xe0] sm:$0xff]
    %v54 = vld [vmem:[#allocation2 + $0xe8] sm:$0xff]
    %v55 = vld [vmem:[#allocation2 + $0xf0] sm:$0xff]
    %v56 = vld [vmem:[#allocation2 + $0xf8] sm:$0xff]
    %v57 = vld [vmem:[%s0] sm:$0xff]
    %v58 = vlaneseq
    %v59 = vand.u32 %v58, 127
    %v60 = vadd.s32 %v59, 128
    %v61 = vshra.s32 %v57, 2
    %v62 = vand.u32 %v57, 3
    %63 = vset.pattern.permute.xlu0 0
    %64 = vperm.xlu0 %63, %v61
    %v65 = vpop.permute.xlu0 %64
    %vm66 = vcmp.eq.s32.totalorder %v59, %v65
    %vm67 = vcmp.eq.s32.totalorder %v60, %v65
    %v68 = vsel %vm66, 1, 0
    %v69 = vsel %vm67, 1, 0
    %v70 = vcvt.s32.f32 %v68
    %v71 = vcvt.s32.f32 %v69
    %72 = vmatprep.subr.mxu0 0.0
    %v73 = vand.u32 %v40, 4294901760
    %74 = vmatpush1.msra.mxu0 %v73
    %75 = vmatprep.subr.mxu0 0.0
    %v76 = vand.u32 %v39, 4294901760
    %77 = vmatpush1.msra.mxu0 %v76
    %78 = vmatprep.subr.mxu0 0.0
    %v79 = vand.u32 %v38, 4294901760
    %80 = vmatpush1.msra.mxu0 %v79
    %81 = vmatprep.subr.mxu0 0.0
    %v82 = vand.u32 %v37, 4294901760
    %83 = vmatpush1.msra.mxu0 %v82
    %84 = vmatprep.subr.mxu0 0.0
    %v85 = vand.u32 %v36, 4294901760
    %86 = vmatpush1.msra.mxu0 %v85
    %87 = vmatprep.subr.mxu0 0.0
    %v88 = vand.u32 %v35, 4294901760
    %89 = vmatpush1.msra.mxu0 %v88
    %90 = vmatprep.subr.mxu0 0.0
    %v91 = vand.u32 %v34, 4294901760
    %92 = vmatpush1.msra.mxu0 %v91
    %93 = vmatprep.subr.mxu0 0.0
    %v94 = vand.u32 %v33, 4294901760
    %95 = vmatpush1.msra.mxu0 %v94
    %96 = vmatprep.subr.mxu0 0.0
    %v97 = vand.u32 %v32, 4294901760
    %98 = vmatpush1.msra.mxu0 %v97
    %99 = vmatprep.subr.mxu0 0.0
    %v100 = vand.u32 %v31, 4294901760
    %101 = vmatpush1.msra.mxu0 %v100
    %102 = vmatprep.subr.mxu0 0.0
    %v103 = vand.u32 %v30, 4294901760
    %104 = vmatpush1.msra.mxu0 %v103
    %105 = vmatprep.subr.mxu0 0.0
    %v106 = vand.u32 %v29, 4294901760
    %107 = vmatpush1.msra.mxu0 %v106
    %108 = vmatprep.subr.mxu0 0.0
    %v109 = vand.u32 %v28, 4294901760
    %110 = vmatpush1.msra.mxu0 %v109
    %111 = vmatprep.subr.mxu0 0.0
    %v112 = vand.u32 %v27, 4294901760
    %113 = vmatpush1.msra.mxu0 %v112
    %114 = vmatprep.subr.mxu0 0.0
    %v115 = vand.u32 %v26, 4294901760
    %116 = vmatpush1.msra.mxu0 %v115
    %117 = vmatprep.subr.mxu0 0.0
    %v118 = vand.u32 %v25, 4294901760
    %119 = vmatpush1.msra.mxu0 %v118
    %120 = vmatprep.subr.mxu0 0.0
    %v121 = vand.u32 %v56, 4294901760
    %122 = vmatpush2.msra.mxu0 %v121
    %123 = vmatprep.subr.mxu0 0.0
    %v124 = vand.u32 %v55, 4294901760
    %125 = vmatpush2.msra.mxu0 %v124
    %126 = vmatprep.subr.mxu0 0.0
    %v127 = vand.u32 %v54, 4294901760
    %128 = vmatpush2.msra.mxu0 %v127
    %129 = vmatprep.subr.mxu0 0.0
    %v130 = vand.u32 %v53, 4294901760
    %131 = vmatpush2.msra.mxu0 %v130
    %132 = vmatprep.subr.mxu0 0.0
    %v133 = vand.u32 %v52, 4294901760
    %134 = vmatpush2.msra.mxu0 %v133
    %135 = vmatprep.subr.mxu0 0.0
    %v136 = vand.u32 %v51, 4294901760
    %137 = vmatpush2.msra.mxu0 %v136
    %138 = vmatprep.subr.mxu0 0.0
    %v139 = vand.u32 %v50, 4294901760
    %140 = vmatpush2.msra.mxu0 %v139
    %141 = vmatprep.subr.mxu0 0.0
    %v142 = vand.u32 %v49, 4294901760
    %143 = vmatpush2.msra.mxu0 %v142
    %144 = vmatprep.subr.mxu0 0.0
    %v145 = vand.u32 %v48, 4294901760
    %146 = vmatpush2.msra.mxu0 %v145
    %147 = vmatprep.subr.mxu0 0.0
    %v148 = vand.u32 %v47, 4294901760
    %149 = vmatpush2.msra.mxu0 %v148
    %150 = vmatprep.subr.mxu0 0.0
    %v151 = vand.u32 %v46, 4294901760
    %152 = vmatpush2.msra.mxu0 %v151
    %153 = vmatprep.subr.mxu0 0.0
    %v154 = vand.u32 %v45, 4294901760
    %155 = vmatpush2.msra.mxu0 %v154
    %156 = vmatprep.subr.mxu0 0.0
    %v157 = vand.u32 %v44, 4294901760
    %158 = vmatpush2.msra.mxu0 %v157
    %159 = vmatprep.subr.mxu0 0.0
    %v160 = vand.u32 %v43, 4294901760
    %161 = vmatpush2.msra.mxu0 %v160
    %162 = vmatprep.subr.mxu0 0.0
    %v163 = vand.u32 %v42, 4294901760
    %164 = vmatpush2.msra.mxu0 %v163
    %165 = vmatprep.subr.mxu0 0.0
    %v166 = vand.u32 %v41, 4294901760
    %167 = vmatpush2.msra.mxu0 %v166
    %v168 = vand.u32 %v71, 4294901760
    %v169 = vsub.f32 %v71, %v168
    %v170 = vand.u32 %v169, 4294901760
    %v171 = vsub.f32 %v169, %v170
    %v172 = vand.u32 %v171, 4294901760
    %173 = vmatprep.mubr.f32.mxu0 %v172
    %v174 = vand.u32 %v70, 4294901760
    %v175 = vsub.f32 %v70, %v174
    %v176 = vand.u32 %v175, 4294901760
    %v177 = vsub.f32 %v175, %v176
    %v178 = vand.u32 %v177, 4294901760
    %179 = vmatmul.mubr.f32.gmra.mxu0 %v178
    %v180 = vpop.f32.mrf.mxu0
    %v181 = vadd.f32 0.0, %v180
    %v182 = vpop.f32.mrf.mxu0
    %183 = vdwg.mxu0
    %184 = vmatprep.subr.mxu0 0.0
    %v185 = vand.u32 %v40, 4294901760
    %v186 = vsub.f32 %v40, %v185
    %v187 = vand.u32 %v186, 4294901760
    %v188 = vsub.f32 %v186, %v187
    %v189 = vand.u32 %v188, 4294901760
    %190 = vmatpush1.msra.mxu0 %v189
    %191 = vmatprep.subr.mxu0 0.0
    %v192 = vand.u32 %v39, 4294901760
    %v193 = vsub.f32 %v39, %v192
    %v194 = vand.u32 %v193, 4294901760
    %v195 = vsub.f32 %v193, %v194
    %v196 = vand.u32 %v195, 4294901760
    %197 = vmatpush1.msra.mxu0 %v196
    %198 = vmatprep.subr.mxu0 0.0
    %v199 = vand.u32 %v38, 4294901760
    %v200 = vsub.f32 %v38, %v199
    %v201 = vand.u32 %v200, 4294901760
    %v202 = vsub.f32 %v200, %v201
    %v203 = vand.u32 %v202, 4294901760
    %204 = vmatpush1.msra.mxu0 %v203
    %205 = vmatprep.subr.mxu0 0.0
    %v206 = vand.u32 %v37, 4294901760
    %v207 = vsub.f32 %v37, %v206
    %v208 = vand.u32 %v207, 4294901760
    %v209 = vsub.f32 %v207, %v208
    %v210 = vand.u32 %v209, 4294901760
    %211 = vmatpush1.msra.mxu0 %v210
    %212 = vmatprep.subr.mxu0 0.0
    %v213 = vand.u32 %v36, 4294901760
    %v214 = vsub.f32 %v36, %v213
    %v215 = vand.u32 %v214, 4294901760
    %v216 = vsub.f32 %v214, %v215
    %v217 = vand.u32 %v216, 4294901760
    %218 = vmatpush1.msra.mxu0 %v217
    %219 = vmatprep.subr.mxu0 0.0
    %v220 = vand.u32 %v35, 4294901760
    %v221 = vsub.f32 %v35, %v220
    %v222 = vand.u32 %v221, 4294901760
    %v223 = vsub.f32 %v221, %v222
    %v224 = vand.u32 %v223, 4294901760
    %225 = vmatpush1.msra.mxu0 %v224
    %226 = vmatprep.subr.mxu0 0.0
    %v227 = vand.u32 %v34, 4294901760
    %v228 = vsub.f32 %v34, %v227
    %v229 = vand.u32 %v228, 4294901760
    %v230 = vsub.f32 %v228, %v229
    %v231 = vand.u32 %v230, 4294901760
    %232 = vmatpush1.msra.mxu0 %v231
    %233 = vmatprep.subr.mxu0 0.0
    %v234 = vand.u32 %v33, 4294901760
    %v235 = vsub.f32 %v33, %v234
    %v236 = vand.u32 %v235, 4294901760
    %v237 = vsub.f32 %v235, %v236
    %v238 = vand.u32 %v237, 4294901760
    %239 = vmatpush1.msra.mxu0 %v238
    %240 = vmatprep.subr.mxu0 0.0
    %v241 = vand.u32 %v32, 4294901760
    %v242 = vsub.f32 %v32, %v241
    %v243 = vand.u32 %v242, 4294901760
    %v244 = vsub.f32 %v242, %v243
    %v245 = vand.u32 %v244, 4294901760
    %246 = vmatpush1.msra.mxu0 %v245
    %247 = vmatprep.subr.mxu0 0.0
    %v248 = vand.u32 %v31, 4294901760
    %v249 = vsub.f32 %v31, %v248
    %v250 = vand.u32 %v249, 4294901760
    %v251 = vsub.f32 %v249, %v250
    %v252 = vand.u32 %v251, 4294901760
    %253 = vmatpush1.msra.mxu0 %v252
    %254 = vmatprep.subr.mxu0 0.0
    %v255 = vand.u32 %v30, 4294901760
    %v256 = vsub.f32 %v30, %v255
    %v257 = vand.u32 %v256, 4294901760
    %v258 = vsub.f32 %v256, %v257
    %v259 = vand.u32 %v258, 4294901760
    %260 = vmatpush1.msra.mxu0 %v259
    %261 = vmatprep.subr.mxu0 0.0
    %v262 = vand.u32 %v29, 4294901760
    %v263 = vsub.f32 %v29, %v262
    %v264 = vand.u32 %v263, 4294901760
    %v265 = vsub.f32 %v263, %v264
    %v266 = vand.u32 %v265, 4294901760
    %267 = vmatpush1.msra.mxu0 %v266
    %268 = vmatprep.subr.mxu0 0.0
    %v269 = vand.u32 %v28, 4294901760
    %v270 = vsub.f32 %v28, %v269
    %v271 = vand.u32 %v270, 4294901760
    %v272 = vsub.f32 %v270, %v271
    %v273 = vand.u32 %v272, 4294901760
    %274 = vmatpush1.msra.mxu0 %v273
    %275 = vmatprep.subr.mxu0 0.0
    %v276 = vand.u32 %v27, 4294901760
    %v277 = vsub.f32 %v27, %v276
    %v278 = vand.u32 %v277, 4294901760
    %v279 = vsub.f32 %v277, %v278
    %v280 = vand.u32 %v279, 4294901760
    %281 = vmatpush1.msra.mxu0 %v280
    %282 = vmatprep.subr.mxu0 0.0
    %v283 = vand.u32 %v26, 4294901760
    %v284 = vsub.f32 %v26, %v283
    %v285 = vand.u32 %v284, 4294901760
    %v286 = vsub.f32 %v284, %v285
    %v287 = vand.u32 %v286, 4294901760
    %288 = vmatpush1.msra.mxu0 %v287
    %289 = vmatprep.subr.mxu0 0.0
    %v290 = vand.u32 %v25, 4294901760
    %v291 = vsub.f32 %v25, %v290
    %v292 = vand.u32 %v291, 4294901760
    %v293 = vsub.f32 %v291, %v292
    %v294 = vand.u32 %v293, 4294901760
    %295 = vmatpush1.msra.mxu0 %v294
    %296 = vmatprep.subr.mxu0 0.0
    %v297 = vand.u32 %v56, 4294901760
    %v298 = vsub.f32 %v56, %v297
    %v299 = vand.u32 %v298, 4294901760
    %v300 = vsub.f32 %v298, %v299
    %v301 = vand.u32 %v300, 4294901760
    %302 = vmatpush2.msra.mxu0 %v301
    %303 = vmatprep.subr.mxu0 0.0
    %v304 = vand.u32 %v55, 4294901760
    %v305 = vsub.f32 %v55, %v304
    %v306 = vand.u32 %v305, 4294901760
    %v307 = vsub.f32 %v305, %v306
    %v308 = vand.u32 %v307, 4294901760
    %309 = vmatpush2.msra.mxu0 %v308
    %310 = vmatprep.subr.mxu0 0.0
    %v311 = vand.u32 %v54, 4294901760
    %v312 = vsub.f32 %v54, %v311
    %v313 = vand.u32 %v312, 4294901760
    %v314 = vsub.f32 %v312, %v313
    %v315 = vand.u32 %v314, 4294901760
    %316 = vmatpush2.msra.mxu0 %v315
    %317 = vmatprep.subr.mxu0 0.0
    %v318 = vand.u32 %v53, 4294901760
    %v319 = vsub.f32 %v53, %v318
    %v320 = vand.u32 %v319, 4294901760
    %v321 = vsub.f32 %v319, %v320
    %v322 = vand.u32 %v321, 4294901760
    %323 = vmatpush2.msra.mxu0 %v322
    %324 = vmatprep.subr.mxu0 0.0
    %v325 = vand.u32 %v52, 4294901760
    %v326 = vsub.f32 %v52, %v325
    %v327 = vand.u32 %v326, 4294901760
    %v328 = vsub.f32 %v326, %v327
    %v329 = vand.u32 %v328, 4294901760
    %330 = vmatpush2.msra.mxu0 %v329
    %331 = vmatprep.subr.mxu0 0.0
    %v332 = vand.u32 %v51, 4294901760
    %v333 = vsub.f32 %v51, %v332
    %v334 = vand.u32 %v333, 4294901760
    %v335 = vsub.f32 %v333, %v334
    %v336 = vand.u32 %v335, 4294901760
    %337 = vmatpush2.msra.mxu0 %v336
    %338 = vmatprep.subr.mxu0 0.0
    %v339 = vand.u32 %v50, 4294901760
    %v340 = vsub.f32 %v50, %v339
    %v341 = vand.u32 %v340, 4294901760
    %v342 = vsub.f32 %v340, %v341
    %v343 = vand.u32 %v342, 4294901760
    %344 = vmatpush2.msra.mxu0 %v343
    %345 = vmatprep.subr.mxu0 0.0
    %v346 = vand.u32 %v49, 4294901760
    %v347 = vsub.f32 %v49, %v346
    %v348 = vand.u32 %v347, 4294901760
    %v349 = vsub.f32 %v347, %v348
    %v350 = vand.u32 %v349, 4294901760
    %351 = vmatpush2.msra.mxu0 %v350
    %352 = vmatprep.subr.mxu0 0.0
    %v353 = vand.u32 %v48, 4294901760
    %v354 = vsub.f32 %v48, %v353
    %v355 = vand.u32 %v354, 4294901760
    %v356 = vsub.f32 %v354, %v355
    %v357 = vand.u32 %v356, 4294901760
    %358 = vmatpush2.msra.mxu0 %v357
    %359 = vmatprep.subr.mxu0 0.0
    %v360 = vand.u32 %v47, 4294901760
    %v361 = vsub.f32 %v47, %v360
    %v362 = vand.u32 %v361, 4294901760
    %v363 = vsub.f32 %v361, %v362
    %v364 = vand.u32 %v363, 4294901760
    %365 = vmatpush2.msra.mxu0 %v364
    %366 = vmatprep.subr.mxu0 0.0
    %v367 = vand.u32 %v46, 4294901760
    %v368 = vsub.f32 %v46, %v367
    %v369 = vand.u32 %v368, 4294901760
    %v370 = vsub.f32 %v368, %v369
    %v371 = vand.u32 %v370, 4294901760
    %372 = vmatpush2.msra.mxu0 %v371
    %373 = vmatprep.subr.mxu0 0.0
    %v374 = vand.u32 %v45, 4294901760
    %v375 = vsub.f32 %v45, %v374
    %v376 = vand.u32 %v375, 4294901760
    %v377 = vsub.f32 %v375, %v376
    %v378 = vand.u32 %v377, 4294901760
    %379 = vmatpush2.msra.mxu0 %v378
    %380 = vmatprep.subr.mxu0 0.0
    %v381 = vand.u32 %v44, 4294901760
    %v382 = vsub.f32 %v44, %v381
    %v383 = vand.u32 %v382, 4294901760
    %v384 = vsub.f32 %v382, %v383
    %v385 = vand.u32 %v384, 4294901760
    %386 = vmatpush2.msra.mxu0 %v385
    %387 = vmatprep.subr.mxu0 0.0
    %v388 = vand.u32 %v43, 4294901760
    %v389 = vsub.f32 %v43, %v388
    %v390 = vand.u32 %v389, 4294901760
    %v391 = vsub.f32 %v389, %v390
    %v392 = vand.u32 %v391, 4294901760
    %393 = vmatpush2.msra.mxu0 %v392
    %394 = vmatprep.subr.mxu0 0.0
    %v395 = vand.u32 %v42, 4294901760
    %v396 = vsub.f32 %v42, %v395
    %v397 = vand.u32 %v396, 4294901760
    %v398 = vsub.f32 %v396, %v397
    %v399 = vand.u32 %v398, 4294901760
    %400 = vmatpush2.msra.mxu0 %v399
    %401 = vmatprep.subr.mxu0 0.0
    %v402 = vand.u32 %v41, 4294901760
    %v403 = vsub.f32 %v41, %v402
    %v404 = vand.u32 %v403, 4294901760
    %v405 = vsub.f32 %v403, %v404
    %v406 = vand.u32 %v405, 4294901760
    %407 = vmatpush2.msra.mxu0 %v406
    %v408 = vand.u32 %v71, 4294901760
    %409 = vmatprep.mubr.f32.mxu0 %v408
    %v410 = vand.u32 %v70, 4294901760
    %411 = vmatmul.mubr.f32.gmra.mxu0 %v410
    %v412 = vpop.f32.mrf.mxu0
    %v413 = vadd.f32 %v181, %v412
    %v414 = vpop.f32.mrf.mxu0
    %415 = vdwg.mxu0
    %416 = vmatprep.subr.mxu0 0.0
    %v417 = vand.u32 %v40, 4294901760
    %v418 = vsub.f32 %v40, %v417
    %419 = vmatpush1.msra.mxu0 %v418
    %420 = vmatprep.subr.mxu0 0.0
    %v421 = vand.u32 %v39, 4294901760
    %v422 = vsub.f32 %v39, %v421
    %423 = vmatpush1.msra.mxu0 %v422
    %424 = vmatprep.subr.mxu0 0.0
    %v425 = vand.u32 %v38, 4294901760
    %v426 = vsub.f32 %v38, %v425
    %427 = vmatpush1.msra.mxu0 %v426
    %428 = vmatprep.subr.mxu0 0.0
    %v429 = vand.u32 %v37, 4294901760
    %v430 = vsub.f32 %v37, %v429
    %431 = vmatpush1.msra.mxu0 %v430
    %432 = vmatprep.subr.mxu0 0.0
    %v433 = vand.u32 %v36, 4294901760
    %v434 = vsub.f32 %v36, %v433
    %435 = vmatpush1.msra.mxu0 %v434
    %436 = vmatprep.subr.mxu0 0.0
    %v437 = vand.u32 %v35, 4294901760
    %v438 = vsub.f32 %v35, %v437
    %439 = vmatpush1.msra.mxu0 %v438
    %440 = vmatprep.subr.mxu0 0.0
    %v441 = vand.u32 %v34, 4294901760
    %v442 = vsub.f32 %v34, %v441
    %443 = vmatpush1.msra.mxu0 %v442
    %444 = vmatprep.subr.mxu0 0.0
    %v445 = vand.u32 %v33, 4294901760
    %v446 = vsub.f32 %v33, %v445
    %447 = vmatpush1.msra.mxu0 %v446
    %448 = vmatprep.subr.mxu0 0.0
    %v449 = vand.u32 %v32, 4294901760
    %v450 = vsub.f32 %v32, %v449
    %451 = vmatpush1.msra.mxu0 %v450
    %452 = vmatprep.subr.mxu0 0.0
    %v453 = vand.u32 %v31, 4294901760
    %v454 = vsub.f32 %v31, %v453
    %455 = vmatpush1.msra.mxu0 %v454
    %456 = vmatprep.subr.mxu0 0.0
    %v457 = vand.u32 %v30, 4294901760
    %v458 = vsub.f32 %v30, %v457
    %459 = vmatpush1.msra.mxu0 %v458
    %460 = vmatprep.subr.mxu0 0.0
    %v461 = vand.u32 %v29, 4294901760
    %v462 = vsub.f32 %v29, %v461
    %463 = vmatpush1.msra.mxu0 %v462
    %464 = vmatprep.subr.mxu0 0.0
    %v465 = vand.u32 %v28, 4294901760
    %v466 = vsub.f32 %v28, %v465
    %467 = vmatpush1.msra.mxu0 %v466
    %468 = vmatprep.subr.mxu0 0.0
    %v469 = vand.u32 %v27, 4294901760
    %v470 = vsub.f32 %v27, %v469
    %471 = vmatpush1.msra.mxu0 %v470
    %472 = vmatprep.subr.mxu0 0.0
    %v473 = vand.u32 %v26, 4294901760
    %v474 = vsub.f32 %v26, %v473
    %475 = vmatpush1.msra.mxu0 %v474
    %476 = vmatprep.subr.mxu0 0.0
    %v477 = vand.u32 %v25, 4294901760
    %v478 = vsub.f32 %v25, %v477
    %479 = vmatpush1.msra.mxu0 %v478
    %480 = vmatprep.subr.mxu0 0.0
    %v481 = vand.u32 %v56, 4294901760
    %v482 = vsub.f32 %v56, %v481
    %483 = vmatpush2.msra.mxu0 %v482
    %484 = vmatprep.subr.mxu0 0.0
    %v485 = vand.u32 %v55, 4294901760
    %v486 = vsub.f32 %v55, %v485
    %487 = vmatpush2.msra.mxu0 %v486
    %488 = vmatprep.subr.mxu0 0.0
    %v489 = vand.u32 %v54, 4294901760
    %v490 = vsub.f32 %v54, %v489
    %491 = vmatpush2.msra.mxu0 %v490
    %492 = vmatprep.subr.mxu0 0.0
    %v493 = vand.u32 %v53, 4294901760
    %v494 = vsub.f32 %v53, %v493
    %495 = vmatpush2.msra.mxu0 %v494
    %496 = vmatprep.subr.mxu0 0.0
    %v497 = vand.u32 %v52, 4294901760
    %v498 = vsub.f32 %v52, %v497
    %499 = vmatpush2.msra.mxu0 %v498
    %500 = vmatprep.subr.mxu0 0.0
    %v501 = vand.u32 %v51, 4294901760
    %v502 = vsub.f32 %v51, %v501
    %503 = vmatpush2.msra.mxu0 %v502
    %504 = vmatprep.subr.mxu0 0.0
    %v505 = vand.u32 %v50, 4294901760
    %v506 = vsub.f32 %v50, %v505
    %507 = vmatpush2.msra.mxu0 %v506
    %508 = vmatprep.subr.mxu0 0.0
    %v509 = vand.u32 %v49, 4294901760
    %v510 = vsub.f32 %v49, %v509
    %511 = vmatpush2.msra.mxu0 %v510
    %512 = vmatprep.subr.mxu0 0.0
    %v513 = vand.u32 %v48, 4294901760
    %v514 = vsub.f32 %v48, %v513
    %515 = vmatpush2.msra.mxu0 %v514
    %516 = vmatprep.subr.mxu0 0.0
    %v517 = vand.u32 %v47, 4294901760
    %v518 = vsub.f32 %v47, %v517
    %519 = vmatpush2.msra.mxu0 %v518
    %520 = vmatprep.subr.mxu0 0.0
    %v521 = vand.u32 %v46, 4294901760
    %v522 = vsub.f32 %v46, %v521
    %523 = vmatpush2.msra.mxu0 %v522
    %524 = vmatprep.subr.mxu0 0.0
    %v525 = vand.u32 %v45, 4294901760
    %v526 = vsub.f32 %v45, %v525
    %527 = vmatpush2.msra.mxu0 %v526
    %528 = vmatprep.subr.mxu0 0.0
    %v529 = vand.u32 %v44, 4294901760
    %v530 = vsub.f32 %v44, %v529
    %531 = vmatpush2.msra.mxu0 %v530
    %532 = vmatprep.subr.mxu0 0.0
    %v533 = vand.u32 %v43, 4294901760
    %v534 = vsub.f32 %v43, %v533
    %535 = vmatpush2.msra.mxu0 %v534
    %536 = vmatprep.subr.mxu0 0.0
    %v537 = vand.u32 %v42, 4294901760
    %v538 = vsub.f32 %v42, %v537
    %539 = vmatpush2.msra.mxu0 %v538
    %540 = vmatprep.subr.mxu0 0.0
    %v541 = vand.u32 %v41, 4294901760
    %v542 = vsub.f32 %v41, %v541
    %543 = vmatpush2.msra.mxu0 %v542
    %v544 = vand.u32 %v71, 4294901760
    %v545 = vsub.f32 %v71, %v544
    %546 = vmatprep.mubr.f32.mxu0 %v545
    %v547 = vand.u32 %v70, 4294901760
    %v548 = vsub.f32 %v70, %v547
    %549 = vmatmul.mubr.f32.gmra.mxu0 %v548
    %v550 = vpop.f32.mrf.mxu0
    %v551 = vadd.f32 %v413, %v550
    %v552 = vpop.f32.mrf.mxu0
    %553 = vdwg.mxu0
    %554 = vmatprep.subr.mxu0 0.0
    %v555 = vand.u32 %v40, 4294901760
    %556 = vmatpush1.msra.mxu0 %v555
    %557 = vmatprep.subr.mxu0 0.0
    %v558 = vand.u32 %v39, 4294901760
    %559 = vmatpush1.msra.mxu0 %v558
    %560 = vmatprep.subr.mxu0 0.0
    %v561 = vand.u32 %v38, 4294901760
    %562 = vmatpush1.msra.mxu0 %v561
    %563 = vmatprep.subr.mxu0 0.0
    %v564 = vand.u32 %v37, 4294901760
    %565 = vmatpush1.msra.mxu0 %v564
    %566 = vmatprep.subr.mxu0 0.0
    %v567 = vand.u32 %v36, 4294901760
    %568 = vmatpush1.msra.mxu0 %v567
    %569 = vmatprep.subr.mxu0 0.0
    %v570 = vand.u32 %v35, 4294901760
    %571 = vmatpush1.msra.mxu0 %v570
    %572 = vmatprep.subr.mxu0 0.0
    %v573 = vand.u32 %v34, 4294901760
    %574 = vmatpush1.msra.mxu0 %v573
    %575 = vmatprep.subr.mxu0 0.0
    %v576 = vand.u32 %v33, 4294901760
    %577 = vmatpush1.msra.mxu0 %v576
    %578 = vmatprep.subr.mxu0 0.0
    %v579 = vand.u32 %v32, 4294901760
    %580 = vmatpush1.msra.mxu0 %v579
    %581 = vmatprep.subr.mxu0 0.0
    %v582 = vand.u32 %v31, 4294901760
    %583 = vmatpush1.msra.mxu0 %v582
    %584 = vmatprep.subr.mxu0 0.0
    %v585 = vand.u32 %v30, 4294901760
    %586 = vmatpush1.msra.mxu0 %v585
    %587 = vmatprep.subr.mxu0 0.0
    %v588 = vand.u32 %v29, 4294901760
    %589 = vmatpush1.msra.mxu0 %v588
    %590 = vmatprep.subr.mxu0 0.0
    %v591 = vand.u32 %v28, 4294901760
    %592 = vmatpush1.msra.mxu0 %v591
    %593 = vmatprep.subr.mxu0 0.0
    %v594 = vand.u32 %v27, 4294901760
    %595 = vmatpush1.msra.mxu0 %v594
    %596 = vmatprep.subr.mxu0 0.0
    %v597 = vand.u32 %v26, 4294901760
    %598 = vmatpush1.msra.mxu0 %v597
    %599 = vmatprep.subr.mxu0 0.0
    %v600 = vand.u32 %v25, 4294901760
    %601 = vmatpush1.msra.mxu0 %v600
    %602 = vmatprep.subr.mxu0 0.0
    %v603 = vand.u32 %v56, 4294901760
    %604 = vmatpush2.msra.mxu0 %v603
    %605 = vmatprep.subr.mxu0 0.0
    %v606 = vand.u32 %v55, 4294901760
    %607 = vmatpush2.msra.mxu0 %v606
    %608 = vmatprep.subr.mxu0 0.0
    %v609 = vand.u32 %v54, 4294901760
    %610 = vmatpush2.msra.mxu0 %v609
    %611 = vmatprep.subr.mxu0 0.0
    %v612 = vand.u32 %v53, 4294901760
    %613 = vmatpush2.msra.mxu0 %v612
    %614 = vmatprep.subr.mxu0 0.0
    %v615 = vand.u32 %v52, 4294901760
    %616 = vmatpush2.msra.mxu0 %v615
    %617 = vmatprep.subr.mxu0 0.0
    %v618 = vand.u32 %v51, 4294901760
    %619 = vmatpush2.msra.mxu0 %v618
    %620 = vmatprep.subr.mxu0 0.0
    %v621 = vand.u32 %v50, 4294901760
    %622 = vmatpush2.msra.mxu0 %v621
    %623 = vmatprep.subr.mxu0 0.0
    %v624 = vand.u32 %v49, 4294901760
    %625 = vmatpush2.msra.mxu0 %v624
    %626 = vmatprep.subr.mxu0 0.0
    %v627 = vand.u32 %v48, 4294901760
    %628 = vmatpush2.msra.mxu0 %v627
    %629 = vmatprep.subr.mxu0 0.0
    %v630 = vand.u32 %v47, 4294901760
    %631 = vmatpush2.msra.mxu0 %v630
    %632 = vmatprep.subr.mxu0 0.0
    %v633 = vand.u32 %v46, 4294901760
    %634 = vmatpush2.msra.mxu0 %v633
    %635 = vmatprep.subr.mxu0 0.0
    %v636 = vand.u32 %v45, 4294901760
    %637 = vmatpush2.msra.mxu0 %v636
    %638 = vmatprep.subr.mxu0 0.0
    %v639 = vand.u32 %v44, 4294901760
    %640 = vmatpush2.msra.mxu0 %v639
    %641 = vmatprep.subr.mxu0 0.0
    %v642 = vand.u32 %v43, 4294901760
    %643 = vmatpush2.msra.mxu0 %v642
    %644 = vmatprep.subr.mxu0 0.0
    %v645 = vand.u32 %v42, 4294901760
    %646 = vmatpush2.msra.mxu0 %v645
    %647 = vmatprep.subr.mxu0 0.0
    %v648 = vand.u32 %v41, 4294901760
    %649 = vmatpush2.msra.mxu0 %v648
    %v650 = vand.u32 %v71, 4294901760
    %v651 = vsub.f32 %v71, %v650
    %v652 = vand.u32 %v651, 4294901760
    %653 = vmatprep.mubr.f32.mxu0 %v652
    %v654 = vand.u32 %v70, 4294901760
    %v655 = vsub.f32 %v70, %v654
    %v656 = vand.u32 %v655, 4294901760
    %657 = vmatmul.mubr.f32.gmra.mxu0 %v656
    %v658 = vpop.f32.mrf.mxu0
    %v659 = vadd.f32 %v551, %v658
    %v660 = vpop.f32.mrf.mxu0
    %661 = vdwg.mxu0
    %662 = vmatprep.subr.mxu0 0.0
    %v663 = vand.u32 %v40, 4294901760
    %v664 = vsub.f32 %v40, %v663
    %v665 = vand.u32 %v664, 4294901760
    %666 = vmatpush1.msra.mxu0 %v665
    %667 = vmatprep.subr.mxu0 0.0
    %v668 = vand.u32 %v39, 4294901760
    %v669 = vsub.f32 %v39, %v668
    %v670 = vand.u32 %v669, 4294901760
    %671 = vmatpush1.msra.mxu0 %v670
    %672 = vmatprep.subr.mxu0 0.0
    %v673 = vand.u32 %v38, 4294901760
    %v674 = vsub.f32 %v38, %v673
    %v675 = vand.u32 %v674, 4294901760
    %676 = vmatpush1.msra.mxu0 %v675
    %677 = vmatprep.subr.mxu0 0.0
    %v678 = vand.u32 %v37, 4294901760
    %v679 = vsub.f32 %v37, %v678
    %v680 = vand.u32 %v679, 4294901760
    %681 = vmatpush1.msra.mxu0 %v680
    %682 = vmatprep.subr.mxu0 0.0
    %v683 = vand.u32 %v36, 4294901760
    %v684 = vsub.f32 %v36, %v683
    %v685 = vand.u32 %v684, 4294901760
    %686 = vmatpush1.msra.mxu0 %v685
    %687 = vmatprep.subr.mxu0 0.0
    %v688 = vand.u32 %v35, 4294901760
    %v689 = vsub.f32 %v35, %v688
    %v690 = vand.u32 %v689, 4294901760
    %691 = vmatpush1.msra.mxu0 %v690
    %692 = vmatprep.subr.mxu0 0.0
    %v693 = vand.u32 %v34, 4294901760
    %v694 = vsub.f32 %v34, %v693
    %v695 = vand.u32 %v694, 4294901760
    %696 = vmatpush1.msra.mxu0 %v695
    %697 = vmatprep.subr.mxu0 0.0
    %v698 = vand.u32 %v33, 4294901760
    %v699 = vsub.f32 %v33, %v698
    %v700 = vand.u32 %v699, 4294901760
    %701 = vmatpush1.msra.mxu0 %v700
    %702 = vmatprep.subr.mxu0 0.0
    %v703 = vand.u32 %v32, 4294901760
    %v704 = vsub.f32 %v32, %v703
    %v705 = vand.u32 %v704, 4294901760
    %706 = vmatpush1.msra.mxu0 %v705
    %707 = vmatprep.subr.mxu0 0.0
    %v708 = vand.u32 %v31, 4294901760
    %v709 = vsub.f32 %v31, %v708
    %v710 = vand.u32 %v709, 4294901760
    %711 = vmatpush1.msra.mxu0 %v710
    %712 = vmatprep.subr.mxu0 0.0
    %v713 = vand.u32 %v30, 4294901760
    %v714 = vsub.f32 %v30, %v713
    %v715 = vand.u32 %v714, 4294901760
    %716 = vmatpush1.msra.mxu0 %v715
    %717 = vmatprep.subr.mxu0 0.0
    %v718 = vand.u32 %v29, 4294901760
    %v719 = vsub.f32 %v29, %v718
    %v720 = vand.u32 %v719, 4294901760
    %721 = vmatpush1.msra.mxu0 %v720
    %722 = vmatprep.subr.mxu0 0.0
    %v723 = vand.u32 %v28, 4294901760
    %v724 = vsub.f32 %v28, %v723
    %v725 = vand.u32 %v724, 4294901760
    %726 = vmatpush1.msra.mxu0 %v725
    %727 = vmatprep.subr.mxu0 0.0
    %v728 = vand.u32 %v27, 4294901760
    %v729 = vsub.f32 %v27, %v728
    %v730 = vand.u32 %v729, 4294901760
    %731 = vmatpush1.msra.mxu0 %v730
    %732 = vmatprep.subr.mxu0 0.0
    %v733 = vand.u32 %v26, 4294901760
    %v734 = vsub.f32 %v26, %v733
    %v735 = vand.u32 %v734, 4294901760
    %736 = vmatpush1.msra.mxu0 %v735
    %737 = vmatprep.subr.mxu0 0.0
    %v738 = vand.u32 %v25, 4294901760
    %v739 = vsub.f32 %v25, %v738
    %v740 = vand.u32 %v739, 4294901760
    %741 = vmatpush1.msra.mxu0 %v740
    %742 = vmatprep.subr.mxu0 0.0
    %v743 = vand.u32 %v56, 4294901760
    %v744 = vsub.f32 %v56, %v743
    %v745 = vand.u32 %v744, 4294901760
    %746 = vmatpush2.msra.mxu0 %v745
    %747 = vmatprep.subr.mxu0 0.0
    %v748 = vand.u32 %v55, 4294901760
    %v749 = vsub.f32 %v55, %v748
    %v750 = vand.u32 %v749, 4294901760
    %751 = vmatpush2.msra.mxu0 %v750
    %752 = vmatprep.subr.mxu0 0.0
    %v753 = vand.u32 %v54, 4294901760
    %v754 = vsub.f32 %v54, %v753
    %v755 = vand.u32 %v754, 4294901760
    %756 = vmatpush2.msra.mxu0 %v755
    %757 = vmatprep.subr.mxu0 0.0
    %v758 = vand.u32 %v53, 4294901760
    %v759 = vsub.f32 %v53, %v758
    %v760 = vand.u32 %v759, 4294901760
    %761 = vmatpush2.msra.mxu0 %v760
    %762 = vmatprep.subr.mxu0 0.0
    %v763 = vand.u32 %v52, 4294901760
    %v764 = vsub.f32 %v52, %v763
    %v765 = vand.u32 %v764, 4294901760
    %766 = vmatpush2.msra.mxu0 %v765
    %767 = vmatprep.subr.mxu0 0.0
    %v768 = vand.u32 %v51, 4294901760
    %v769 = vsub.f32 %v51, %v768
    %v770 = vand.u32 %v769, 4294901760
    %771 = vmatpush2.msra.mxu0 %v770
    %772 = vmatprep.subr.mxu0 0.0
    %v773 = vand.u32 %v50, 4294901760
    %v774 = vsub.f32 %v50, %v773
    %v775 = vand.u32 %v774, 4294901760
    %776 = vmatpush2.msra.mxu0 %v775
    %777 = vmatprep.subr.mxu0 0.0
    %v778 = vand.u32 %v49, 4294901760
    %v779 = vsub.f32 %v49, %v778
    %v780 = vand.u32 %v779, 4294901760
    %781 = vmatpush2.msra.mxu0 %v780
    %782 = vmatprep.subr.mxu0 0.0
    %v783 = vand.u32 %v48, 4294901760
    %v784 = vsub.f32 %v48, %v783
    %v785 = vand.u32 %v784, 4294901760
    %786 = vmatpush2.msra.mxu0 %v785
    %787 = vmatprep.subr.mxu0 0.0
    %v788 = vand.u32 %v47, 4294901760
    %v789 = vsub.f32 %v47, %v788
    %v790 = vand.u32 %v789, 4294901760
    %791 = vmatpush2.msra.mxu0 %v790
    %792 = vmatprep.subr.mxu0 0.0
    %v793 = vand.u32 %v46, 4294901760
    %v794 = vsub.f32 %v46, %v793
    %v795 = vand.u32 %v794, 4294901760
    %796 = vmatpush2.msra.mxu0 %v795
    %797 = vmatprep.subr.mxu0 0.0
    %v798 = vand.u32 %v45, 4294901760
    %v799 = vsub.f32 %v45, %v798
    %v800 = vand.u32 %v799, 4294901760
    %801 = vmatpush2.msra.mxu0 %v800
    %802 = vmatprep.subr.mxu0 0.0
    %v803 = vand.u32 %v44, 4294901760
    %v804 = vsub.f32 %v44, %v803
    %v805 = vand.u32 %v804, 4294901760
    %806 = vmatpush2.msra.mxu0 %v805
    %807 = vmatprep.subr.mxu0 0.0
    %v808 = vand.u32 %v43, 4294901760
    %v809 = vsub.f32 %v43, %v808
    %v810 = vand.u32 %v809, 4294901760
    %811 = vmatpush2.msra.mxu0 %v810
    %812 = vmatprep.subr.mxu0 0.0
    %v813 = vand.u32 %v42, 4294901760
    %v814 = vsub.f32 %v42, %v813
    %v815 = vand.u32 %v814, 4294901760
    %816 = vmatpush2.msra.mxu0 %v815
    %817 = vmatprep.subr.mxu0 0.0
    %v818 = vand.u32 %v41, 4294901760
    %v819 = vsub.f32 %v41, %v818
    %v820 = vand.u32 %v819, 4294901760
    %821 = vmatpush2.msra.mxu0 %v820
    %v822 = vand.u32 %v71, 4294901760
    %823 = vmatprep.mubr.f32.mxu0 %v822
    %v824 = vand.u32 %v70, 4294901760
    %825 = vmatmul.mubr.f32.gmra.mxu0 %v824
    %v826 = vpop.f32.mrf.mxu0
    %v827 = vadd.f32 %v659, %v826
    %v828 = vpop.f32.mrf.mxu0
    %829 = vdwg.mxu0
    %830 = vmatprep.subr.mxu0 0.0
    %v831 = vand.u32 %v40, 4294901760
    %832 = vmatpush1.msra.mxu0 %v831
    %833 = vmatprep.subr.mxu0 0.0
    %v834 = vand.u32 %v39, 4294901760
    %835 = vmatpush1.msra.mxu0 %v834
    %836 = vmatprep.subr.mxu0 0.0
    %v837 = vand.u32 %v38, 4294901760
    %838 = vmatpush1.msra.mxu0 %v837
    %839 = vmatprep.subr.mxu0 0.0
    %v840 = vand.u32 %v37, 4294901760
    %841 = vmatpush1.msra.mxu0 %v840
    %842 = vmatprep.subr.mxu0 0.0
    %v843 = vand.u32 %v36, 4294901760
    %844 = vmatpush1.msra.mxu0 %v843
    %845 = vmatprep.subr.mxu0 0.0
    %v846 = vand.u32 %v35, 4294901760
    %847 = vmatpush1.msra.mxu0 %v846
    %848 = vmatprep.subr.mxu0 0.0
    %v849 = vand.u32 %v34, 4294901760
    %850 = vmatpush1.msra.mxu0 %v849
    %851 = vmatprep.subr.mxu0 0.0
    %v852 = vand.u32 %v33, 4294901760
    %853 = vmatpush1.msra.mxu0 %v852
    %854 = vmatprep.subr.mxu0 0.0
    %v855 = vand.u32 %v32, 4294901760
    %856 = vmatpush1.msra.mxu0 %v855
    %857 = vmatprep.subr.mxu0 0.0
    %v858 = vand.u32 %v31, 4294901760
    %859 = vmatpush1.msra.mxu0 %v858
    %860 = vmatprep.subr.mxu0 0.0
    %v861 = vand.u32 %v30, 4294901760
    %862 = vmatpush1.msra.mxu0 %v861
    %863 = vmatprep.subr.mxu0 0.0
    %v864 = vand.u32 %v29, 4294901760
    %865 = vmatpush1.msra.mxu0 %v864
    %866 = vmatprep.subr.mxu0 0.0
    %v867 = vand.u32 %v28, 4294901760
    %868 = vmatpush1.msra.mxu0 %v867
    %869 = vmatprep.subr.mxu0 0.0
    %v870 = vand.u32 %v27, 4294901760
    %871 = vmatpush1.msra.mxu0 %v870
    %872 = vmatprep.subr.mxu0 0.0
    %v873 = vand.u32 %v26, 4294901760
    %874 = vmatpush1.msra.mxu0 %v873
    %875 = vmatprep.subr.mxu0 0.0
    %v876 = vand.u32 %v25, 4294901760
    %877 = vmatpush1.msra.mxu0 %v876
    %878 = vmatprep.subr.mxu0 0.0
    %v879 = vand.u32 %v56, 4294901760
    %880 = vmatpush2.msra.mxu0 %v879
    %881 = vmatprep.subr.mxu0 0.0
    %v882 = vand.u32 %v55, 4294901760
    %883 = vmatpush2.msra.mxu0 %v882
    %884 = vmatprep.subr.mxu0 0.0
    %v885 = vand.u32 %v54, 4294901760
    %886 = vmatpush2.msra.mxu0 %v885
    %887 = vmatprep.subr.mxu0 0.0
    %v888 = vand.u32 %v53, 4294901760
    %889 = vmatpush2.msra.mxu0 %v888
    %890 = vmatprep.subr.mxu0 0.0
    %v891 = vand.u32 %v52, 4294901760
    %892 = vmatpush2.msra.mxu0 %v891
    %893 = vmatprep.subr.mxu0 0.0
    %v894 = vand.u32 %v51, 4294901760
    %895 = vmatpush2.msra.mxu0 %v894
    %896 = vmatprep.subr.mxu0 0.0
    %v897 = vand.u32 %v50, 4294901760
    %898 = vmatpush2.msra.mxu0 %v897
    %899 = vmatprep.subr.mxu0 0.0
    %v900 = vand.u32 %v49, 4294901760
    %901 = vmatpush2.msra.mxu0 %v900
    %902 = vmatprep.subr.mxu0 0.0
    %v903 = vand.u32 %v48, 4294901760
    %904 = vmatpush2.msra.mxu0 %v903
    %905 = vmatprep.subr.mxu0 0.0
    %v906 = vand.u32 %v47, 4294901760
    %907 = vmatpush2.msra.mxu0 %v906
    %908 = vmatprep.subr.mxu0 0.0
    %v909 = vand.u32 %v46, 4294901760
    %910 = vmatpush2.msra.mxu0 %v909
    %911 = vmatprep.subr.mxu0 0.0
    %v912 = vand.u32 %v45, 4294901760
    %913 = vmatpush2.msra.mxu0 %v912
    %914 = vmatprep.subr.mxu0 0.0
    %v915 = vand.u32 %v44, 4294901760
    %916 = vmatpush2.msra.mxu0 %v915
    %917 = vmatprep.subr.mxu0 0.0
    %v918 = vand.u32 %v43, 4294901760
    %919 = vmatpush2.msra.mxu0 %v918
    %920 = vmatprep.subr.mxu0 0.0
    %v921 = vand.u32 %v42, 4294901760
    %922 = vmatpush2.msra.mxu0 %v921
    %923 = vmatprep.subr.mxu0 0.0
    %v924 = vand.u32 %v41, 4294901760
    %925 = vmatpush2.msra.mxu0 %v924
    %v926 = vand.u32 %v71, 4294901760
    %927 = vmatprep.mubr.f32.mxu0 %v926
    %v928 = vand.u32 %v70, 4294901760
    %929 = vmatmul.mubr.f32.gmra.mxu0 %v928
    %v930 = vpop.f32.mrf.mxu0
    %v931 = vadd.f32 %v827, %v930
    %v932 = vpop.f32.mrf.mxu0
    %933 = vdwg.mxu0
    %vm934 = vcmp.ge.s32.totalorder %v59, 0
    %vm935 = vcmp.lt.s32.totalorder %v59, 32
    %vm936 = vmand %vm934, %vm935
    %vm937 = vcmp.eq.s32.totalorder %v62, 0
    %v938 = vsel %vm937, 1, 0
    %939 = vset.pattern.permute.xlu0 0
    %940 = vperm.xlu0 %939, %v938
    %v941 = vpop.permute.xlu0 %940
    %vm942 = vcmp.eq.s32.totalorder %v941, 1
    %vm943 = vmand %vm936, %vm942
    %v944 = vsel %vm943, %v931, 0.0
    %945 = vrot.lane.b32.xlu0 %v931, 96
    %v946 = vpop.permute.xlu0 %945
    %vm947 = vcmp.eq.s32.totalorder %v62, 1
    %v948 = vsel %vm947, 1, 0
    %949 = vset.pattern.permute.xlu0 0
    %950 = vperm.xlu0 %949, %v948
    %v951 = vpop.permute.xlu0 %950
    %vm952 = vcmp.eq.s32.totalorder %v951, 1
    %vm953 = vmand %vm936, %vm952
    %v954 = vsel %vm953, %v946, %v944
    %955 = vrot.lane.b32.xlu0 %v931, 64
    %v956 = vpop.permute.xlu0 %955
    %vm957 = vcmp.eq.s32.totalorder %v62, 2
    %v958 = vsel %vm957, 1, 0
    %959 = vset.pattern.permute.xlu0 0
    %960 = vperm.xlu0 %959, %v958
    %v961 = vpop.permute.xlu0 %960
    %vm962 = vcmp.eq.s32.totalorder %v961, 1
    %vm963 = vmand %vm936, %vm962
    %v964 = vsel %vm963, %v956, %v954
    %965 = vrot.lane.b32.xlu0 %v931, 32
    %v966 = vpop.permute.xlu0 %965
    %vm967 = vcmp.eq.s32.totalorder %v62, 3
    %v968 = vsel %vm967, 1, 0
    %969 = vset.pattern.permute.xlu0 0
    %970 = vperm.xlu0 %969, %v968
    %v971 = vpop.permute.xlu0 %970
    %vm972 = vcmp.eq.s32.totalorder %v971, 1
    %vm973 = vmand %vm936, %vm972
    %v974 = vsel %vm973, %v966, %v964
    %975 = vset.pattern.permute.xlu0 1
    %976 = vperm.xlu0 %975, %v61
    %v977 = vpop.permute.xlu0 %976
    %vm978 = vcmp.eq.s32.totalorder %v59, %v977
    %vm979 = vcmp.eq.s32.totalorder %v60, %v977
    %v980 = vsel %vm978, 1, 0
    %v981 = vsel %vm979, 1, 0
    %v982 = vcvt.s32.f32 %v980
    %v983 = vcvt.s32.f32 %v981
    %984 = vmatprep.subr.mxu0 0.0
    %v985 = vand.u32 %v40, 4294901760
    %986 = vmatpush1.msra.mxu0 %v985
    %987 = vmatprep.subr.mxu0 0.0
    %v988 = vand.u32 %v39, 4294901760
    %989 = vmatpush1.msra.mxu0 %v988
    %990 = vmatprep.subr.mxu0 0.0
    %v991 = vand.u32 %v38, 4294901760
    %992 = vmatpush1.msra.mxu0 %v991
    %993 = vmatprep.subr.mxu0 0.0
    %v994 = vand.u32 %v37, 4294901760
    %995 = vmatpush1.msra.mxu0 %v994
    %996 = vmatprep.subr.mxu0 0.0
    %v997 = vand.u32 %v36, 4294901760
    %998 = vmatpush1.msra.mxu0 %v997
    %999 = vmatprep.subr.mxu0 0.0
    %v1000 = vand.u32 %v35, 4294901760
    %1001 = vmatpush1.msra.mxu0 %v1000
    %1002 = vmatprep.subr.mxu0 0.0
    %v1003 = vand.u32 %v34, 4294901760
    %1004 = vmatpush1.msra.mxu0 %v1003
    %1005 = vmatprep.subr.mxu0 0.0
    %v1006 = vand.u32 %v33, 4294901760
    %1007 = vmatpush1.msra.mxu0 %v1006
    %1008 = vmatprep.subr.mxu0 0.0
    %v1009 = vand.u32 %v32, 4294901760
    %1010 = vmatpush1.msra.mxu0 %v1009
    %1011 = vmatprep.subr.mxu0 0.0
    %v1012 = vand.u32 %v31, 4294901760
    %1013 = vmatpush1.msra.mxu0 %v1012
    %1014 = vmatprep.subr.mxu0 0.0
    %v1015 = vand.u32 %v30, 4294901760
    %1016 = vmatpush1.msra.mxu0 %v1015
    %1017 = vmatprep.subr.mxu0 0.0
    %v1018 = vand.u32 %v29, 4294901760
    %1019 = vmatpush1.msra.mxu0 %v1018
    %1020 = vmatprep.subr.mxu0 0.0
    %v1021 = vand.u32 %v28, 4294901760
    %1022 = vmatpush1.msra.mxu0 %v1021
    %1023 = vmatprep.subr.mxu0 0.0
    %v1024 = vand.u32 %v27, 4294901760
    %1025 = vmatpush1.msra.mxu0 %v1024
    %1026 = vmatprep.subr.mxu0 0.0
    %v1027 = vand.u32 %v26, 4294901760
    %1028 = vmatpush1.msra.mxu0 %v1027
    %1029 = vmatprep.subr.mxu0 0.0
    %v1030 = vand.u32 %v25, 4294901760
    %1031 = vmatpush1.msra.mxu0 %v1030
    %1032 = vmatprep.subr.mxu0 0.0
    %v1033 = vand.u32 %v56, 4294901760
    %1034 = vmatpush2.msra.mxu0 %v1033
    %1035 = vmatprep.subr.mxu0 0.0
    %v1036 = vand.u32 %v55, 4294901760
    %1037 = vmatpush2.msra.mxu0 %v1036
    %1038 = vmatprep.subr.mxu0 0.0
    %v1039 = vand.u32 %v54, 4294901760
    %1040 = vmatpush2.msra.mxu0 %v1039
    %1041 = vmatprep.subr.mxu0 0.0
    %v1042 = vand.u32 %v53, 4294901760
    %1043 = vmatpush2.msra.mxu0 %v1042
    %1044 = vmatprep.subr.mxu0 0.0
    %v1045 = vand.u32 %v52, 4294901760
    %1046 = vmatpush2.msra.mxu0 %v1045
    %1047 = vmatprep.subr.mxu0 0.0
    %v1048 = vand.u32 %v51, 4294901760
    %1049 = vmatpush2.msra.mxu0 %v1048
    %1050 = vmatprep.subr.mxu0 0.0
    %v1051 = vand.u32 %v50, 4294901760
    %1052 = vmatpush2.msra.mxu0 %v1051
    %1053 = vmatprep.subr.mxu0 0.0
    %v1054 = vand.u32 %v49, 4294901760
    %1055 = vmatpush2.msra.mxu0 %v1054
    %1056 = vmatprep.subr.mxu0 0.0
    %v1057 = vand.u32 %v48, 4294901760
    %1058 = vmatpush2.msra.mxu0 %v1057
    %1059 = vmatprep.subr.mxu0 0.0
    %v1060 = vand.u32 %v47, 4294901760
    %1061 = vmatpush2.msra.mxu0 %v1060
    %1062 = vmatprep.subr.mxu0 0.0
    %v1063 = vand.u32 %v46, 4294901760
    %1064 = vmatpush2.msra.mxu0 %v1063
    %1065 = vmatprep.subr.mxu0 0.0
    %v1066 = vand.u32 %v45, 4294901760
    %1067 = vmatpush2.msra.mxu0 %v1066
    %1068 = vmatprep.subr.mxu0 0.0
    %v1069 = vand.u32 %v44, 4294901760
    %1070 = vmatpush2.msra.mxu0 %v1069
    %1071 = vmatprep.subr.mxu0 0.0
    %v1072 = vand.u32 %v43, 4294901760
    %1073 = vmatpush2.msra.mxu0 %v1072
    %1074 = vmatprep.subr.mxu0 0.0
    %v1075 = vand.u32 %v42, 4294901760
    %1076 = vmatpush2.msra.mxu0 %v1075
    %1077 = vmatprep.subr.mxu0 0.0
    %v1078 = vand.u32 %v41, 4294901760
    %1079 = vmatpush2.msra.mxu0 %v1078
    %v1080 = vand.u32 %v983, 4294901760
    %v1081 = vsub.f32 %v983, %v1080
    %v1082 = vand.u32 %v1081, 4294901760
    %v1083 = vsub.f32 %v1081, %v1082
    %v1084 = vand.u32 %v1083, 4294901760
    %1085 = vmatprep.mubr.f32.mxu0 %v1084
    %v1086 = vand.u32 %v982, 4294901760
    %v1087 = vsub.f32 %v982, %v1086
    %v1088 = vand.u32 %v1087, 4294901760
    %v1089 = vsub.f32 %v1087, %v1088
    %v1090 = vand.u32 %v1089, 4294901760
    %1091 = vmatmul.mubr.f32.gmra.mxu0 %v1090
    %v1092 = vpop.f32.mrf.mxu0
    %v1093 = vadd.f32 0.0, %v1092
    %v1094 = vpop.f32.mrf.mxu0
    %1095 = vdwg.mxu0
    %1096 = vmatprep.subr.mxu0 0.0
    %v1097 = vand.u32 %v40, 4294901760
    %v1098 = vsub.f32 %v40, %v1097
    %v1099 = vand.u32 %v1098, 4294901760
    %v1100 = vsub.f32 %v1098, %v1099
    %v1101 = vand.u32 %v1100, 4294901760
    %1102 = vmatpush1.msra.mxu0 %v1101
    %1103 = vmatprep.subr.mxu0 0.0
    %v1104 = vand.u32 %v39, 4294901760
    %v1105 = vsub.f32 %v39, %v1104
    %v1106 = vand.u32 %v1105, 4294901760
    %v1107 = vsub.f32 %v1105, %v1106
    %v1108 = vand.u32 %v1107, 4294901760
    %1109 = vmatpush1.msra.mxu0 %v1108
    %1110 = vmatprep.subr.mxu0 0.0
    %v1111 = vand.u32 %v38, 4294901760
    %v1112 = vsub.f32 %v38, %v1111
    %v1113 = vand.u32 %v1112, 4294901760
    %v1114 = vsub.f32 %v1112, %v1113
    %v1115 = vand.u32 %v1114, 4294901760
    %1116 = vmatpush1.msra.mxu0 %v1115
    %1117 = vmatprep.subr.mxu0 0.0
    %v1118 = vand.u32 %v37, 4294901760
    %v1119 = vsub.f32 %v37, %v1118
    %v1120 = vand.u32 %v1119, 4294901760
    %v1121 = vsub.f32 %v1119, %v1120
    %v1122 = vand.u32 %v1121, 4294901760
    %1123 = vmatpush1.msra.mxu0 %v1122
    %1124 = vmatprep.subr.mxu0 0.0
    %v1125 = vand.u32 %v36, 4294901760
    %v1126 = vsub.f32 %v36, %v1125
    %v1127 = vand.u32 %v1126, 4294901760
    %v1128 = vsub.f32 %v1126, %v1127
    %v1129 = vand.u32 %v1128, 4294901760
    %1130 = vmatpush1.msra.mxu0 %v1129
    %1131 = vmatprep.subr.mxu0 0.0
    %v1132 = vand.u32 %v35, 4294901760
    %v1133 = vsub.f32 %v35, %v1132
    %v1134 = vand.u32 %v1133, 4294901760
    %v1135 = vsub.f32 %v1133, %v1134
    %v1136 = vand.u32 %v1135, 4294901760
    %1137 = vmatpush1.msra.mxu0 %v1136
    %1138 = vmatprep.subr.mxu0 0.0
    %v1139 = vand.u32 %v34, 4294901760
    %v1140 = vsub.f32 %v34, %v1139
    %v1141 = vand.u32 %v1140, 4294901760
    %v1142 = vsub.f32 %v1140, %v1141
    %v1143 = vand.u32 %v1142, 4294901760
    %1144 = vmatpush1.msra.mxu0 %v1143
    %1145 = vmatprep.subr.mxu0 0.0
    %v1146 = vand.u32 %v33, 4294901760
    %v1147 = vsub.f32 %v33, %v1146
    %v1148 = vand.u32 %v1147, 4294901760
    %v1149 = vsub.f32 %v1147, %v1148
    %v1150 = vand.u32 %v1149, 4294901760
    %1151 = vmatpush1.msra.mxu0 %v1150
    %1152 = vmatprep.subr.mxu0 0.0
    %v1153 = vand.u32 %v32, 4294901760
    %v1154 = vsub.f32 %v32, %v1153
    %v1155 = vand.u32 %v1154, 4294901760
    %v1156 = vsub.f32 %v1154, %v1155
    %v1157 = vand.u32 %v1156, 4294901760
    %1158 = vmatpush1.msra.mxu0 %v1157
    %1159 = vmatprep.subr.mxu0 0.0
    %v1160 = vand.u32 %v31, 4294901760
    %v1161 = vsub.f32 %v31, %v1160
    %v1162 = vand.u32 %v1161, 4294901760
    %v1163 = vsub.f32 %v1161, %v1162
    %v1164 = vand.u32 %v1163, 4294901760
    %1165 = vmatpush1.msra.mxu0 %v1164
    %1166 = vmatprep.subr.mxu0 0.0
    %v1167 = vand.u32 %v30, 4294901760
    %v1168 = vsub.f32 %v30, %v1167
    %v1169 = vand.u32 %v1168, 4294901760
    %v1170 = vsub.f32 %v1168, %v1169
    %v1171 = vand.u32 %v1170, 4294901760
    %1172 = vmatpush1.msra.mxu0 %v1171
    %1173 = vmatprep.subr.mxu0 0.0
    %v1174 = vand.u32 %v29, 4294901760
    %v1175 = vsub.f32 %v29, %v1174
    %v1176 = vand.u32 %v1175, 4294901760
    %v1177 = vsub.f32 %v1175, %v1176
    %v1178 = vand.u32 %v1177, 4294901760
    %1179 = vmatpush1.msra.mxu0 %v1178
    %1180 = vmatprep.subr.mxu0 0.0
    %v1181 = vand.u32 %v28, 4294901760
    %v1182 = vsub.f32 %v28, %v1181
    %v1183 = vand.u32 %v1182, 4294901760
    %v1184 = vsub.f32 %v1182, %v1183
    %v1185 = vand.u32 %v1184, 4294901760
    %1186 = vmatpush1.msra.mxu0 %v1185
    %1187 = vmatprep.subr.mxu0 0.0
    %v1188 = vand.u32 %v27, 4294901760
    %v1189 = vsub.f32 %v27, %v1188
    %v1190 = vand.u32 %v1189, 4294901760
    %v1191 = vsub.f32 %v1189, %v1190
    %v1192 = vand.u32 %v1191, 4294901760
    %1193 = vmatpush1.msra.mxu0 %v1192
    %1194 = vmatprep.subr.mxu0 0.0
    %v1195 = vand.u32 %v26, 4294901760
    %v1196 = vsub.f32 %v26, %v1195
    %v1197 = vand.u32 %v1196, 4294901760
    %v1198 = vsub.f32 %v1196, %v1197
    %v1199 = vand.u32 %v1198, 4294901760
    %1200 = vmatpush1.msra.mxu0 %v1199
    %1201 = vmatprep.subr.mxu0 0.0
    %v1202 = vand.u32 %v25, 4294901760
    %v1203 = vsub.f32 %v25, %v1202
    %v1204 = vand.u32 %v1203, 4294901760
    %v1205 = vsub.f32 %v1203, %v1204
    %v1206 = vand.u32 %v1205, 4294901760
    %1207 = vmatpush1.msra.mxu0 %v1206
    %1208 = vmatprep.subr.mxu0 0.0
    %v1209 = vand.u32 %v56, 4294901760
    %v1210 = vsub.f32 %v56, %v1209
    %v1211 = vand.u32 %v1210, 4294901760
    %v1212 = vsub.f32 %v1210, %v1211
    %v1213 = vand.u32 %v1212, 4294901760
    %1214 = vmatpush2.msra.mxu0 %v1213
    %1215 = vmatprep.subr.mxu0 0.0
    %v1216 = vand.u32 %v55, 4294901760
    %v1217 = vsub.f32 %v55, %v1216
    %v1218 = vand.u32 %v1217, 4294901760
    %v1219 = vsub.f32 %v1217, %v1218
    %v1220 = vand.u32 %v1219, 4294901760
    %1221 = vmatpush2.msra.mxu0 %v1220
    %1222 = vmatprep.subr.mxu0 0.0
    %v1223 = vand.u32 %v54, 4294901760
    %v1224 = vsub.f32 %v54, %v1223
    %v1225 = vand.u32 %v1224, 4294901760
    %v1226 = vsub.f32 %v1224, %v1225
    %v1227 = vand.u32 %v1226, 4294901760
    %1228 = vmatpush2.msra.mxu0 %v1227
    %1229 = vmatprep.subr.mxu0 0.0
    %v1230 = vand.u32 %v53, 4294901760
    %v1231 = vsub.f32 %v53, %v1230
    %v1232 = vand.u32 %v1231, 4294901760
    %v1233 = vsub.f32 %v1231, %v1232
    %v1234 = vand.u32 %v1233, 4294901760
    %1235 = vmatpush2.msra.mxu0 %v1234
    %1236 = vmatprep.subr.mxu0 0.0
    %v1237 = vand.u32 %v52, 4294901760
    %v1238 = vsub.f32 %v52, %v1237
    %v1239 = vand.u32 %v1238, 4294901760
    %v1240 = vsub.f32 %v1238, %v1239
    %v1241 = vand.u32 %v1240, 4294901760
    %1242 = vmatpush2.msra.mxu0 %v1241
    %1243 = vmatprep.subr.mxu0 0.0
    %v1244 = vand.u32 %v51, 4294901760
    %v1245 = vsub.f32 %v51, %v1244
    %v1246 = vand.u32 %v1245, 4294901760
    %v1247 = vsub.f32 %v1245, %v1246
    %v1248 = vand.u32 %v1247, 4294901760
    %1249 = vmatpush2.msra.mxu0 %v1248
    %1250 = vmatprep.subr.mxu0 0.0
    %v1251 = vand.u32 %v50, 4294901760
    %v1252 = vsub.f32 %v50, %v1251
    %v1253 = vand.u32 %v1252, 4294901760
    %v1254 = vsub.f32 %v1252, %v1253
    %v1255 = vand.u32 %v1254, 4294901760
    %1256 = vmatpush2.msra.mxu0 %v1255
    %1257 = vmatprep.subr.mxu0 0.0
    %v1258 = vand.u32 %v49, 4294901760
    %v1259 = vsub.f32 %v49, %v1258
    %v1260 = vand.u32 %v1259, 4294901760
    %v1261 = vsub.f32 %v1259, %v1260
    %v1262 = vand.u32 %v1261, 4294901760
    %1263 = vmatpush2.msra.mxu0 %v1262
    %1264 = vmatprep.subr.mxu0 0.0
    %v1265 = vand.u32 %v48, 4294901760
    %v1266 = vsub.f32 %v48, %v1265
    %v1267 = vand.u32 %v1266, 4294901760
    %v1268 = vsub.f32 %v1266, %v1267
    %v1269 = vand.u32 %v1268, 4294901760
    %1270 = vmatpush2.msra.mxu0 %v1269
    %1271 = vmatprep.subr.mxu0 0.0
    %v1272 = vand.u32 %v47, 4294901760
    %v1273 = vsub.f32 %v47, %v1272
    %v1274 = vand.u32 %v1273, 4294901760
    %v1275 = vsub.f32 %v1273, %v1274
    %v1276 = vand.u32 %v1275, 4294901760
    %1277 = vmatpush2.msra.mxu0 %v1276
    %1278 = vmatprep.subr.mxu0 0.0
    %v1279 = vand.u32 %v46, 4294901760
    %v1280 = vsub.f32 %v46, %v1279
    %v1281 = vand.u32 %v1280, 4294901760
    %v1282 = vsub.f32 %v1280, %v1281
    %v1283 = vand.u32 %v1282, 4294901760
    %1284 = vmatpush2.msra.mxu0 %v1283
    %1285 = vmatprep.subr.mxu0 0.0
    %v1286 = vand.u32 %v45, 4294901760
    %v1287 = vsub.f32 %v45, %v1286
    %v1288 = vand.u32 %v1287, 4294901760
    %v1289 = vsub.f32 %v1287, %v1288
    %v1290 = vand.u32 %v1289, 4294901760
    %1291 = vmatpush2.msra.mxu0 %v1290
    %1292 = vmatprep.subr.mxu0 0.0
    %v1293 = vand.u32 %v44, 4294901760
    %v1294 = vsub.f32 %v44, %v1293
    %v1295 = vand.u32 %v1294, 4294901760
    %v1296 = vsub.f32 %v1294, %v1295
    %v1297 = vand.u32 %v1296, 4294901760
    %1298 = vmatpush2.msra.mxu0 %v1297
    %1299 = vmatprep.subr.mxu0 0.0
    %v1300 = vand.u32 %v43, 4294901760
    %v1301 = vsub.f32 %v43, %v1300
    %v1302 = vand.u32 %v1301, 4294901760
    %v1303 = vsub.f32 %v1301, %v1302
    %v1304 = vand.u32 %v1303, 4294901760
    %1305 = vmatpush2.msra.mxu0 %v1304
    %1306 = vmatprep.subr.mxu0 0.0
    %v1307 = vand.u32 %v42, 4294901760
    %v1308 = vsub.f32 %v42, %v1307
    %v1309 = vand.u32 %v1308, 4294901760
    %v1310 = vsub.f32 %v1308, %v1309
    %v1311 = vand.u32 %v1310, 4294901760
    %1312 = vmatpush2.msra.mxu0 %v1311
    %1313 = vmatprep.subr.mxu0 0.0
    %v1314 = vand.u32 %v41, 4294901760
    %v1315 = vsub.f32 %v41, %v1314
    %v1316 = vand.u32 %v1315, 4294901760
    %v1317 = vsub.f32 %v1315, %v1316
    %v1318 = vand.u32 %v1317, 4294901760
    %1319 = vmatpush2.msra.mxu0 %v1318
    %v1320 = vand.u32 %v983, 4294901760
    %1321 = vmatprep.mubr.f32.mxu0 %v1320
    %v1322 = vand.u32 %v982, 4294901760
    %1323 = vmatmul.mubr.f32.gmra.mxu0 %v1322
    %v1324 = vpop.f32.mrf.mxu0
    %v1325 = vadd.f32 %v1093, %v1324
    %v1326 = vpop.f32.mrf.mxu0
    %1327 = vdwg.mxu0
    %1328 = vmatprep.subr.mxu0 0.0
    %v1329 = vand.u32 %v40, 4294901760
    %v1330 = vsub.f32 %v40, %v1329
    %1331 = vmatpush1.msra.mxu0 %v1330
    %1332 = vmatprep.subr.mxu0 0.0
    %v1333 = vand.u32 %v39, 4294901760
    %v1334 = vsub.f32 %v39, %v1333
    %1335 = vmatpush1.msra.mxu0 %v1334
    %1336 = vmatprep.subr.mxu0 0.0
    %v1337 = vand.u32 %v38, 4294901760
    %v1338 = vsub.f32 %v38, %v1337
    %1339 = vmatpush1.msra.mxu0 %v1338
    %1340 = vmatprep.subr.mxu0 0.0
    %v1341 = vand.u32 %v37, 4294901760
    %v1342 = vsub.f32 %v37, %v1341
    %1343 = vmatpush1.msra.mxu0 %v1342
    %1344 = vmatprep.subr.mxu0 0.0
    %v1345 = vand.u32 %v36, 4294901760
    %v1346 = vsub.f32 %v36, %v1345
    %1347 = vmatpush1.msra.mxu0 %v1346
    %1348 = vmatprep.subr.mxu0 0.0
    %v1349 = vand.u32 %v35, 4294901760
    %v1350 = vsub.f32 %v35, %v1349
    %1351 = vmatpush1.msra.mxu0 %v1350
    %1352 = vmatprep.subr.mxu0 0.0
    %v1353 = vand.u32 %v34, 4294901760
    %v1354 = vsub.f32 %v34, %v1353
    %1355 = vmatpush1.msra.mxu0 %v1354
    %1356 = vmatprep.subr.mxu0 0.0
    %v1357 = vand.u32 %v33, 4294901760
    %v1358 = vsub.f32 %v33, %v1357
    %1359 = vmatpush1.msra.mxu0 %v1358
    %1360 = vmatprep.subr.mxu0 0.0
    %v1361 = vand.u32 %v32, 4294901760
    %v1362 = vsub.f32 %v32, %v1361
    %1363 = vmatpush1.msra.mxu0 %v1362
    %1364 = vmatprep.subr.mxu0 0.0
    %v1365 = vand.u32 %v31, 4294901760
    %v1366 = vsub.f32 %v31, %v1365
    %1367 = vmatpush1.msra.mxu0 %v1366
    %1368 = vmatprep.subr.mxu0 0.0
    %v1369 = vand.u32 %v30, 4294901760
    %v1370 = vsub.f32 %v30, %v1369
    %1371 = vmatpush1.msra.mxu0 %v1370
    %1372 = vmatprep.subr.mxu0 0.0
    %v1373 = vand.u32 %v29, 4294901760
    %v1374 = vsub.f32 %v29, %v1373
    %1375 = vmatpush1.msra.mxu0 %v1374
    %1376 = vmatprep.subr.mxu0 0.0
    %v1377 = vand.u32 %v28, 4294901760
    %v1378 = vsub.f32 %v28, %v1377
    %1379 = vmatpush1.msra.mxu0 %v1378
    %1380 = vmatprep.subr.mxu0 0.0
    %v1381 = vand.u32 %v27, 4294901760
    %v1382 = vsub.f32 %v27, %v1381
    %1383 = vmatpush1.msra.mxu0 %v1382
    %1384 = vmatprep.subr.mxu0 0.0
    %v1385 = vand.u32 %v26, 4294901760
    %v1386 = vsub.f32 %v26, %v1385
    %1387 = vmatpush1.msra.mxu0 %v1386
    %1388 = vmatprep.subr.mxu0 0.0
    %v1389 = vand.u32 %v25, 4294901760
    %v1390 = vsub.f32 %v25, %v1389
    %1391 = vmatpush1.msra.mxu0 %v1390
    %1392 = vmatprep.subr.mxu0 0.0
    %v1393 = vand.u32 %v56, 4294901760
    %v1394 = vsub.f32 %v56, %v1393
    %1395 = vmatpush2.msra.mxu0 %v1394
    %1396 = vmatprep.subr.mxu0 0.0
    %v1397 = vand.u32 %v55, 4294901760
    %v1398 = vsub.f32 %v55, %v1397
    %1399 = vmatpush2.msra.mxu0 %v1398
    %1400 = vmatprep.subr.mxu0 0.0
    %v1401 = vand.u32 %v54, 4294901760
    %v1402 = vsub.f32 %v54, %v1401
    %1403 = vmatpush2.msra.mxu0 %v1402
    %1404 = vmatprep.subr.mxu0 0.0
    %v1405 = vand.u32 %v53, 4294901760
    %v1406 = vsub.f32 %v53, %v1405
    %1407 = vmatpush2.msra.mxu0 %v1406
    %1408 = vmatprep.subr.mxu0 0.0
    %v1409 = vand.u32 %v52, 4294901760
    %v1410 = vsub.f32 %v52, %v1409
    %1411 = vmatpush2.msra.mxu0 %v1410
    %1412 = vmatprep.subr.mxu0 0.0
    %v1413 = vand.u32 %v51, 4294901760
    %v1414 = vsub.f32 %v51, %v1413
    %1415 = vmatpush2.msra.mxu0 %v1414
    %1416 = vmatprep.subr.mxu0 0.0
    %v1417 = vand.u32 %v50, 4294901760
    %v1418 = vsub.f32 %v50, %v1417
    %1419 = vmatpush2.msra.mxu0 %v1418
    %1420 = vmatprep.subr.mxu0 0.0
    %v1421 = vand.u32 %v49, 4294901760
    %v1422 = vsub.f32 %v49, %v1421
    %1423 = vmatpush2.msra.mxu0 %v1422
    %1424 = vmatprep.subr.mxu0 0.0
    %v1425 = vand.u32 %v48, 4294901760
    %v1426 = vsub.f32 %v48, %v1425
    %1427 = vmatpush2.msra.mxu0 %v1426
    %1428 = vmatprep.subr.mxu0 0.0
    %v1429 = vand.u32 %v47, 4294901760
    %v1430 = vsub.f32 %v47, %v1429
    %1431 = vmatpush2.msra.mxu0 %v1430
    %1432 = vmatprep.subr.mxu0 0.0
    %v1433 = vand.u32 %v46, 4294901760
    %v1434 = vsub.f32 %v46, %v1433
    %1435 = vmatpush2.msra.mxu0 %v1434
    %1436 = vmatprep.subr.mxu0 0.0
    %v1437 = vand.u32 %v45, 4294901760
    %v1438 = vsub.f32 %v45, %v1437
    %1439 = vmatpush2.msra.mxu0 %v1438
    %1440 = vmatprep.subr.mxu0 0.0
    %v1441 = vand.u32 %v44, 4294901760
    %v1442 = vsub.f32 %v44, %v1441
    %1443 = vmatpush2.msra.mxu0 %v1442
    %1444 = vmatprep.subr.mxu0 0.0
    %v1445 = vand.u32 %v43, 4294901760
    %v1446 = vsub.f32 %v43, %v1445
    %1447 = vmatpush2.msra.mxu0 %v1446
    %1448 = vmatprep.subr.mxu0 0.0
    %v1449 = vand.u32 %v42, 4294901760
    %v1450 = vsub.f32 %v42, %v1449
    %1451 = vmatpush2.msra.mxu0 %v1450
    %1452 = vmatprep.subr.mxu0 0.0
    %v1453 = vand.u32 %v41, 4294901760
    %v1454 = vsub.f32 %v41, %v1453
    %1455 = vmatpush2.msra.mxu0 %v1454
    %v1456 = vand.u32 %v983, 4294901760
    %v1457 = vsub.f32 %v983, %v1456
    %1458 = vmatprep.mubr.f32.mxu0 %v1457
    %v1459 = vand.u32 %v982, 4294901760
    %v1460 = vsub.f32 %v982, %v1459
    %1461 = vmatmul.mubr.f32.gmra.mxu0 %v1460
    %v1462 = vpop.f32.mrf.mxu0
    %v1463 = vadd.f32 %v1325, %v1462
    %v1464 = vpop.f32.mrf.mxu0
    %1465 = vdwg.mxu0
    %1466 = vmatprep.subr.mxu0 0.0
    %v1467 = vand.u32 %v40, 4294901760
    %1468 = vmatpush1.msra.mxu0 %v1467
    %1469 = vmatprep.subr.mxu0 0.0
    %v1470 = vand.u32 %v39, 4294901760
    %1471 = vmatpush1.msra.mxu0 %v1470
    %1472 = vmatprep.subr.mxu0 0.0
    %v1473 = vand.u32 %v38, 4294901760
    %1474 = vmatpush1.msra.mxu0 %v1473
    %1475 = vmatprep.subr.mxu0 0.0
    %v1476 = vand.u32 %v37, 4294901760
    %1477 = vmatpush1.msra.mxu0 %v1476
    %1478 = vmatprep.subr.mxu0 0.0
    %v1479 = vand.u32 %v36, 4294901760
    %1480 = vmatpush1.msra.mxu0 %v1479
    %1481 = vmatprep.subr.mxu0 0.0
    %v1482 = vand.u32 %v35, 4294901760
    %1483 = vmatpush1.msra.mxu0 %v1482
    %1484 = vmatprep.subr.mxu0 0.0
    %v1485 = vand.u32 %v34, 4294901760
    %1486 = vmatpush1.msra.mxu0 %v1485
    %1487 = vmatprep.subr.mxu0 0.0
    %v1488 = vand.u32 %v33, 4294901760
    %1489 = vmatpush1.msra.mxu0 %v1488
    %1490 = vmatprep.subr.mxu0 0.0
    %v1491 = vand.u32 %v32, 4294901760
    %1492 = vmatpush1.msra.mxu0 %v1491
    %1493 = vmatprep.subr.mxu0 0.0
    %v1494 = vand.u32 %v31, 4294901760
    %1495 = vmatpush1.msra.mxu0 %v1494
    %1496 = vmatprep.subr.mxu0 0.0
    %v1497 = vand.u32 %v30, 4294901760
    %1498 = vmatpush1.msra.mxu0 %v1497
    %1499 = vmatprep.subr.mxu0 0.0
    %v1500 = vand.u32 %v29, 4294901760
    %1501 = vmatpush1.msra.mxu0 %v1500
    %1502 = vmatprep.subr.mxu0 0.0
    %v1503 = vand.u32 %v28, 4294901760
    %1504 = vmatpush1.msra.mxu0 %v1503
    %1505 = vmatprep.subr.mxu0 0.0
    %v1506 = vand.u32 %v27, 4294901760
    %1507 = vmatpush1.msra.mxu0 %v1506
    %1508 = vmatprep.subr.mxu0 0.0
    %v1509 = vand.u32 %v26, 4294901760
    %1510 = vmatpush1.msra.mxu0 %v1509
    %1511 = vmatprep.subr.mxu0 0.0
    %v1512 = vand.u32 %v25, 4294901760
    %1513 = vmatpush1.msra.mxu0 %v1512
    %1514 = vmatprep.subr.mxu0 0.0
    %v1515 = vand.u32 %v56, 4294901760
    %1516 = vmatpush2.msra.mxu0 %v1515
    %1517 = vmatprep.subr.mxu0 0.0
    %v1518 = vand.u32 %v55, 4294901760
    %1519 = vmatpush2.msra.mxu0 %v1518
    %1520 = vmatprep.subr.mxu0 0.0
    %v1521 = vand.u32 %v54, 4294901760
    %1522 = vmatpush2.msra.mxu0 %v1521
    %1523 = vmatprep.subr.mxu0 0.0
    %v1524 = vand.u32 %v53, 4294901760
    %1525 = vmatpush2.msra.mxu0 %v1524
    %1526 = vmatprep.subr.mxu0 0.0
    %v1527 = vand.u32 %v52, 4294901760
    %1528 = vmatpush2.msra.mxu0 %v1527
    %1529 = vmatprep.subr.mxu0 0.0
    %v1530 = vand.u32 %v51, 4294901760
    %1531 = vmatpush2.msra.mxu0 %v1530
    %1532 = vmatprep.subr.mxu0 0.0
    %v1533 = vand.u32 %v50, 4294901760
    %1534 = vmatpush2.msra.mxu0 %v1533
    %1535 = vmatprep.subr.mxu0 0.0
    %v1536 = vand.u32 %v49, 4294901760
    %1537 = vmatpush2.msra.mxu0 %v1536
    %1538 = vmatprep.subr.mxu0 0.0
    %v1539 = vand.u32 %v48, 4294901760
    %1540 = vmatpush2.msra.mxu0 %v1539
    %1541 = vmatprep.subr.mxu0 0.0
    %v1542 = vand.u32 %v47, 4294901760
    %1543 = vmatpush2.msra.mxu0 %v1542
    %1544 = vmatprep.subr.mxu0 0.0
    %v1545 = vand.u32 %v46, 4294901760
    %1546 = vmatpush2.msra.mxu0 %v1545
    %1547 = vmatprep.subr.mxu0 0.0
    %v1548 = vand.u32 %v45, 4294901760
    %1549 = vmatpush2.msra.mxu0 %v1548
    %1550 = vmatprep.subr.mxu0 0.0
    %v1551 = vand.u32 %v44, 4294901760
    %1552 = vmatpush2.msra.mxu0 %v1551
    %1553 = vmatprep.subr.mxu0 0.0
    %v1554 = vand.u32 %v43, 4294901760
    %1555 = vmatpush2.msra.mxu0 %v1554
    %1556 = vmatprep.subr.mxu0 0.0
    %v1557 = vand.u32 %v42, 4294901760
    %1558 = vmatpush2.msra.mxu0 %v1557
    %1559 = vmatprep.subr.mxu0 0.0
    %v1560 = vand.u32 %v41, 4294901760
    %1561 = vmatpush2.msra.mxu0 %v1560
    %v1562 = vand.u32 %v983, 4294901760
    %v1563 = vsub.f32 %v983, %v1562
    %v1564 = vand.u32 %v1563, 4294901760
    %1565 = vmatprep.mubr.f32.mxu0 %v1564
    %v1566 = vand.u32 %v982, 4294901760
    %v1567 = vsub.f32 %v982, %v1566
    %v1568 = vand.u32 %v1567, 4294901760
    %1569 = vmatmul.mubr.f32.gmra.mxu0 %v1568
    %v1570 = vpop.f32.mrf.mxu0
    %v1571 = vadd.f32 %v1463, %v1570
    %v1572 = vpop.f32.mrf.mxu0
    %1573 = vdwg.mxu0
    %1574 = vmatprep.subr.mxu0 0.0
    %v1575 = vand.u32 %v40, 4294901760
    %v1576 = vsub.f32 %v40, %v1575
    %v1577 = vand.u32 %v1576, 4294901760
    %1578 = vmatpush1.msra.mxu0 %v1577
    %1579 = vmatprep.subr.mxu0 0.0
    %v1580 = vand.u32 %v39, 4294901760
    %v1581 = vsub.f32 %v39, %v1580
    %v1582 = vand.u32 %v1581, 4294901760
    %1583 = vmatpush1.msra.mxu0 %v1582
    %1584 = vmatprep.subr.mxu0 0.0
    %v1585 = vand.u32 %v38, 4294901760
    %v1586 = vsub.f32 %v38, %v1585
    %v1587 = vand.u32 %v1586, 4294901760
    %1588 = vmatpush1.msra.mxu0 %v1587
    %1589 = vmatprep.subr.mxu0 0.0
    %v1590 = vand.u32 %v37, 4294901760
    %v1591 = vsub.f32 %v37, %v1590
    %v1592 = vand.u32 %v1591, 4294901760
    %1593 = vmatpush1.msra.mxu0 %v1592
    %1594 = vmatprep.subr.mxu0 0.0
    %v1595 = vand.u32 %v36, 4294901760
    %v1596 = vsub.f32 %v36, %v1595
    %v1597 = vand.u32 %v1596, 4294901760
    %1598 = vmatpush1.msra.mxu0 %v1597
    %1599 = vmatprep.subr.mxu0 0.0
    %v1600 = vand.u32 %v35, 4294901760
    %v1601 = vsub.f32 %v35, %v1600
    %v1602 = vand.u32 %v1601, 4294901760
    %1603 = vmatpush1.msra.mxu0 %v1602
    %1604 = vmatprep.subr.mxu0 0.0
    %v1605 = vand.u32 %v34, 4294901760
    %v1606 = vsub.f32 %v34, %v1605
    %v1607 = vand.u32 %v1606, 4294901760
    %1608 = vmatpush1.msra.mxu0 %v1607
    %1609 = vmatprep.subr.mxu0 0.0
    %v1610 = vand.u32 %v33, 4294901760
    %v1611 = vsub.f32 %v33, %v1610
    %v1612 = vand.u32 %v1611, 4294901760
    %1613 = vmatpush1.msra.mxu0 %v1612
    %1614 = vmatprep.subr.mxu0 0.0
    %v1615 = vand.u32 %v32, 4294901760
    %v1616 = vsub.f32 %v32, %v1615
    %v1617 = vand.u32 %v1616, 4294901760
    %1618 = vmatpush1.msra.mxu0 %v1617
    %1619 = vmatprep.subr.mxu0 0.0
    %v1620 = vand.u32 %v31, 4294901760
    %v1621 = vsub.f32 %v31, %v1620
    %v1622 = vand.u32 %v1621, 4294901760
    %1623 = vmatpush1.msra.mxu0 %v1622
    %1624 = vmatprep.subr.mxu0 0.0
    %v1625 = vand.u32 %v30, 4294901760
    %v1626 = vsub.f32 %v30, %v1625
    %v1627 = vand.u32 %v1626, 4294901760
    %1628 = vmatpush1.msra.mxu0 %v1627
    %1629 = vmatprep.subr.mxu0 0.0
    %v1630 = vand.u32 %v29, 4294901760
    %v1631 = vsub.f32 %v29, %v1630
    %v1632 = vand.u32 %v1631, 4294901760
    %1633 = vmatpush1.msra.mxu0 %v1632
    %1634 = vmatprep.subr.mxu0 0.0
    %v1635 = vand.u32 %v28, 4294901760
    %v1636 = vsub.f32 %v28, %v1635
    %v1637 = vand.u32 %v1636, 4294901760
    %1638 = vmatpush1.msra.mxu0 %v1637
    %1639 = vmatprep.subr.mxu0 0.0
    %v1640 = vand.u32 %v27, 4294901760
    %v1641 = vsub.f32 %v27, %v1640
    %v1642 = vand.u32 %v1641, 4294901760
    %1643 = vmatpush1.msra.mxu0 %v1642
    %1644 = vmatprep.subr.mxu0 0.0
    %v1645 = vand.u32 %v26, 4294901760
    %v1646 = vsub.f32 %v26, %v1645
    %v1647 = vand.u32 %v1646, 4294901760
    %1648 = vmatpush1.msra.mxu0 %v1647
    %1649 = vmatprep.subr.mxu0 0.0
    %v1650 = vand.u32 %v25, 4294901760
    %v1651 = vsub.f32 %v25, %v1650
    %v1652 = vand.u32 %v1651, 4294901760
    %1653 = vmatpush1.msra.mxu0 %v1652
    %1654 = vmatprep.subr.mxu0 0.0
    %v1655 = vand.u32 %v56, 4294901760
    %v1656 = vsub.f32 %v56, %v1655
    %v1657 = vand.u32 %v1656, 4294901760
    %1658 = vmatpush2.msra.mxu0 %v1657
    %1659 = vmatprep.subr.mxu0 0.0
    %v1660 = vand.u32 %v55, 4294901760
    %v1661 = vsub.f32 %v55, %v1660
    %v1662 = vand.u32 %v1661, 4294901760
    %1663 = vmatpush2.msra.mxu0 %v1662
    %1664 = vmatprep.subr.mxu0 0.0
    %v1665 = vand.u32 %v54, 4294901760
    %v1666 = vsub.f32 %v54, %v1665
    %v1667 = vand.u32 %v1666, 4294901760
    %1668 = vmatpush2.msra.mxu0 %v1667
    %1669 = vmatprep.subr.mxu0 0.0
    %v1670 = vand.u32 %v53, 4294901760
    %v1671 = vsub.f32 %v53, %v1670
    %v1672 = vand.u32 %v1671, 4294901760
    %1673 = vmatpush2.msra.mxu0 %v1672
    %1674 = vmatprep.subr.mxu0 0.0
    %v1675 = vand.u32 %v52, 4294901760
    %v1676 = vsub.f32 %v52, %v1675
    %v1677 = vand.u32 %v1676, 4294901760
    %1678 = vmatpush2.msra.mxu0 %v1677
    %1679 = vmatprep.subr.mxu0 0.0
    %v1680 = vand.u32 %v51, 4294901760
    %v1681 = vsub.f32 %v51, %v1680
    %v1682 = vand.u32 %v1681, 4294901760
    %1683 = vmatpush2.msra.mxu0 %v1682
    %1684 = vmatprep.subr.mxu0 0.0
    %v1685 = vand.u32 %v50, 4294901760
    %v1686 = vsub.f32 %v50, %v1685
    %v1687 = vand.u32 %v1686, 4294901760
    %1688 = vmatpush2.msra.mxu0 %v1687
    %1689 = vmatprep.subr.mxu0 0.0
    %v1690 = vand.u32 %v49, 4294901760
    %v1691 = vsub.f32 %v49, %v1690
    %v1692 = vand.u32 %v1691, 4294901760
    %1693 = vmatpush2.msra.mxu0 %v1692
    %1694 = vmatprep.subr.mxu0 0.0
    %v1695 = vand.u32 %v48, 4294901760
    %v1696 = vsub.f32 %v48, %v1695
    %v1697 = vand.u32 %v1696, 4294901760
    %1698 = vmatpush2.msra.mxu0 %v1697
    %1699 = vmatprep.subr.mxu0 0.0
    %v1700 = vand.u32 %v47, 4294901760
    %v1701 = vsub.f32 %v47, %v1700
    %v1702 = vand.u32 %v1701, 4294901760
    %1703 = vmatpush2.msra.mxu0 %v1702
    %1704 = vmatprep.subr.mxu0 0.0
    %v1705 = vand.u32 %v46, 4294901760
    %v1706 = vsub.f32 %v46, %v1705
    %v1707 = vand.u32 %v1706, 4294901760
    %1708 = vmatpush2.msra.mxu0 %v1707
    %1709 = vmatprep.subr.mxu0 0.0
    %v1710 = vand.u32 %v45, 4294901760
    %v1711 = vsub.f32 %v45, %v1710
    %v1712 = vand.u32 %v1711, 4294901760
    %1713 = vmatpush2.msra.mxu0 %v1712
    %1714 = vmatprep.subr.mxu0 0.0
    %v1715 = vand.u32 %v44, 4294901760
    %v1716 = vsub.f32 %v44, %v1715
    %v1717 = vand.u32 %v1716, 4294901760
    %1718 = vmatpush2.msra.mxu0 %v1717
    %1719 = vmatprep.subr.mxu0 0.0
    %v1720 = vand.u32 %v43, 4294901760
    %v1721 = vsub.f32 %v43, %v1720
    %v1722 = vand.u32 %v1721, 4294901760
    %1723 = vmatpush2.msra.mxu0 %v1722
    %1724 = vmatprep.subr.mxu0 0.0
    %v1725 = vand.u32 %v42, 4294901760
    %v1726 = vsub.f32 %v42, %v1725
    %v1727 = vand.u32 %v1726, 4294901760
    %1728 = vmatpush2.msra.mxu0 %v1727
    %1729 = vmatprep.subr.mxu0 0.0
    %v1730 = vand.u32 %v41, 4294901760
    %v1731 = vsub.f32 %v41, %v1730
    %v1732 = vand.u32 %v1731, 4294901760
    %1733 = vmatpush2.msra.mxu0 %v1732
    %v1734 = vand.u32 %v983, 4294901760
    %1735 = vmatprep.mubr.f32.mxu0 %v1734
    %v1736 = vand.u32 %v982, 4294901760
    %1737 = vmatmul.mubr.f32.gmra.mxu0 %v1736
    %v1738 = vpop.f32.mrf.mxu0
    %v1739 = vadd.f32 %v1571, %v1738
    %v1740 = vpop.f32.mrf.mxu0
    %1741 = vdwg.mxu0
    %1742 = vmatprep.subr.mxu0 0.0
    %v1743 = vand.u32 %v40, 4294901760
    %1744 = vmatpush1.msra.mxu0 %v1743
    %1745 = vmatprep.subr.mxu0 0.0
    %v1746 = vand.u32 %v39, 4294901760
    %1747 = vmatpush1.msra.mxu0 %v1746
    %1748 = vmatprep.subr.mxu0 0.0
    %v1749 = vand.u32 %v38, 4294901760
    %1750 = vmatpush1.msra.mxu0 %v1749
    %1751 = vmatprep.subr.mxu0 0.0
    %v1752 = vand.u32 %v37, 4294901760
    %1753 = vmatpush1.msra.mxu0 %v1752
    %1754 = vmatprep.subr.mxu0 0.0
    %v1755 = vand.u32 %v36, 4294901760
    %1756 = vmatpush1.msra.mxu0 %v1755
    %1757 = vmatprep.subr.mxu0 0.0
    %v1758 = vand.u32 %v35, 4294901760
    %1759 = vmatpush1.msra.mxu0 %v1758
    %1760 = vmatprep.subr.mxu0 0.0
    %v1761 = vand.u32 %v34, 4294901760
    %1762 = vmatpush1.msra.mxu0 %v1761
    %1763 = vmatprep.subr.mxu0 0.0
    %v1764 = vand.u32 %v33, 4294901760
    %1765 = vmatpush1.msra.mxu0 %v1764
    %1766 = vmatprep.subr.mxu0 0.0
    %v1767 = vand.u32 %v32, 4294901760
    %1768 = vmatpush1.msra.mxu0 %v1767
    %1769 = vmatprep.subr.mxu0 0.0
    %v1770 = vand.u32 %v31, 4294901760
    %1771 = vmatpush1.msra.mxu0 %v1770
    %1772 = vmatprep.subr.mxu0 0.0
    %v1773 = vand.u32 %v30, 4294901760
    %1774 = vmatpush1.msra.mxu0 %v1773
    %1775 = vmatprep.subr.mxu0 0.0
    %v1776 = vand.u32 %v29, 4294901760
    %1777 = vmatpush1.msra.mxu0 %v1776
    %1778 = vmatprep.subr.mxu0 0.0
    %v1779 = vand.u32 %v28, 4294901760
    %1780 = vmatpush1.msra.mxu0 %v1779
    %1781 = vmatprep.subr.mxu0 0.0
    %v1782 = vand.u32 %v27, 4294901760
    %1783 = vmatpush1.msra.mxu0 %v1782
    %1784 = vmatprep.subr.mxu0 0.0
    %v1785 = vand.u32 %v26, 4294901760
    %1786 = vmatpush1.msra.mxu0 %v1785
    %1787 = vmatprep.subr.mxu0 0.0
    %v1788 = vand.u32 %v25, 4294901760
    %1789 = vmatpush1.msra.mxu0 %v1788
    %1790 = vmatprep.subr.mxu0 0.0
    %v1791 = vand.u32 %v56, 4294901760
    %1792 = vmatpush2.msra.mxu0 %v1791
    %1793 = vmatprep.subr.mxu0 0.0
    %v1794 = vand.u32 %v55, 4294901760
    %1795 = vmatpush2.msra.mxu0 %v1794
    %1796 = vmatprep.subr.mxu0 0.0
    %v1797 = vand.u32 %v54, 4294901760
    %1798 = vmatpush2.msra.mxu0 %v1797
    %1799 = vmatprep.subr.mxu0 0.0
    %v1800 = vand.u32 %v53, 4294901760
    %1801 = vmatpush2.msra.mxu0 %v1800
    %1802 = vmatprep.subr.mxu0 0.0
    %v1803 = vand.u32 %v52, 4294901760
    %1804 = vmatpush2.msra.mxu0 %v1803
    %1805 = vmatprep.subr.mxu0 0.0
    %v1806 = vand.u32 %v51, 4294901760
    %1807 = vmatpush2.msra.mxu0 %v1806
    %1808 = vmatprep.subr.mxu0 0.0
    %v1809 = vand.u32 %v50, 4294901760
    %1810 = vmatpush2.msra.mxu0 %v1809
    %1811 = vmatprep.subr.mxu0 0.0
    %v1812 = vand.u32 %v49, 4294901760
    %1813 = vmatpush2.msra.mxu0 %v1812
    %1814 = vmatprep.subr.mxu0 0.0
    %v1815 = vand.u32 %v48, 4294901760
    %1816 = vmatpush2.msra.mxu0 %v1815
    %1817 = vmatprep.subr.mxu0 0.0
    %v1818 = vand.u32 %v47, 4294901760
    %1819 = vmatpush2.msra.mxu0 %v1818
    %1820 = vmatprep.subr.mxu0 0.0
    %v1821 = vand.u32 %v46, 4294901760
    %1822 = vmatpush2.msra.mxu0 %v1821
    %1823 = vmatprep.subr.mxu0 0.0
    %v1824 = vand.u32 %v45, 4294901760
    %1825 = vmatpush2.msra.mxu0 %v1824
    %1826 = vmatprep.subr.mxu0 0.0
    %v1827 = vand.u32 %v44, 4294901760
    %1828 = vmatpush2.msra.mxu0 %v1827
    %1829 = vmatprep.subr.mxu0 0.0
    %v1830 = vand.u32 %v43, 4294901760
    %1831 = vmatpush2.msra.mxu0 %v1830
    %1832 = vmatprep.subr.mxu0 0.0
    %v1833 = vand.u32 %v42, 4294901760
    %1834 = vmatpush2.msra.mxu0 %v1833
    %1835 = vmatprep.subr.mxu0 0.0
    %v1836 = vand.u32 %v41, 4294901760
    %1837 = vmatpush2.msra.mxu0 %v1836
    %v1838 = vand.u32 %v983, 4294901760
    %1839 = vmatprep.mubr.f32.mxu0 %v1838
    %v1840 = vand.u32 %v982, 4294901760
    %1841 = vmatmul.mubr.f32.gmra.mxu0 %v1840
    %v1842 = vpop.f32.mrf.mxu0
    %v1843 = vadd.f32 %v1739, %v1842
    %v1844 = vpop.f32.mrf.mxu0
    %1845 = vdwg.mxu0
    %vm1846 = vcmp.ge.s32.totalorder %v59, 32
    %vm1847 = vcmp.lt.s32.totalorder %v59, 64
    %vm1848 = vmand %vm1846, %vm1847
    %1849 = vrot.lane.b32.xlu0 %v1843, 32
    %v1850 = vpop.permute.xlu0 %1849
    %1851 = vset.pattern.permute.xlu0 1
    %1852 = vperm.xlu0 %1851, %v938
    %v1853 = vpop.permute.xlu0 %1852
    %vm1854 = vcmp.eq.s32.totalorder %v1853, 1
    %vm1855 = vmand %vm1848, %vm1854
    %v1856 = vsel %vm1855, %v1850, %v974
    %1857 = vset.pattern.permute.xlu0 1
    %1858 = vperm.xlu0 %1857, %v948
    %v1859 = vpop.permute.xlu0 %1858
    %vm1860 = vcmp.eq.s32.totalorder %v1859, 1
    %vm1861 = vmand %vm1848, %vm1860
    %v1862 = vsel %vm1861, %v1843, %v1856
    %1863 = vrot.lane.b32.xlu0 %v1843, 96
    %v1864 = vpop.permute.xlu0 %1863
    %1865 = vset.pattern.permute.xlu0 1
    %1866 = vperm.xlu0 %1865, %v958
    %v1867 = vpop.permute.xlu0 %1866
    %vm1868 = vcmp.eq.s32.totalorder %v1867, 1
    %vm1869 = vmand %vm1848, %vm1868
    %v1870 = vsel %vm1869, %v1864, %v1862
    %1871 = vrot.lane.b32.xlu0 %v1843, 64
    %v1872 = vpop.permute.xlu0 %1871
    %1873 = vset.pattern.permute.xlu0 1
    %1874 = vperm.xlu0 %1873, %v968
    %v1875 = vpop.permute.xlu0 %1874
    %vm1876 = vcmp.eq.s32.totalorder %v1875, 1
    %vm1877 = vmand %vm1848, %vm1876
    %v1878 = vsel %vm1877, %v1872, %v1870
    %1879 = vset.pattern.permute.xlu0 2
    %1880 = vperm.xlu0 %1879, %v61
    %v1881 = vpop.permute.xlu0 %1880
    %vm1882 = vcmp.eq.s32.totalorder %v59, %v1881
    %vm1883 = vcmp.eq.s32.totalorder %v60, %v1881
    %v1884 = vsel %vm1882, 1, 0
    %v1885 = vsel %vm1883, 1, 0
    %v1886 = vcvt.s32.f32 %v1884
    %v1887 = vcvt.s32.f32 %v1885
    %1888 = vmatprep.subr.mxu0 0.0
    %v1889 = vand.u32 %v40, 4294901760
    %1890 = vmatpush1.msra.mxu0 %v1889
    %1891 = vmatprep.subr.mxu0 0.0
    %v1892 = vand.u32 %v39, 4294901760
    %1893 = vmatpush1.msra.mxu0 %v1892
    %1894 = vmatprep.subr.mxu0 0.0
    %v1895 = vand.u32 %v38, 4294901760
    %1896 = vmatpush1.msra.mxu0 %v1895
    %1897 = vmatprep.subr.mxu0 0.0
    %v1898 = vand.u32 %v37, 4294901760
    %1899 = vmatpush1.msra.mxu0 %v1898
    %1900 = vmatprep.subr.mxu0 0.0
    %v1901 = vand.u32 %v36, 4294901760
    %1902 = vmatpush1.msra.mxu0 %v1901
    %1903 = vmatprep.subr.mxu0 0.0
    %v1904 = vand.u32 %v35, 4294901760
    %1905 = vmatpush1.msra.mxu0 %v1904
    %1906 = vmatprep.subr.mxu0 0.0
    %v1907 = vand.u32 %v34, 4294901760
    %1908 = vmatpush1.msra.mxu0 %v1907
    %1909 = vmatprep.subr.mxu0 0.0
    %v1910 = vand.u32 %v33, 4294901760
    %1911 = vmatpush1.msra.mxu0 %v1910
    %1912 = vmatprep.subr.mxu0 0.0
    %v1913 = vand.u32 %v32, 4294901760
    %1914 = vmatpush1.msra.mxu0 %v1913
    %1915 = vmatprep.subr.mxu0 0.0
    %v1916 = vand.u32 %v31, 4294901760
    %1917 = vmatpush1.msra.mxu0 %v1916
    %1918 = vmatprep.subr.mxu0 0.0
    %v1919 = vand.u32 %v30, 4294901760
    %1920 = vmatpush1.msra.mxu0 %v1919
    %1921 = vmatprep.subr.mxu0 0.0
    %v1922 = vand.u32 %v29, 4294901760
    %1923 = vmatpush1.msra.mxu0 %v1922
    %1924 = vmatprep.subr.mxu0 0.0
    %v1925 = vand.u32 %v28, 4294901760
    %1926 = vmatpush1.msra.mxu0 %v1925
    %1927 = vmatprep.subr.mxu0 0.0
    %v1928 = vand.u32 %v27, 4294901760
    %1929 = vmatpush1.msra.mxu0 %v1928
    %1930 = vmatprep.subr.mxu0 0.0
    %v1931 = vand.u32 %v26, 4294901760
    %1932 = vmatpush1.msra.mxu0 %v1931
    %1933 = vmatprep.subr.mxu0 0.0
    %v1934 = vand.u32 %v25, 4294901760
    %1935 = vmatpush1.msra.mxu0 %v1934
    %1936 = vmatprep.subr.mxu0 0.0
    %v1937 = vand.u32 %v56, 4294901760
    %1938 = vmatpush2.msra.mxu0 %v1937
    %1939 = vmatprep.subr.mxu0 0.0
    %v1940 = vand.u32 %v55, 4294901760
    %1941 = vmatpush2.msra.mxu0 %v1940
    %1942 = vmatprep.subr.mxu0 0.0
    %v1943 = vand.u32 %v54, 4294901760
    %1944 = vmatpush2.msra.mxu0 %v1943
    %1945 = vmatprep.subr.mxu0 0.0
    %v1946 = vand.u32 %v53, 4294901760
    %1947 = vmatpush2.msra.mxu0 %v1946
    %1948 = vmatprep.subr.mxu0 0.0
    %v1949 = vand.u32 %v52, 4294901760
    %1950 = vmatpush2.msra.mxu0 %v1949
    %1951 = vmatprep.subr.mxu0 0.0
    %v1952 = vand.u32 %v51, 4294901760
    %1953 = vmatpush2.msra.mxu0 %v1952
    %1954 = vmatprep.subr.mxu0 0.0
    %v1955 = vand.u32 %v50, 4294901760
    %1956 = vmatpush2.msra.mxu0 %v1955
    %1957 = vmatprep.subr.mxu0 0.0
    %v1958 = vand.u32 %v49, 4294901760
    %1959 = vmatpush2.msra.mxu0 %v1958
    %1960 = vmatprep.subr.mxu0 0.0
    %v1961 = vand.u32 %v48, 4294901760
    %1962 = vmatpush2.msra.mxu0 %v1961
    %1963 = vmatprep.subr.mxu0 0.0
    %v1964 = vand.u32 %v47, 4294901760
    %1965 = vmatpush2.msra.mxu0 %v1964
    %1966 = vmatprep.subr.mxu0 0.0
    %v1967 = vand.u32 %v46, 4294901760
    %1968 = vmatpush2.msra.mxu0 %v1967
    %1969 = vmatprep.subr.mxu0 0.0
    %v1970 = vand.u32 %v45, 4294901760
    %1971 = vmatpush2.msra.mxu0 %v1970
    %1972 = vmatprep.subr.mxu0 0.0
    %v1973 = vand.u32 %v44, 4294901760
    %1974 = vmatpush2.msra.mxu0 %v1973
    %1975 = vmatprep.subr.mxu0 0.0
    %v1976 = vand.u32 %v43, 4294901760
    %1977 = vmatpush2.msra.mxu0 %v1976
    %1978 = vmatprep.subr.mxu0 0.0
    %v1979 = vand.u32 %v42, 4294901760
    %1980 = vmatpush2.msra.mxu0 %v1979
    %1981 = vmatprep.subr.mxu0 0.0
    %v1982 = vand.u32 %v41, 4294901760
    %1983 = vmatpush2.msra.mxu0 %v1982
    %v1984 = vand.u32 %v1887, 4294901760
    %v1985 = vsub.f32 %v1887, %v1984
    %v1986 = vand.u32 %v1985, 4294901760
    %v1987 = vsub.f32 %v1985, %v1986
    %v1988 = vand.u32 %v1987, 4294901760
    %1989 = vmatprep.mubr.f32.mxu0 %v1988
    %v1990 = vand.u32 %v1886, 4294901760
    %v1991 = vsub.f32 %v1886, %v1990
    %v1992 = vand.u32 %v1991, 4294901760
    %v1993 = vsub.f32 %v1991, %v1992
    %v1994 = vand.u32 %v1993, 4294901760
    %1995 = vmatmul.mubr.f32.gmra.mxu0 %v1994
    %v1996 = vpop.f32.mrf.mxu0
    %v1997 = vadd.f32 0.0, %v1996
    %v1998 = vpop.f32.mrf.mxu0
    %1999 = vdwg.mxu0
    %2000 = vmatprep.subr.mxu0 0.0
    %v2001 = vand.u32 %v40, 4294901760
    %v2002 = vsub.f32 %v40, %v2001
    %v2003 = vand.u32 %v2002, 4294901760
    %v2004 = vsub.f32 %v2002, %v2003
    %v2005 = vand.u32 %v2004, 4294901760
    %2006 = vmatpush1.msra.mxu0 %v2005
    %2007 = vmatprep.subr.mxu0 0.0
    %v2008 = vand.u32 %v39, 4294901760
    %v2009 = vsub.f32 %v39, %v2008
    %v2010 = vand.u32 %v2009, 4294901760
    %v2011 = vsub.f32 %v2009, %v2010
    %v2012 = vand.u32 %v2011, 4294901760
    %2013 = vmatpush1.msra.mxu0 %v2012
    %2014 = vmatprep.subr.mxu0 0.0
    %v2015 = vand.u32 %v38, 4294901760
    %v2016 = vsub.f32 %v38, %v2015
    %v2017 = vand.u32 %v2016, 4294901760
    %v2018 = vsub.f32 %v2016, %v2017
    %v2019 = vand.u32 %v2018, 4294901760
    %2020 = vmatpush1.msra.mxu0 %v2019
    %2021 = vmatprep.subr.mxu0 0.0
    %v2022 = vand.u32 %v37, 4294901760
    %v2023 = vsub.f32 %v37, %v2022
    %v2024 = vand.u32 %v2023, 4294901760
    %v2025 = vsub.f32 %v2023, %v2024
    %v2026 = vand.u32 %v2025, 4294901760
    %2027 = vmatpush1.msra.mxu0 %v2026
    %2028 = vmatprep.subr.mxu0 0.0
    %v2029 = vand.u32 %v36, 4294901760
    %v2030 = vsub.f32 %v36, %v2029
    %v2031 = vand.u32 %v2030, 4294901760
    %v2032 = vsub.f32 %v2030, %v2031
    %v2033 = vand.u32 %v2032, 4294901760
    %2034 = vmatpush1.msra.mxu0 %v2033
    %2035 = vmatprep.subr.mxu0 0.0
    %v2036 = vand.u32 %v35, 4294901760
    %v2037 = vsub.f32 %v35, %v2036
    %v2038 = vand.u32 %v2037, 4294901760
    %v2039 = vsub.f32 %v2037, %v2038
    %v2040 = vand.u32 %v2039, 4294901760
    %2041 = vmatpush1.msra.mxu0 %v2040
    %2042 = vmatprep.subr.mxu0 0.0
    %v2043 = vand.u32 %v34, 4294901760
    %v2044 = vsub.f32 %v34, %v2043
    %v2045 = vand.u32 %v2044, 4294901760
    %v2046 = vsub.f32 %v2044, %v2045
    %v2047 = vand.u32 %v2046, 4294901760
    %2048 = vmatpush1.msra.mxu0 %v2047
    %2049 = vmatprep.subr.mxu0 0.0
    %v2050 = vand.u32 %v33, 4294901760
    %v2051 = vsub.f32 %v33, %v2050
    %v2052 = vand.u32 %v2051, 4294901760
    %v2053 = vsub.f32 %v2051, %v2052
    %v2054 = vand.u32 %v2053, 4294901760
    %2055 = vmatpush1.msra.mxu0 %v2054
    %2056 = vmatprep.subr.mxu0 0.0
    %v2057 = vand.u32 %v32, 4294901760
    %v2058 = vsub.f32 %v32, %v2057
    %v2059 = vand.u32 %v2058, 4294901760
    %v2060 = vsub.f32 %v2058, %v2059
    %v2061 = vand.u32 %v2060, 4294901760
    %2062 = vmatpush1.msra.mxu0 %v2061
    %2063 = vmatprep.subr.mxu0 0.0
    %v2064 = vand.u32 %v31, 4294901760
    %v2065 = vsub.f32 %v31, %v2064
    %v2066 = vand.u32 %v2065, 4294901760
    %v2067 = vsub.f32 %v2065, %v2066
    %v2068 = vand.u32 %v2067, 4294901760
    %2069 = vmatpush1.msra.mxu0 %v2068
    %2070 = vmatprep.subr.mxu0 0.0
    %v2071 = vand.u32 %v30, 4294901760
    %v2072 = vsub.f32 %v30, %v2071
    %v2073 = vand.u32 %v2072, 4294901760
    %v2074 = vsub.f32 %v2072, %v2073
    %v2075 = vand.u32 %v2074, 4294901760
    %2076 = vmatpush1.msra.mxu0 %v2075
    %2077 = vmatprep.subr.mxu0 0.0
    %v2078 = vand.u32 %v29, 4294901760
    %v2079 = vsub.f32 %v29, %v2078
    %v2080 = vand.u32 %v2079, 4294901760
    %v2081 = vsub.f32 %v2079, %v2080
    %v2082 = vand.u32 %v2081, 4294901760
    %2083 = vmatpush1.msra.mxu0 %v2082
    %2084 = vmatprep.subr.mxu0 0.0
    %v2085 = vand.u32 %v28, 4294901760
    %v2086 = vsub.f32 %v28, %v2085
    %v2087 = vand.u32 %v2086, 4294901760
    %v2088 = vsub.f32 %v2086, %v2087
    %v2089 = vand.u32 %v2088, 4294901760
    %2090 = vmatpush1.msra.mxu0 %v2089
    %2091 = vmatprep.subr.mxu0 0.0
    %v2092 = vand.u32 %v27, 4294901760
    %v2093 = vsub.f32 %v27, %v2092
    %v2094 = vand.u32 %v2093, 4294901760
    %v2095 = vsub.f32 %v2093, %v2094
    %v2096 = vand.u32 %v2095, 4294901760
    %2097 = vmatpush1.msra.mxu0 %v2096
    %2098 = vmatprep.subr.mxu0 0.0
    %v2099 = vand.u32 %v26, 4294901760
    %v2100 = vsub.f32 %v26, %v2099
    %v2101 = vand.u32 %v2100, 4294901760
    %v2102 = vsub.f32 %v2100, %v2101
    %v2103 = vand.u32 %v2102, 4294901760
    %2104 = vmatpush1.msra.mxu0 %v2103
    %2105 = vmatprep.subr.mxu0 0.0
    %v2106 = vand.u32 %v25, 4294901760
    %v2107 = vsub.f32 %v25, %v2106
    %v2108 = vand.u32 %v2107, 4294901760
    %v2109 = vsub.f32 %v2107, %v2108
    %v2110 = vand.u32 %v2109, 4294901760
    %2111 = vmatpush1.msra.mxu0 %v2110
    %2112 = vmatprep.subr.mxu0 0.0
    %v2113 = vand.u32 %v56, 4294901760
    %v2114 = vsub.f32 %v56, %v2113
    %v2115 = vand.u32 %v2114, 4294901760
    %v2116 = vsub.f32 %v2114, %v2115
    %v2117 = vand.u32 %v2116, 4294901760
    %2118 = vmatpush2.msra.mxu0 %v2117
    %2119 = vmatprep.subr.mxu0 0.0
    %v2120 = vand.u32 %v55, 4294901760
    %v2121 = vsub.f32 %v55, %v2120
    %v2122 = vand.u32 %v2121, 4294901760
    %v2123 = vsub.f32 %v2121, %v2122
    %v2124 = vand.u32 %v2123, 4294901760
    %2125 = vmatpush2.msra.mxu0 %v2124
    %2126 = vmatprep.subr.mxu0 0.0
    %v2127 = vand.u32 %v54, 4294901760
    %v2128 = vsub.f32 %v54, %v2127
    %v2129 = vand.u32 %v2128, 4294901760
    %v2130 = vsub.f32 %v2128, %v2129
    %v2131 = vand.u32 %v2130, 4294901760
    %2132 = vmatpush2.msra.mxu0 %v2131
    %2133 = vmatprep.subr.mxu0 0.0
    %v2134 = vand.u32 %v53, 4294901760
    %v2135 = vsub.f32 %v53, %v2134
    %v2136 = vand.u32 %v2135, 4294901760
    %v2137 = vsub.f32 %v2135, %v2136
    %v2138 = vand.u32 %v2137, 4294901760
    %2139 = vmatpush2.msra.mxu0 %v2138
    %2140 = vmatprep.subr.mxu0 0.0
    %v2141 = vand.u32 %v52, 4294901760
    %v2142 = vsub.f32 %v52, %v2141
    %v2143 = vand.u32 %v2142, 4294901760
    %v2144 = vsub.f32 %v2142, %v2143
    %v2145 = vand.u32 %v2144, 4294901760
    %2146 = vmatpush2.msra.mxu0 %v2145
    %2147 = vmatprep.subr.mxu0 0.0
    %v2148 = vand.u32 %v51, 4294901760
    %v2149 = vsub.f32 %v51, %v2148
    %v2150 = vand.u32 %v2149, 4294901760
    %v2151 = vsub.f32 %v2149, %v2150
    %v2152 = vand.u32 %v2151, 4294901760
    %2153 = vmatpush2.msra.mxu0 %v2152
    %2154 = vmatprep.subr.mxu0 0.0
    %v2155 = vand.u32 %v50, 4294901760
    %v2156 = vsub.f32 %v50, %v2155
    %v2157 = vand.u32 %v2156, 4294901760
    %v2158 = vsub.f32 %v2156, %v2157
    %v2159 = vand.u32 %v2158, 4294901760
    %2160 = vmatpush2.msra.mxu0 %v2159
    %2161 = vmatprep.subr.mxu0 0.0
    %v2162 = vand.u32 %v49, 4294901760
    %v2163 = vsub.f32 %v49, %v2162
    %v2164 = vand.u32 %v2163, 4294901760
    %v2165 = vsub.f32 %v2163, %v2164
    %v2166 = vand.u32 %v2165, 4294901760
    %2167 = vmatpush2.msra.mxu0 %v2166
    %2168 = vmatprep.subr.mxu0 0.0
    %v2169 = vand.u32 %v48, 4294901760
    %v2170 = vsub.f32 %v48, %v2169
    %v2171 = vand.u32 %v2170, 4294901760
    %v2172 = vsub.f32 %v2170, %v2171
    %v2173 = vand.u32 %v2172, 4294901760
    %2174 = vmatpush2.msra.mxu0 %v2173
    %2175 = vmatprep.subr.mxu0 0.0
    %v2176 = vand.u32 %v47, 4294901760
    %v2177 = vsub.f32 %v47, %v2176
    %v2178 = vand.u32 %v2177, 4294901760
    %v2179 = vsub.f32 %v2177, %v2178
    %v2180 = vand.u32 %v2179, 4294901760
    %2181 = vmatpush2.msra.mxu0 %v2180
    %2182 = vmatprep.subr.mxu0 0.0
    %v2183 = vand.u32 %v46, 4294901760
    %v2184 = vsub.f32 %v46, %v2183
    %v2185 = vand.u32 %v2184, 4294901760
    %v2186 = vsub.f32 %v2184, %v2185
    %v2187 = vand.u32 %v2186, 4294901760
    %2188 = vmatpush2.msra.mxu0 %v2187
    %2189 = vmatprep.subr.mxu0 0.0
    %v2190 = vand.u32 %v45, 4294901760
    %v2191 = vsub.f32 %v45, %v2190
    %v2192 = vand.u32 %v2191, 4294901760
    %v2193 = vsub.f32 %v2191, %v2192
    %v2194 = vand.u32 %v2193, 4294901760
    %2195 = vmatpush2.msra.mxu0 %v2194
    %2196 = vmatprep.subr.mxu0 0.0
    %v2197 = vand.u32 %v44, 4294901760
    %v2198 = vsub.f32 %v44, %v2197
    %v2199 = vand.u32 %v2198, 4294901760
    %v2200 = vsub.f32 %v2198, %v2199
    %v2201 = vand.u32 %v2200, 4294901760
    %2202 = vmatpush2.msra.mxu0 %v2201
    %2203 = vmatprep.subr.mxu0 0.0
    %v2204 = vand.u32 %v43, 4294901760
    %v2205 = vsub.f32 %v43, %v2204
    %v2206 = vand.u32 %v2205, 4294901760
    %v2207 = vsub.f32 %v2205, %v2206
    %v2208 = vand.u32 %v2207, 4294901760
    %2209 = vmatpush2.msra.mxu0 %v2208
    %2210 = vmatprep.subr.mxu0 0.0
    %v2211 = vand.u32 %v42, 4294901760
    %v2212 = vsub.f32 %v42, %v2211
    %v2213 = vand.u32 %v2212, 4294901760
    %v2214 = vsub.f32 %v2212, %v2213
    %v2215 = vand.u32 %v2214, 4294901760
    %2216 = vmatpush2.msra.mxu0 %v2215
    %2217 = vmatprep.subr.mxu0 0.0
    %v2218 = vand.u32 %v41, 4294901760
    %v2219 = vsub.f32 %v41, %v2218
    %v2220 = vand.u32 %v2219, 4294901760
    %v2221 = vsub.f32 %v2219, %v2220
    %v2222 = vand.u32 %v2221, 4294901760
    %2223 = vmatpush2.msra.mxu0 %v2222
    %v2224 = vand.u32 %v1887, 4294901760
    %2225 = vmatprep.mubr.f32.mxu0 %v2224
    %v2226 = vand.u32 %v1886, 4294901760
    %2227 = vmatmul.mubr.f32.gmra.mxu0 %v2226
    %v2228 = vpop.f32.mrf.mxu0
    %v2229 = vadd.f32 %v1997, %v2228
    %v2230 = vpop.f32.mrf.mxu0
    %2231 = vdwg.mxu0
    %2232 = vmatprep.subr.mxu0 0.0
    %v2233 = vand.u32 %v40, 4294901760
    %v2234 = vsub.f32 %v40, %v2233
    %2235 = vmatpush1.msra.mxu0 %v2234
    %2236 = vmatprep.subr.mxu0 0.0
    %v2237 = vand.u32 %v39, 4294901760
    %v2238 = vsub.f32 %v39, %v2237
    %2239 = vmatpush1.msra.mxu0 %v2238
    %2240 = vmatprep.subr.mxu0 0.0
    %v2241 = vand.u32 %v38, 4294901760
    %v2242 = vsub.f32 %v38, %v2241
    %2243 = vmatpush1.msra.mxu0 %v2242
    %2244 = vmatprep.subr.mxu0 0.0
    %v2245 = vand.u32 %v37, 4294901760
    %v2246 = vsub.f32 %v37, %v2245
    %2247 = vmatpush1.msra.mxu0 %v2246
    %2248 = vmatprep.subr.mxu0 0.0
    %v2249 = vand.u32 %v36, 4294901760
    %v2250 = vsub.f32 %v36, %v2249
    %2251 = vmatpush1.msra.mxu0 %v2250
    %2252 = vmatprep.subr.mxu0 0.0
    %v2253 = vand.u32 %v35, 4294901760
    %v2254 = vsub.f32 %v35, %v2253
    %2255 = vmatpush1.msra.mxu0 %v2254
    %2256 = vmatprep.subr.mxu0 0.0
    %v2257 = vand.u32 %v34, 4294901760
    %v2258 = vsub.f32 %v34, %v2257
    %2259 = vmatpush1.msra.mxu0 %v2258
    %2260 = vmatprep.subr.mxu0 0.0
    %v2261 = vand.u32 %v33, 4294901760
    %v2262 = vsub.f32 %v33, %v2261
    %2263 = vmatpush1.msra.mxu0 %v2262
    %2264 = vmatprep.subr.mxu0 0.0
    %v2265 = vand.u32 %v32, 4294901760
    %v2266 = vsub.f32 %v32, %v2265
    %2267 = vmatpush1.msra.mxu0 %v2266
    %2268 = vmatprep.subr.mxu0 0.0
    %v2269 = vand.u32 %v31, 4294901760
    %v2270 = vsub.f32 %v31, %v2269
    %2271 = vmatpush1.msra.mxu0 %v2270
    %2272 = vmatprep.subr.mxu0 0.0
    %v2273 = vand.u32 %v30, 4294901760
    %v2274 = vsub.f32 %v30, %v2273
    %2275 = vmatpush1.msra.mxu0 %v2274
    %2276 = vmatprep.subr.mxu0 0.0
    %v2277 = vand.u32 %v29, 4294901760
    %v2278 = vsub.f32 %v29, %v2277
    %2279 = vmatpush1.msra.mxu0 %v2278
    %2280 = vmatprep.subr.mxu0 0.0
    %v2281 = vand.u32 %v28, 4294901760
    %v2282 = vsub.f32 %v28, %v2281
    %2283 = vmatpush1.msra.mxu0 %v2282
    %2284 = vmatprep.subr.mxu0 0.0
    %v2285 = vand.u32 %v27, 4294901760
    %v2286 = vsub.f32 %v27, %v2285
    %2287 = vmatpush1.msra.mxu0 %v2286
    %2288 = vmatprep.subr.mxu0 0.0
    %v2289 = vand.u32 %v26, 4294901760
    %v2290 = vsub.f32 %v26, %v2289
    %2291 = vmatpush1.msra.mxu0 %v2290
    %2292 = vmatprep.subr.mxu0 0.0
    %v2293 = vand.u32 %v25, 4294901760
    %v2294 = vsub.f32 %v25, %v2293
    %2295 = vmatpush1.msra.mxu0 %v2294
    %2296 = vmatprep.subr.mxu0 0.0
    %v2297 = vand.u32 %v56, 4294901760
    %v2298 = vsub.f32 %v56, %v2297
    %2299 = vmatpush2.msra.mxu0 %v2298
    %2300 = vmatprep.subr.mxu0 0.0
    %v2301 = vand.u32 %v55, 4294901760
    %v2302 = vsub.f32 %v55, %v2301
    %2303 = vmatpush2.msra.mxu0 %v2302
    %2304 = vmatprep.subr.mxu0 0.0
    %v2305 = vand.u32 %v54, 4294901760
    %v2306 = vsub.f32 %v54, %v2305
    %2307 = vmatpush2.msra.mxu0 %v2306
    %2308 = vmatprep.subr.mxu0 0.0
    %v2309 = vand.u32 %v53, 4294901760
    %v2310 = vsub.f32 %v53, %v2309
    %2311 = vmatpush2.msra.mxu0 %v2310
    %2312 = vmatprep.subr.mxu0 0.0
    %v2313 = vand.u32 %v52, 4294901760
    %v2314 = vsub.f32 %v52, %v2313
    %2315 = vmatpush2.msra.mxu0 %v2314
    %2316 = vmatprep.subr.mxu0 0.0
    %v2317 = vand.u32 %v51, 4294901760
    %v2318 = vsub.f32 %v51, %v2317
    %2319 = vmatpush2.msra.mxu0 %v2318
    %2320 = vmatprep.subr.mxu0 0.0
    %v2321 = vand.u32 %v50, 4294901760
    %v2322 = vsub.f32 %v50, %v2321
    %2323 = vmatpush2.msra.mxu0 %v2322
    %2324 = vmatprep.subr.mxu0 0.0
    %v2325 = vand.u32 %v49, 4294901760
    %v2326 = vsub.f32 %v49, %v2325
    %2327 = vmatpush2.msra.mxu0 %v2326
    %2328 = vmatprep.subr.mxu0 0.0
    %v2329 = vand.u32 %v48, 4294901760
    %v2330 = vsub.f32 %v48, %v2329
    %2331 = vmatpush2.msra.mxu0 %v2330
    %2332 = vmatprep.subr.mxu0 0.0
    %v2333 = vand.u32 %v47, 4294901760
    %v2334 = vsub.f32 %v47, %v2333
    %2335 = vmatpush2.msra.mxu0 %v2334
    %2336 = vmatprep.subr.mxu0 0.0
    %v2337 = vand.u32 %v46, 4294901760
    %v2338 = vsub.f32 %v46, %v2337
    %2339 = vmatpush2.msra.mxu0 %v2338
    %2340 = vmatprep.subr.mxu0 0.0
    %v2341 = vand.u32 %v45, 4294901760
    %v2342 = vsub.f32 %v45, %v2341
    %2343 = vmatpush2.msra.mxu0 %v2342
    %2344 = vmatprep.subr.mxu0 0.0
    %v2345 = vand.u32 %v44, 4294901760
    %v2346 = vsub.f32 %v44, %v2345
    %2347 = vmatpush2.msra.mxu0 %v2346
    %2348 = vmatprep.subr.mxu0 0.0
    %v2349 = vand.u32 %v43, 4294901760
    %v2350 = vsub.f32 %v43, %v2349
    %2351 = vmatpush2.msra.mxu0 %v2350
    %2352 = vmatprep.subr.mxu0 0.0
    %v2353 = vand.u32 %v42, 4294901760
    %v2354 = vsub.f32 %v42, %v2353
    %2355 = vmatpush2.msra.mxu0 %v2354
    %2356 = vmatprep.subr.mxu0 0.0
    %v2357 = vand.u32 %v41, 4294901760
    %v2358 = vsub.f32 %v41, %v2357
    %2359 = vmatpush2.msra.mxu0 %v2358
    %v2360 = vand.u32 %v1887, 4294901760
    %v2361 = vsub.f32 %v1887, %v2360
    %2362 = vmatprep.mubr.f32.mxu0 %v2361
    %v2363 = vand.u32 %v1886, 4294901760
    %v2364 = vsub.f32 %v1886, %v2363
    %2365 = vmatmul.mubr.f32.gmra.mxu0 %v2364
    %v2366 = vpop.f32.mrf.mxu0
    %v2367 = vadd.f32 %v2229, %v2366
    %v2368 = vpop.f32.mrf.mxu0
    %2369 = vdwg.mxu0
    %2370 = vmatprep.subr.mxu0 0.0
    %v2371 = vand.u32 %v40, 4294901760
    %2372 = vmatpush1.msra.mxu0 %v2371
    %2373 = vmatprep.subr.mxu0 0.0
    %v2374 = vand.u32 %v39, 4294901760
    %2375 = vmatpush1.msra.mxu0 %v2374
    %2376 = vmatprep.subr.mxu0 0.0
    %v2377 = vand.u32 %v38, 4294901760
    %2378 = vmatpush1.msra.mxu0 %v2377
    %2379 = vmatprep.subr.mxu0 0.0
    %v2380 = vand.u32 %v37, 4294901760
    %2381 = vmatpush1.msra.mxu0 %v2380
    %2382 = vmatprep.subr.mxu0 0.0
    %v2383 = vand.u32 %v36, 4294901760
    %2384 = vmatpush1.msra.mxu0 %v2383
    %2385 = vmatprep.subr.mxu0 0.0
    %v2386 = vand.u32 %v35, 4294901760
    %2387 = vmatpush1.msra.mxu0 %v2386
    %2388 = vmatprep.subr.mxu0 0.0
    %v2389 = vand.u32 %v34, 4294901760
    %2390 = vmatpush1.msra.mxu0 %v2389
    %2391 = vmatprep.subr.mxu0 0.0
    %v2392 = vand.u32 %v33, 4294901760
    %2393 = vmatpush1.msra.mxu0 %v2392
    %2394 = vmatprep.subr.mxu0 0.0
    %v2395 = vand.u32 %v32, 4294901760
    %2396 = vmatpush1.msra.mxu0 %v2395
    %2397 = vmatprep.subr.mxu0 0.0
    %v2398 = vand.u32 %v31, 4294901760
    %2399 = vmatpush1.msra.mxu0 %v2398
    %2400 = vmatprep.subr.mxu0 0.0
    %v2401 = vand.u32 %v30, 4294901760
    %2402 = vmatpush1.msra.mxu0 %v2401
    %2403 = vmatprep.subr.mxu0 0.0
    %v2404 = vand.u32 %v29, 4294901760
    %2405 = vmatpush1.msra.mxu0 %v2404
    %2406 = vmatprep.subr.mxu0 0.0
    %v2407 = vand.u32 %v28, 4294901760
    %2408 = vmatpush1.msra.mxu0 %v2407
    %2409 = vmatprep.subr.mxu0 0.0
    %v2410 = vand.u32 %v27, 4294901760
    %2411 = vmatpush1.msra.mxu0 %v2410
    %2412 = vmatprep.subr.mxu0 0.0
    %v2413 = vand.u32 %v26, 4294901760
    %2414 = vmatpush1.msra.mxu0 %v2413
    %2415 = vmatprep.subr.mxu0 0.0
    %v2416 = vand.u32 %v25, 4294901760
    %2417 = vmatpush1.msra.mxu0 %v2416
    %2418 = vmatprep.subr.mxu0 0.0
    %v2419 = vand.u32 %v56, 4294901760
    %2420 = vmatpush2.msra.mxu0 %v2419
    %2421 = vmatprep.subr.mxu0 0.0
    %v2422 = vand.u32 %v55, 4294901760
    %2423 = vmatpush2.msra.mxu0 %v2422
    %2424 = vmatprep.subr.mxu0 0.0
    %v2425 = vand.u32 %v54, 4294901760
    %2426 = vmatpush2.msra.mxu0 %v2425
    %2427 = vmatprep.subr.mxu0 0.0
    %v2428 = vand.u32 %v53, 4294901760
    %2429 = vmatpush2.msra.mxu0 %v2428
    %2430 = vmatprep.subr.mxu0 0.0
    %v2431 = vand.u32 %v52, 4294901760
    %2432 = vmatpush2.msra.mxu0 %v2431
    %2433 = vmatprep.subr.mxu0 0.0
    %v2434 = vand.u32 %v51, 4294901760
    %2435 = vmatpush2.msra.mxu0 %v2434
    %2436 = vmatprep.subr.mxu0 0.0
    %v2437 = vand.u32 %v50, 4294901760
    %2438 = vmatpush2.msra.mxu0 %v2437
    %2439 = vmatprep.subr.mxu0 0.0
    %v2440 = vand.u32 %v49, 4294901760
    %2441 = vmatpush2.msra.mxu0 %v2440
    %2442 = vmatprep.subr.mxu0 0.0
    %v2443 = vand.u32 %v48, 4294901760
    %2444 = vmatpush2.msra.mxu0 %v2443
    %2445 = vmatprep.subr.mxu0 0.0
    %v2446 = vand.u32 %v47, 4294901760
    %2447 = vmatpush2.msra.mxu0 %v2446
    %2448 = vmatprep.subr.mxu0 0.0
    %v2449 = vand.u32 %v46, 4294901760
    %2450 = vmatpush2.msra.mxu0 %v2449
    %2451 = vmatprep.subr.mxu0 0.0
    %v2452 = vand.u32 %v45, 4294901760
    %2453 = vmatpush2.msra.mxu0 %v2452
    %2454 = vmatprep.subr.mxu0 0.0
    %v2455 = vand.u32 %v44, 4294901760
    %2456 = vmatpush2.msra.mxu0 %v2455
    %2457 = vmatprep.subr.mxu0 0.0
    %v2458 = vand.u32 %v43, 4294901760
    %2459 = vmatpush2.msra.mxu0 %v2458
    %2460 = vmatprep.subr.mxu0 0.0
    %v2461 = vand.u32 %v42, 4294901760
    %2462 = vmatpush2.msra.mxu0 %v2461
    %2463 = vmatprep.subr.mxu0 0.0
    %v2464 = vand.u32 %v41, 4294901760
    %2465 = vmatpush2.msra.mxu0 %v2464
    %v2466 = vand.u32 %v1887, 4294901760
    %v2467 = vsub.f32 %v1887, %v2466
    %v2468 = vand.u32 %v2467, 4294901760
    %2469 = vmatprep.mubr.f32.mxu0 %v2468
    %v2470 = vand.u32 %v1886, 4294901760
    %v2471 = vsub.f32 %v1886, %v2470
    %v2472 = vand.u32 %v2471, 4294901760
    %2473 = vmatmul.mubr.f32.gmra.mxu0 %v2472
    %v2474 = vpop.f32.mrf.mxu0
    %v2475 = vadd.f32 %v2367, %v2474
    %v2476 = vpop.f32.mrf.mxu0
    %2477 = vdwg.mxu0
    %2478 = vmatprep.subr.mxu0 0.0
    %v2479 = vand.u32 %v40, 4294901760
    %v2480 = vsub.f32 %v40, %v2479
    %v2481 = vand.u32 %v2480, 4294901760
    %2482 = vmatpush1.msra.mxu0 %v2481
    %2483 = vmatprep.subr.mxu0 0.0
    %v2484 = vand.u32 %v39, 4294901760
    %v2485 = vsub.f32 %v39, %v2484
    %v2486 = vand.u32 %v2485, 4294901760
    %2487 = vmatpush1.msra.mxu0 %v2486
    %2488 = vmatprep.subr.mxu0 0.0
    %v2489 = vand.u32 %v38, 4294901760
    %v2490 = vsub.f32 %v38, %v2489
    %v2491 = vand.u32 %v2490, 4294901760
    %2492 = vmatpush1.msra.mxu0 %v2491
    %2493 = vmatprep.subr.mxu0 0.0
    %v2494 = vand.u32 %v37, 4294901760
    %v2495 = vsub.f32 %v37, %v2494
    %v2496 = vand.u32 %v2495, 4294901760
    %2497 = vmatpush1.msra.mxu0 %v2496
    %2498 = vmatprep.subr.mxu0 0.0
    %v2499 = vand.u32 %v36, 4294901760
    %v2500 = vsub.f32 %v36, %v2499
    %v2501 = vand.u32 %v2500, 4294901760
    %2502 = vmatpush1.msra.mxu0 %v2501
    %2503 = vmatprep.subr.mxu0 0.0
    %v2504 = vand.u32 %v35, 4294901760
    %v2505 = vsub.f32 %v35, %v2504
    %v2506 = vand.u32 %v2505, 4294901760
    %2507 = vmatpush1.msra.mxu0 %v2506
    %2508 = vmatprep.subr.mxu0 0.0
    %v2509 = vand.u32 %v34, 4294901760
    %v2510 = vsub.f32 %v34, %v2509
    %v2511 = vand.u32 %v2510, 4294901760
    %2512 = vmatpush1.msra.mxu0 %v2511
    %2513 = vmatprep.subr.mxu0 0.0
    %v2514 = vand.u32 %v33, 4294901760
    %v2515 = vsub.f32 %v33, %v2514
    %v2516 = vand.u32 %v2515, 4294901760
    %2517 = vmatpush1.msra.mxu0 %v2516
    %2518 = vmatprep.subr.mxu0 0.0
    %v2519 = vand.u32 %v32, 4294901760
    %v2520 = vsub.f32 %v32, %v2519
    %v2521 = vand.u32 %v2520, 4294901760
    %2522 = vmatpush1.msra.mxu0 %v2521
    %2523 = vmatprep.subr.mxu0 0.0
    %v2524 = vand.u32 %v31, 4294901760
    %v2525 = vsub.f32 %v31, %v2524
    %v2526 = vand.u32 %v2525, 4294901760
    %2527 = vmatpush1.msra.mxu0 %v2526
    %2528 = vmatprep.subr.mxu0 0.0
    %v2529 = vand.u32 %v30, 4294901760
    %v2530 = vsub.f32 %v30, %v2529
    %v2531 = vand.u32 %v2530, 4294901760
    %2532 = vmatpush1.msra.mxu0 %v2531
    %2533 = vmatprep.subr.mxu0 0.0
    %v2534 = vand.u32 %v29, 4294901760
    %v2535 = vsub.f32 %v29, %v2534
    %v2536 = vand.u32 %v2535, 4294901760
    %2537 = vmatpush1.msra.mxu0 %v2536
    %2538 = vmatprep.subr.mxu0 0.0
    %v2539 = vand.u32 %v28, 4294901760
    %v2540 = vsub.f32 %v28, %v2539
    %v2541 = vand.u32 %v2540, 4294901760
    %2542 = vmatpush1.msra.mxu0 %v2541
    %2543 = vmatprep.subr.mxu0 0.0
    %v2544 = vand.u32 %v27, 4294901760
    %v2545 = vsub.f32 %v27, %v2544
    %v2546 = vand.u32 %v2545, 4294901760
    %2547 = vmatpush1.msra.mxu0 %v2546
    %2548 = vmatprep.subr.mxu0 0.0
    %v2549 = vand.u32 %v26, 4294901760
    %v2550 = vsub.f32 %v26, %v2549
    %v2551 = vand.u32 %v2550, 4294901760
    %2552 = vmatpush1.msra.mxu0 %v2551
    %2553 = vmatprep.subr.mxu0 0.0
    %v2554 = vand.u32 %v25, 4294901760
    %v2555 = vsub.f32 %v25, %v2554
    %v2556 = vand.u32 %v2555, 4294901760
    %2557 = vmatpush1.msra.mxu0 %v2556
    %2558 = vmatprep.subr.mxu0 0.0
    %v2559 = vand.u32 %v56, 4294901760
    %v2560 = vsub.f32 %v56, %v2559
    %v2561 = vand.u32 %v2560, 4294901760
    %2562 = vmatpush2.msra.mxu0 %v2561
    %2563 = vmatprep.subr.mxu0 0.0
    %v2564 = vand.u32 %v55, 4294901760
    %v2565 = vsub.f32 %v55, %v2564
    %v2566 = vand.u32 %v2565, 4294901760
    %2567 = vmatpush2.msra.mxu0 %v2566
    %2568 = vmatprep.subr.mxu0 0.0
    %v2569 = vand.u32 %v54, 4294901760
    %v2570 = vsub.f32 %v54, %v2569
    %v2571 = vand.u32 %v2570, 4294901760
    %2572 = vmatpush2.msra.mxu0 %v2571
    %2573 = vmatprep.subr.mxu0 0.0
    %v2574 = vand.u32 %v53, 4294901760
    %v2575 = vsub.f32 %v53, %v2574
    %v2576 = vand.u32 %v2575, 4294901760
    %2577 = vmatpush2.msra.mxu0 %v2576
    %2578 = vmatprep.subr.mxu0 0.0
    %v2579 = vand.u32 %v52, 4294901760
    %v2580 = vsub.f32 %v52, %v2579
    %v2581 = vand.u32 %v2580, 4294901760
    %2582 = vmatpush2.msra.mxu0 %v2581
    %2583 = vmatprep.subr.mxu0 0.0
    %v2584 = vand.u32 %v51, 4294901760
    %v2585 = vsub.f32 %v51, %v2584
    %v2586 = vand.u32 %v2585, 4294901760
    %2587 = vmatpush2.msra.mxu0 %v2586
    %2588 = vmatprep.subr.mxu0 0.0
    %v2589 = vand.u32 %v50, 4294901760
    %v2590 = vsub.f32 %v50, %v2589
    %v2591 = vand.u32 %v2590, 4294901760
    %2592 = vmatpush2.msra.mxu0 %v2591
    %2593 = vmatprep.subr.mxu0 0.0
    %v2594 = vand.u32 %v49, 4294901760
    %v2595 = vsub.f32 %v49, %v2594
    %v2596 = vand.u32 %v2595, 4294901760
    %2597 = vmatpush2.msra.mxu0 %v2596
    %2598 = vmatprep.subr.mxu0 0.0
    %v2599 = vand.u32 %v48, 4294901760
    %v2600 = vsub.f32 %v48, %v2599
    %v2601 = vand.u32 %v2600, 4294901760
    %2602 = vmatpush2.msra.mxu0 %v2601
    %2603 = vmatprep.subr.mxu0 0.0
    %v2604 = vand.u32 %v47, 4294901760
    %v2605 = vsub.f32 %v47, %v2604
    %v2606 = vand.u32 %v2605, 4294901760
    %2607 = vmatpush2.msra.mxu0 %v2606
    %2608 = vmatprep.subr.mxu0 0.0
    %v2609 = vand.u32 %v46, 4294901760
    %v2610 = vsub.f32 %v46, %v2609
    %v2611 = vand.u32 %v2610, 4294901760
    %2612 = vmatpush2.msra.mxu0 %v2611
    %2613 = vmatprep.subr.mxu0 0.0
    %v2614 = vand.u32 %v45, 4294901760
    %v2615 = vsub.f32 %v45, %v2614
    %v2616 = vand.u32 %v2615, 4294901760
    %2617 = vmatpush2.msra.mxu0 %v2616
    %2618 = vmatprep.subr.mxu0 0.0
    %v2619 = vand.u32 %v44, 4294901760
    %v2620 = vsub.f32 %v44, %v2619
    %v2621 = vand.u32 %v2620, 4294901760
    %2622 = vmatpush2.msra.mxu0 %v2621
    %2623 = vmatprep.subr.mxu0 0.0
    %v2624 = vand.u32 %v43, 4294901760
    %v2625 = vsub.f32 %v43, %v2624
    %v2626 = vand.u32 %v2625, 4294901760
    %2627 = vmatpush2.msra.mxu0 %v2626
    %2628 = vmatprep.subr.mxu0 0.0
    %v2629 = vand.u32 %v42, 4294901760
    %v2630 = vsub.f32 %v42, %v2629
    %v2631 = vand.u32 %v2630, 4294901760
    %2632 = vmatpush2.msra.mxu0 %v2631
    %2633 = vmatprep.subr.mxu0 0.0
    %v2634 = vand.u32 %v41, 4294901760
    %v2635 = vsub.f32 %v41, %v2634
    %v2636 = vand.u32 %v2635, 4294901760
    %2637 = vmatpush2.msra.mxu0 %v2636
    %v2638 = vand.u32 %v1887, 4294901760
    %2639 = vmatprep.mubr.f32.mxu0 %v2638
    %v2640 = vand.u32 %v1886, 4294901760
    %2641 = vmatmul.mubr.f32.gmra.mxu0 %v2640
    %v2642 = vpop.f32.mrf.mxu0
    %v2643 = vadd.f32 %v2475, %v2642
    %v2644 = vpop.f32.mrf.mxu0
    %2645 = vdwg.mxu0
    %2646 = vmatprep.subr.mxu0 0.0
    %v2647 = vand.u32 %v40, 4294901760
    %2648 = vmatpush1.msra.mxu0 %v2647
    %2649 = vmatprep.subr.mxu0 0.0
    %v2650 = vand.u32 %v39, 4294901760
    %2651 = vmatpush1.msra.mxu0 %v2650
    %2652 = vmatprep.subr.mxu0 0.0
    %v2653 = vand.u32 %v38, 4294901760
    %2654 = vmatpush1.msra.mxu0 %v2653
    %2655 = vmatprep.subr.mxu0 0.0
    %v2656 = vand.u32 %v37, 4294901760
    %2657 = vmatpush1.msra.mxu0 %v2656
    %2658 = vmatprep.subr.mxu0 0.0
    %v2659 = vand.u32 %v36, 4294901760
    %2660 = vmatpush1.msra.mxu0 %v2659
    %2661 = vmatprep.subr.mxu0 0.0
    %v2662 = vand.u32 %v35, 4294901760
    %2663 = vmatpush1.msra.mxu0 %v2662
    %2664 = vmatprep.subr.mxu0 0.0
    %v2665 = vand.u32 %v34, 4294901760
    %2666 = vmatpush1.msra.mxu0 %v2665
    %2667 = vmatprep.subr.mxu0 0.0
    %v2668 = vand.u32 %v33, 4294901760
    %2669 = vmatpush1.msra.mxu0 %v2668
    %2670 = vmatprep.subr.mxu0 0.0
    %v2671 = vand.u32 %v32, 4294901760
    %2672 = vmatpush1.msra.mxu0 %v2671
    %2673 = vmatprep.subr.mxu0 0.0
    %v2674 = vand.u32 %v31, 4294901760
    %2675 = vmatpush1.msra.mxu0 %v2674
    %2676 = vmatprep.subr.mxu0 0.0
    %v2677 = vand.u32 %v30, 4294901760
    %2678 = vmatpush1.msra.mxu0 %v2677
    %2679 = vmatprep.subr.mxu0 0.0
    %v2680 = vand.u32 %v29, 4294901760
    %2681 = vmatpush1.msra.mxu0 %v2680
    %2682 = vmatprep.subr.mxu0 0.0
    %v2683 = vand.u32 %v28, 4294901760
    %2684 = vmatpush1.msra.mxu0 %v2683
    %2685 = vmatprep.subr.mxu0 0.0
    %v2686 = vand.u32 %v27, 4294901760
    %2687 = vmatpush1.msra.mxu0 %v2686
    %2688 = vmatprep.subr.mxu0 0.0
    %v2689 = vand.u32 %v26, 4294901760
    %2690 = vmatpush1.msra.mxu0 %v2689
    %2691 = vmatprep.subr.mxu0 0.0
    %v2692 = vand.u32 %v25, 4294901760
    %2693 = vmatpush1.msra.mxu0 %v2692
    %2694 = vmatprep.subr.mxu0 0.0
    %v2695 = vand.u32 %v56, 4294901760
    %2696 = vmatpush2.msra.mxu0 %v2695
    %2697 = vmatprep.subr.mxu0 0.0
    %v2698 = vand.u32 %v55, 4294901760
    %2699 = vmatpush2.msra.mxu0 %v2698
    %2700 = vmatprep.subr.mxu0 0.0
    %v2701 = vand.u32 %v54, 4294901760
    %2702 = vmatpush2.msra.mxu0 %v2701
    %2703 = vmatprep.subr.mxu0 0.0
    %v2704 = vand.u32 %v53, 4294901760
    %2705 = vmatpush2.msra.mxu0 %v2704
    %2706 = vmatprep.subr.mxu0 0.0
    %v2707 = vand.u32 %v52, 4294901760
    %2708 = vmatpush2.msra.mxu0 %v2707
    %2709 = vmatprep.subr.mxu0 0.0
    %v2710 = vand.u32 %v51, 4294901760
    %2711 = vmatpush2.msra.mxu0 %v2710
    %2712 = vmatprep.subr.mxu0 0.0
    %v2713 = vand.u32 %v50, 4294901760
    %2714 = vmatpush2.msra.mxu0 %v2713
    %2715 = vmatprep.subr.mxu0 0.0
    %v2716 = vand.u32 %v49, 4294901760
    %2717 = vmatpush2.msra.mxu0 %v2716
    %2718 = vmatprep.subr.mxu0 0.0
    %v2719 = vand.u32 %v48, 4294901760
    %2720 = vmatpush2.msra.mxu0 %v2719
    %2721 = vmatprep.subr.mxu0 0.0
    %v2722 = vand.u32 %v47, 4294901760
    %2723 = vmatpush2.msra.mxu0 %v2722
    %2724 = vmatprep.subr.mxu0 0.0
    %v2725 = vand.u32 %v46, 4294901760
    %2726 = vmatpush2.msra.mxu0 %v2725
    %2727 = vmatprep.subr.mxu0 0.0
    %v2728 = vand.u32 %v45, 4294901760
    %2729 = vmatpush2.msra.mxu0 %v2728
    %2730 = vmatprep.subr.mxu0 0.0
    %v2731 = vand.u32 %v44, 4294901760
    %2732 = vmatpush2.msra.mxu0 %v2731
    %2733 = vmatprep.subr.mxu0 0.0
    %v2734 = vand.u32 %v43, 4294901760
    %2735 = vmatpush2.msra.mxu0 %v2734
    %2736 = vmatprep.subr.mxu0 0.0
    %v2737 = vand.u32 %v42, 4294901760
    %2738 = vmatpush2.msra.mxu0 %v2737
    %2739 = vmatprep.subr.mxu0 0.0
    %v2740 = vand.u32 %v41, 4294901760
    %2741 = vmatpush2.msra.mxu0 %v2740
    %v2742 = vand.u32 %v1887, 4294901760
    %2743 = vmatprep.mubr.f32.mxu0 %v2742
    %v2744 = vand.u32 %v1886, 4294901760
    %2745 = vmatmul.mubr.f32.gmra.mxu0 %v2744
    %v2746 = vpop.f32.mrf.mxu0
    %v2747 = vadd.f32 %v2643, %v2746
    %v2748 = vpop.f32.mrf.mxu0
    %2749 = vdwg.mxu0
    %vm2750 = vcmp.ge.s32.totalorder %v59, 64
    %vm2751 = vcmp.lt.s32.totalorder %v59, 96
    %vm2752 = vmand %vm2750, %vm2751
    %2753 = vrot.lane.b32.xlu0 %v2747, 64
    %v2754 = vpop.permute.xlu0 %2753
    %2755 = vset.pattern.permute.xlu0 2
    %2756 = vperm.xlu0 %2755, %v938
    %v2757 = vpop.permute.xlu0 %2756
    %vm2758 = vcmp.eq.s32.totalorder %v2757, 1
    %vm2759 = vmand %vm2752, %vm2758
    %v2760 = vsel %vm2759, %v2754, %v1878
    %2761 = vrot.lane.b32.xlu0 %v2747, 32
    %v2762 = vpop.permute.xlu0 %2761
    %2763 = vset.pattern.permute.xlu0 2
    %2764 = vperm.xlu0 %2763, %v948
    %v2765 = vpop.permute.xlu0 %2764
    %vm2766 = vcmp.eq.s32.totalorder %v2765, 1
    %vm2767 = vmand %vm2752, %vm2766
    %v2768 = vsel %vm2767, %v2762, %v2760
    %2769 = vset.pattern.permute.xlu0 2
    %2770 = vperm.xlu0 %2769, %v958
    %v2771 = vpop.permute.xlu0 %2770
    %vm2772 = vcmp.eq.s32.totalorder %v2771, 1
    %vm2773 = vmand %vm2752, %vm2772
    %v2774 = vsel %vm2773, %v2747, %v2768
    %2775 = vrot.lane.b32.xlu0 %v2747, 96
    %v2776 = vpop.permute.xlu0 %2775
    %2777 = vset.pattern.permute.xlu0 2
    %2778 = vperm.xlu0 %2777, %v968
    %v2779 = vpop.permute.xlu0 %2778
    %vm2780 = vcmp.eq.s32.totalorder %v2779, 1
    %vm2781 = vmand %vm2752, %vm2780
    %v2782 = vsel %vm2781, %v2776, %v2774
    %2783 = vset.pattern.permute.xlu0 3
    %2784 = vperm.xlu0 %2783, %v61
    %v2785 = vpop.permute.xlu0 %2784
    %vm2786 = vcmp.eq.s32.totalorder %v59, %v2785
    %vm2787 = vcmp.eq.s32.totalorder %v60, %v2785
    %v2788 = vsel %vm2786, 1, 0
    %v2789 = vsel %vm2787, 1, 0
    %v2790 = vcvt.s32.f32 %v2788
    %v2791 = vcvt.s32.f32 %v2789
    %2792 = vmatprep.subr.mxu0 0.0
    %v2793 = vand.u32 %v40, 4294901760
    %2794 = vmatpush1.msra.mxu0 %v2793
    %2795 = vmatprep.subr.mxu0 0.0
    %v2796 = vand.u32 %v39, 4294901760
    %2797 = vmatpush1.msra.mxu0 %v2796
    %2798 = vmatprep.subr.mxu0 0.0
    %v2799 = vand.u32 %v38, 4294901760
    %2800 = vmatpush1.msra.mxu0 %v2799
    %2801 = vmatprep.subr.mxu0 0.0
    %v2802 = vand.u32 %v37, 4294901760
    %2803 = vmatpush1.msra.mxu0 %v2802
    %2804 = vmatprep.subr.mxu0 0.0
    %v2805 = vand.u32 %v36, 4294901760
    %2806 = vmatpush1.msra.mxu0 %v2805
    %2807 = vmatprep.subr.mxu0 0.0
    %v2808 = vand.u32 %v35, 4294901760
    %2809 = vmatpush1.msra.mxu0 %v2808
    %2810 = vmatprep.subr.mxu0 0.0
    %v2811 = vand.u32 %v34, 4294901760
    %2812 = vmatpush1.msra.mxu0 %v2811
    %2813 = vmatprep.subr.mxu0 0.0
    %v2814 = vand.u32 %v33, 4294901760
    %2815 = vmatpush1.msra.mxu0 %v2814
    %2816 = vmatprep.subr.mxu0 0.0
    %v2817 = vand.u32 %v32, 4294901760
    %2818 = vmatpush1.msra.mxu0 %v2817
    %2819 = vmatprep.subr.mxu0 0.0
    %v2820 = vand.u32 %v31, 4294901760
    %2821 = vmatpush1.msra.mxu0 %v2820
    %2822 = vmatprep.subr.mxu0 0.0
    %v2823 = vand.u32 %v30, 4294901760
    %2824 = vmatpush1.msra.mxu0 %v2823
    %2825 = vmatprep.subr.mxu0 0.0
    %v2826 = vand.u32 %v29, 4294901760
    %2827 = vmatpush1.msra.mxu0 %v2826
    %2828 = vmatprep.subr.mxu0 0.0
    %v2829 = vand.u32 %v28, 4294901760
    %2830 = vmatpush1.msra.mxu0 %v2829
    %2831 = vmatprep.subr.mxu0 0.0
    %v2832 = vand.u32 %v27, 4294901760
    %2833 = vmatpush1.msra.mxu0 %v2832
    %2834 = vmatprep.subr.mxu0 0.0
    %v2835 = vand.u32 %v26, 4294901760
    %2836 = vmatpush1.msra.mxu0 %v2835
    %2837 = vmatprep.subr.mxu0 0.0
    %v2838 = vand.u32 %v25, 4294901760
    %2839 = vmatpush1.msra.mxu0 %v2838
    %2840 = vmatprep.subr.mxu0 0.0
    %v2841 = vand.u32 %v56, 4294901760
    %2842 = vmatpush2.msra.mxu0 %v2841
    %2843 = vmatprep.subr.mxu0 0.0
    %v2844 = vand.u32 %v55, 4294901760
    %2845 = vmatpush2.msra.mxu0 %v2844
    %2846 = vmatprep.subr.mxu0 0.0
    %v2847 = vand.u32 %v54, 4294901760
    %2848 = vmatpush2.msra.mxu0 %v2847
    %2849 = vmatprep.subr.mxu0 0.0
    %v2850 = vand.u32 %v53, 4294901760
    %2851 = vmatpush2.msra.mxu0 %v2850
    %2852 = vmatprep.subr.mxu0 0.0
    %v2853 = vand.u32 %v52, 4294901760
    %2854 = vmatpush2.msra.mxu0 %v2853
    %2855 = vmatprep.subr.mxu0 0.0
    %v2856 = vand.u32 %v51, 4294901760
    %2857 = vmatpush2.msra.mxu0 %v2856
    %2858 = vmatprep.subr.mxu0 0.0
    %v2859 = vand.u32 %v50, 4294901760
    %2860 = vmatpush2.msra.mxu0 %v2859
    %2861 = vmatprep.subr.mxu0 0.0
    %v2862 = vand.u32 %v49, 4294901760
    %2863 = vmatpush2.msra.mxu0 %v2862
    %2864 = vmatprep.subr.mxu0 0.0
    %v2865 = vand.u32 %v48, 4294901760
    %2866 = vmatpush2.msra.mxu0 %v2865
    %2867 = vmatprep.subr.mxu0 0.0
    %v2868 = vand.u32 %v47, 4294901760
    %2869 = vmatpush2.msra.mxu0 %v2868
    %2870 = vmatprep.subr.mxu0 0.0
    %v2871 = vand.u32 %v46, 4294901760
    %2872 = vmatpush2.msra.mxu0 %v2871
    %2873 = vmatprep.subr.mxu0 0.0
    %v2874 = vand.u32 %v45, 4294901760
    %2875 = vmatpush2.msra.mxu0 %v2874
    %2876 = vmatprep.subr.mxu0 0.0
    %v2877 = vand.u32 %v44, 4294901760
    %2878 = vmatpush2.msra.mxu0 %v2877
    %2879 = vmatprep.subr.mxu0 0.0
    %v2880 = vand.u32 %v43, 4294901760
    %2881 = vmatpush2.msra.mxu0 %v2880
    %2882 = vmatprep.subr.mxu0 0.0
    %v2883 = vand.u32 %v42, 4294901760
    %2884 = vmatpush2.msra.mxu0 %v2883
    %2885 = vmatprep.subr.mxu0 0.0
    %v2886 = vand.u32 %v41, 4294901760
    %2887 = vmatpush2.msra.mxu0 %v2886
    %v2888 = vand.u32 %v2791, 4294901760
    %v2889 = vsub.f32 %v2791, %v2888
    %v2890 = vand.u32 %v2889, 4294901760
    %v2891 = vsub.f32 %v2889, %v2890
    %v2892 = vand.u32 %v2891, 4294901760
    %2893 = vmatprep.mubr.f32.mxu0 %v2892
    %v2894 = vand.u32 %v2790, 4294901760
    %v2895 = vsub.f32 %v2790, %v2894
    %v2896 = vand.u32 %v2895, 4294901760
    %v2897 = vsub.f32 %v2895, %v2896
    %v2898 = vand.u32 %v2897, 4294901760
    %2899 = vmatmul.mubr.f32.gmra.mxu0 %v2898
    %v2900 = vpop.f32.mrf.mxu0
    %v2901 = vadd.f32 0.0, %v2900
    %v2902 = vpop.f32.mrf.mxu0
    %2903 = vdwg.mxu0
    %2904 = vmatprep.subr.mxu0 0.0
    %v2905 = vand.u32 %v40, 4294901760
    %v2906 = vsub.f32 %v40, %v2905
    %v2907 = vand.u32 %v2906, 4294901760
    %v2908 = vsub.f32 %v2906, %v2907
    %v2909 = vand.u32 %v2908, 4294901760
    %2910 = vmatpush1.msra.mxu0 %v2909
    %2911 = vmatprep.subr.mxu0 0.0
    %v2912 = vand.u32 %v39, 4294901760
    %v2913 = vsub.f32 %v39, %v2912
    %v2914 = vand.u32 %v2913, 4294901760
    %v2915 = vsub.f32 %v2913, %v2914
    %v2916 = vand.u32 %v2915, 4294901760
    %2917 = vmatpush1.msra.mxu0 %v2916
    %2918 = vmatprep.subr.mxu0 0.0
    %v2919 = vand.u32 %v38, 4294901760
    %v2920 = vsub.f32 %v38, %v2919
    %v2921 = vand.u32 %v2920, 4294901760
    %v2922 = vsub.f32 %v2920, %v2921
    %v2923 = vand.u32 %v2922, 4294901760
    %2924 = vmatpush1.msra.mxu0 %v2923
    %2925 = vmatprep.subr.mxu0 0.0
    %v2926 = vand.u32 %v37, 4294901760
    %v2927 = vsub.f32 %v37, %v2926
    %v2928 = vand.u32 %v2927, 4294901760
    %v2929 = vsub.f32 %v2927, %v2928
    %v2930 = vand.u32 %v2929, 4294901760
    %2931 = vmatpush1.msra.mxu0 %v2930
    %2932 = vmatprep.subr.mxu0 0.0
    %v2933 = vand.u32 %v36, 4294901760
    %v2934 = vsub.f32 %v36, %v2933
    %v2935 = vand.u32 %v2934, 4294901760
    %v2936 = vsub.f32 %v2934, %v2935
    %v2937 = vand.u32 %v2936, 4294901760
    %2938 = vmatpush1.msra.mxu0 %v2937
    %2939 = vmatprep.subr.mxu0 0.0
    %v2940 = vand.u32 %v35, 4294901760
    %v2941 = vsub.f32 %v35, %v2940
    %v2942 = vand.u32 %v2941, 4294901760
    %v2943 = vsub.f32 %v2941, %v2942
    %v2944 = vand.u32 %v2943, 4294901760
    %2945 = vmatpush1.msra.mxu0 %v2944
    %2946 = vmatprep.subr.mxu0 0.0
    %v2947 = vand.u32 %v34, 4294901760
    %v2948 = vsub.f32 %v34, %v2947
    %v2949 = vand.u32 %v2948, 4294901760
    %v2950 = vsub.f32 %v2948, %v2949
    %v2951 = vand.u32 %v2950, 4294901760
    %2952 = vmatpush1.msra.mxu0 %v2951
    %2953 = vmatprep.subr.mxu0 0.0
    %v2954 = vand.u32 %v33, 4294901760
    %v2955 = vsub.f32 %v33, %v2954
    %v2956 = vand.u32 %v2955, 4294901760
    %v2957 = vsub.f32 %v2955, %v2956
    %v2958 = vand.u32 %v2957, 4294901760
    %2959 = vmatpush1.msra.mxu0 %v2958
    %2960 = vmatprep.subr.mxu0 0.0
    %v2961 = vand.u32 %v32, 4294901760
    %v2962 = vsub.f32 %v32, %v2961
    %v2963 = vand.u32 %v2962, 4294901760
    %v2964 = vsub.f32 %v2962, %v2963
    %v2965 = vand.u32 %v2964, 4294901760
    %2966 = vmatpush1.msra.mxu0 %v2965
    %2967 = vmatprep.subr.mxu0 0.0
    %v2968 = vand.u32 %v31, 4294901760
    %v2969 = vsub.f32 %v31, %v2968
    %v2970 = vand.u32 %v2969, 4294901760
    %v2971 = vsub.f32 %v2969, %v2970
    %v2972 = vand.u32 %v2971, 4294901760
    %2973 = vmatpush1.msra.mxu0 %v2972
    %2974 = vmatprep.subr.mxu0 0.0
    %v2975 = vand.u32 %v30, 4294901760
    %v2976 = vsub.f32 %v30, %v2975
    %v2977 = vand.u32 %v2976, 4294901760
    %v2978 = vsub.f32 %v2976, %v2977
    %v2979 = vand.u32 %v2978, 4294901760
    %2980 = vmatpush1.msra.mxu0 %v2979
    %2981 = vmatprep.subr.mxu0 0.0
    %v2982 = vand.u32 %v29, 4294901760
    %v2983 = vsub.f32 %v29, %v2982
    %v2984 = vand.u32 %v2983, 4294901760
    %v2985 = vsub.f32 %v2983, %v2984
    %v2986 = vand.u32 %v2985, 4294901760
    %2987 = vmatpush1.msra.mxu0 %v2986
    %2988 = vmatprep.subr.mxu0 0.0
    %v2989 = vand.u32 %v28, 4294901760
    %v2990 = vsub.f32 %v28, %v2989
    %v2991 = vand.u32 %v2990, 4294901760
    %v2992 = vsub.f32 %v2990, %v2991
    %v2993 = vand.u32 %v2992, 4294901760
    %2994 = vmatpush1.msra.mxu0 %v2993
    %2995 = vmatprep.subr.mxu0 0.0
    %v2996 = vand.u32 %v27, 4294901760
    %v2997 = vsub.f32 %v27, %v2996
    %v2998 = vand.u32 %v2997, 4294901760
    %v2999 = vsub.f32 %v2997, %v2998
    %v3000 = vand.u32 %v2999, 4294901760
    %3001 = vmatpush1.msra.mxu0 %v3000
    %3002 = vmatprep.subr.mxu0 0.0
    %v3003 = vand.u32 %v26, 4294901760
    %v3004 = vsub.f32 %v26, %v3003
    %v3005 = vand.u32 %v3004, 4294901760
    %v3006 = vsub.f32 %v3004, %v3005
    %v3007 = vand.u32 %v3006, 4294901760
    %3008 = vmatpush1.msra.mxu0 %v3007
    %3009 = vmatprep.subr.mxu0 0.0
    %v3010 = vand.u32 %v25, 4294901760
    %v3011 = vsub.f32 %v25, %v3010
    %v3012 = vand.u32 %v3011, 4294901760
    %v3013 = vsub.f32 %v3011, %v3012
    %v3014 = vand.u32 %v3013, 4294901760
    %3015 = vmatpush1.msra.mxu0 %v3014
    %3016 = vmatprep.subr.mxu0 0.0
    %v3017 = vand.u32 %v56, 4294901760
    %v3018 = vsub.f32 %v56, %v3017
    %v3019 = vand.u32 %v3018, 4294901760
    %v3020 = vsub.f32 %v3018, %v3019
    %v3021 = vand.u32 %v3020, 4294901760
    %3022 = vmatpush2.msra.mxu0 %v3021
    %3023 = vmatprep.subr.mxu0 0.0
    %v3024 = vand.u32 %v55, 4294901760
    %v3025 = vsub.f32 %v55, %v3024
    %v3026 = vand.u32 %v3025, 4294901760
    %v3027 = vsub.f32 %v3025, %v3026
    %v3028 = vand.u32 %v3027, 4294901760
    %3029 = vmatpush2.msra.mxu0 %v3028
    %3030 = vmatprep.subr.mxu0 0.0
    %v3031 = vand.u32 %v54, 4294901760
    %v3032 = vsub.f32 %v54, %v3031
    %v3033 = vand.u32 %v3032, 4294901760
    %v3034 = vsub.f32 %v3032, %v3033
    %v3035 = vand.u32 %v3034, 4294901760
    %3036 = vmatpush2.msra.mxu0 %v3035
    %3037 = vmatprep.subr.mxu0 0.0
    %v3038 = vand.u32 %v53, 4294901760
    %v3039 = vsub.f32 %v53, %v3038
    %v3040 = vand.u32 %v3039, 4294901760
    %v3041 = vsub.f32 %v3039, %v3040
    %v3042 = vand.u32 %v3041, 4294901760
    %3043 = vmatpush2.msra.mxu0 %v3042
    %3044 = vmatprep.subr.mxu0 0.0
    %v3045 = vand.u32 %v52, 4294901760
    %v3046 = vsub.f32 %v52, %v3045
    %v3047 = vand.u32 %v3046, 4294901760
    %v3048 = vsub.f32 %v3046, %v3047
    %v3049 = vand.u32 %v3048, 4294901760
    %3050 = vmatpush2.msra.mxu0 %v3049
    %3051 = vmatprep.subr.mxu0 0.0
    %v3052 = vand.u32 %v51, 4294901760
    %v3053 = vsub.f32 %v51, %v3052
    %v3054 = vand.u32 %v3053, 4294901760
    %v3055 = vsub.f32 %v3053, %v3054
    %v3056 = vand.u32 %v3055, 4294901760
    %3057 = vmatpush2.msra.mxu0 %v3056
    %3058 = vmatprep.subr.mxu0 0.0
    %v3059 = vand.u32 %v50, 4294901760
    %v3060 = vsub.f32 %v50, %v3059
    %v3061 = vand.u32 %v3060, 4294901760
    %v3062 = vsub.f32 %v3060, %v3061
    %v3063 = vand.u32 %v3062, 4294901760
    %3064 = vmatpush2.msra.mxu0 %v3063
    %3065 = vmatprep.subr.mxu0 0.0
    %v3066 = vand.u32 %v49, 4294901760
    %v3067 = vsub.f32 %v49, %v3066
    %v3068 = vand.u32 %v3067, 4294901760
    %v3069 = vsub.f32 %v3067, %v3068
    %v3070 = vand.u32 %v3069, 4294901760
    %3071 = vmatpush2.msra.mxu0 %v3070
    %3072 = vmatprep.subr.mxu0 0.0
    %v3073 = vand.u32 %v48, 4294901760
    %v3074 = vsub.f32 %v48, %v3073
    %v3075 = vand.u32 %v3074, 4294901760
    %v3076 = vsub.f32 %v3074, %v3075
    %v3077 = vand.u32 %v3076, 4294901760
    %3078 = vmatpush2.msra.mxu0 %v3077
    %3079 = vmatprep.subr.mxu0 0.0
    %v3080 = vand.u32 %v47, 4294901760
    %v3081 = vsub.f32 %v47, %v3080
    %v3082 = vand.u32 %v3081, 4294901760
    %v3083 = vsub.f32 %v3081, %v3082
    %v3084 = vand.u32 %v3083, 4294901760
    %3085 = vmatpush2.msra.mxu0 %v3084
    %3086 = vmatprep.subr.mxu0 0.0
    %v3087 = vand.u32 %v46, 4294901760
    %v3088 = vsub.f32 %v46, %v3087
    %v3089 = vand.u32 %v3088, 4294901760
    %v3090 = vsub.f32 %v3088, %v3089
    %v3091 = vand.u32 %v3090, 4294901760
    %3092 = vmatpush2.msra.mxu0 %v3091
    %3093 = vmatprep.subr.mxu0 0.0
    %v3094 = vand.u32 %v45, 4294901760
    %v3095 = vsub.f32 %v45, %v3094
    %v3096 = vand.u32 %v3095, 4294901760
    %v3097 = vsub.f32 %v3095, %v3096
    %v3098 = vand.u32 %v3097, 4294901760
    %3099 = vmatpush2.msra.mxu0 %v3098
    %3100 = vmatprep.subr.mxu0 0.0
    %v3101 = vand.u32 %v44, 4294901760
    %v3102 = vsub.f32 %v44, %v3101
    %v3103 = vand.u32 %v3102, 4294901760
    %v3104 = vsub.f32 %v3102, %v3103
    %v3105 = vand.u32 %v3104, 4294901760
    %3106 = vmatpush2.msra.mxu0 %v3105
    %3107 = vmatprep.subr.mxu0 0.0
    %v3108 = vand.u32 %v43, 4294901760
    %v3109 = vsub.f32 %v43, %v3108
    %v3110 = vand.u32 %v3109, 4294901760
    %v3111 = vsub.f32 %v3109, %v3110
    %v3112 = vand.u32 %v3111, 4294901760
    %3113 = vmatpush2.msra.mxu0 %v3112
    %3114 = vmatprep.subr.mxu0 0.0
    %v3115 = vand.u32 %v42, 4294901760
    %v3116 = vsub.f32 %v42, %v3115
    %v3117 = vand.u32 %v3116, 4294901760
    %v3118 = vsub.f32 %v3116, %v3117
    %v3119 = vand.u32 %v3118, 4294901760
    %3120 = vmatpush2.msra.mxu0 %v3119
    %3121 = vmatprep.subr.mxu0 0.0
    %v3122 = vand.u32 %v41, 4294901760
    %v3123 = vsub.f32 %v41, %v3122
    %v3124 = vand.u32 %v3123, 4294901760
    %v3125 = vsub.f32 %v3123, %v3124
    %v3126 = vand.u32 %v3125, 4294901760
    %3127 = vmatpush2.msra.mxu0 %v3126
    %v3128 = vand.u32 %v2791, 4294901760
    %3129 = vmatprep.mubr.f32.mxu0 %v3128
    %v3130 = vand.u32 %v2790, 4294901760
    %3131 = vmatmul.mubr.f32.gmra.mxu0 %v3130
    %v3132 = vpop.f32.mrf.mxu0
    %v3133 = vadd.f32 %v2901, %v3132
    %v3134 = vpop.f32.mrf.mxu0
    %3135 = vdwg.mxu0
    %3136 = vmatprep.subr.mxu0 0.0
    %v3137 = vand.u32 %v40, 4294901760
    %v3138 = vsub.f32 %v40, %v3137
    %3139 = vmatpush1.msra.mxu0 %v3138
    %3140 = vmatprep.subr.mxu0 0.0
    %v3141 = vand.u32 %v39, 4294901760
    %v3142 = vsub.f32 %v39, %v3141
    %3143 = vmatpush1.msra.mxu0 %v3142
    %3144 = vmatprep.subr.mxu0 0.0
    %v3145 = vand.u32 %v38, 4294901760
    %v3146 = vsub.f32 %v38, %v3145
    %3147 = vmatpush1.msra.mxu0 %v3146
    %3148 = vmatprep.subr.mxu0 0.0
    %v3149 = vand.u32 %v37, 4294901760
    %v3150 = vsub.f32 %v37, %v3149
    %3151 = vmatpush1.msra.mxu0 %v3150
    %3152 = vmatprep.subr.mxu0 0.0
    %v3153 = vand.u32 %v36, 4294901760
    %v3154 = vsub.f32 %v36, %v3153
    %3155 = vmatpush1.msra.mxu0 %v3154
    %3156 = vmatprep.subr.mxu0 0.0
    %v3157 = vand.u32 %v35, 4294901760
    %v3158 = vsub.f32 %v35, %v3157
    %3159 = vmatpush1.msra.mxu0 %v3158
    %3160 = vmatprep.subr.mxu0 0.0
    %v3161 = vand.u32 %v34, 4294901760
    %v3162 = vsub.f32 %v34, %v3161
    %3163 = vmatpush1.msra.mxu0 %v3162
    %3164 = vmatprep.subr.mxu0 0.0
    %v3165 = vand.u32 %v33, 4294901760
    %v3166 = vsub.f32 %v33, %v3165
    %3167 = vmatpush1.msra.mxu0 %v3166
    %3168 = vmatprep.subr.mxu0 0.0
    %v3169 = vand.u32 %v32, 4294901760
    %v3170 = vsub.f32 %v32, %v3169
    %3171 = vmatpush1.msra.mxu0 %v3170
    %3172 = vmatprep.subr.mxu0 0.0
    %v3173 = vand.u32 %v31, 4294901760
    %v3174 = vsub.f32 %v31, %v3173
    %3175 = vmatpush1.msra.mxu0 %v3174
    %3176 = vmatprep.subr.mxu0 0.0
    %v3177 = vand.u32 %v30, 4294901760
    %v3178 = vsub.f32 %v30, %v3177
    %3179 = vmatpush1.msra.mxu0 %v3178
    %3180 = vmatprep.subr.mxu0 0.0
    %v3181 = vand.u32 %v29, 4294901760
    %v3182 = vsub.f32 %v29, %v3181
    %3183 = vmatpush1.msra.mxu0 %v3182
    %3184 = vmatprep.subr.mxu0 0.0
    %v3185 = vand.u32 %v28, 4294901760
    %v3186 = vsub.f32 %v28, %v3185
    %3187 = vmatpush1.msra.mxu0 %v3186
    %3188 = vmatprep.subr.mxu0 0.0
    %v3189 = vand.u32 %v27, 4294901760
    %v3190 = vsub.f32 %v27, %v3189
    %3191 = vmatpush1.msra.mxu0 %v3190
    %3192 = vmatprep.subr.mxu0 0.0
    %v3193 = vand.u32 %v26, 4294901760
    %v3194 = vsub.f32 %v26, %v3193
    %3195 = vmatpush1.msra.mxu0 %v3194
    %3196 = vmatprep.subr.mxu0 0.0
    %v3197 = vand.u32 %v25, 4294901760
    %v3198 = vsub.f32 %v25, %v3197
    %3199 = vmatpush1.msra.mxu0 %v3198
    %3200 = vmatprep.subr.mxu0 0.0
    %v3201 = vand.u32 %v56, 4294901760
    %v3202 = vsub.f32 %v56, %v3201
    %3203 = vmatpush2.msra.mxu0 %v3202
    %3204 = vmatprep.subr.mxu0 0.0
    %v3205 = vand.u32 %v55, 4294901760
    %v3206 = vsub.f32 %v55, %v3205
    %3207 = vmatpush2.msra.mxu0 %v3206
    %3208 = vmatprep.subr.mxu0 0.0
    %v3209 = vand.u32 %v54, 4294901760
    %v3210 = vsub.f32 %v54, %v3209
    %3211 = vmatpush2.msra.mxu0 %v3210
    %3212 = vmatprep.subr.mxu0 0.0
    %v3213 = vand.u32 %v53, 4294901760
    %v3214 = vsub.f32 %v53, %v3213
    %3215 = vmatpush2.msra.mxu0 %v3214
    %3216 = vmatprep.subr.mxu0 0.0
    %v3217 = vand.u32 %v52, 4294901760
    %v3218 = vsub.f32 %v52, %v3217
    %3219 = vmatpush2.msra.mxu0 %v3218
    %3220 = vmatprep.subr.mxu0 0.0
    %v3221 = vand.u32 %v51, 4294901760
    %v3222 = vsub.f32 %v51, %v3221
    %3223 = vmatpush2.msra.mxu0 %v3222
    %3224 = vmatprep.subr.mxu0 0.0
    %v3225 = vand.u32 %v50, 4294901760
    %v3226 = vsub.f32 %v50, %v3225
    %3227 = vmatpush2.msra.mxu0 %v3226
    %3228 = vmatprep.subr.mxu0 0.0
    %v3229 = vand.u32 %v49, 4294901760
    %v3230 = vsub.f32 %v49, %v3229
    %3231 = vmatpush2.msra.mxu0 %v3230
    %3232 = vmatprep.subr.mxu0 0.0
    %v3233 = vand.u32 %v48, 4294901760
    %v3234 = vsub.f32 %v48, %v3233
    %3235 = vmatpush2.msra.mxu0 %v3234
    %3236 = vmatprep.subr.mxu0 0.0
    %v3237 = vand.u32 %v47, 4294901760
    %v3238 = vsub.f32 %v47, %v3237
    %3239 = vmatpush2.msra.mxu0 %v3238
    %3240 = vmatprep.subr.mxu0 0.0
    %v3241 = vand.u32 %v46, 4294901760
    %v3242 = vsub.f32 %v46, %v3241
    %3243 = vmatpush2.msra.mxu0 %v3242
    %3244 = vmatprep.subr.mxu0 0.0
    %v3245 = vand.u32 %v45, 4294901760
    %v3246 = vsub.f32 %v45, %v3245
    %3247 = vmatpush2.msra.mxu0 %v3246
    %3248 = vmatprep.subr.mxu0 0.0
    %v3249 = vand.u32 %v44, 4294901760
    %v3250 = vsub.f32 %v44, %v3249
    %3251 = vmatpush2.msra.mxu0 %v3250
    %3252 = vmatprep.subr.mxu0 0.0
    %v3253 = vand.u32 %v43, 4294901760
    %v3254 = vsub.f32 %v43, %v3253
    %3255 = vmatpush2.msra.mxu0 %v3254
    %3256 = vmatprep.subr.mxu0 0.0
    %v3257 = vand.u32 %v42, 4294901760
    %v3258 = vsub.f32 %v42, %v3257
    %3259 = vmatpush2.msra.mxu0 %v3258
    %3260 = vmatprep.subr.mxu0 0.0
    %v3261 = vand.u32 %v41, 4294901760
    %v3262 = vsub.f32 %v41, %v3261
    %3263 = vmatpush2.msra.mxu0 %v3262
    %v3264 = vand.u32 %v2791, 4294901760
    %v3265 = vsub.f32 %v2791, %v3264
    %3266 = vmatprep.mubr.f32.mxu0 %v3265
    %v3267 = vand.u32 %v2790, 4294901760
    %v3268 = vsub.f32 %v2790, %v3267
    %3269 = vmatmul.mubr.f32.gmra.mxu0 %v3268
    %v3270 = vpop.f32.mrf.mxu0
    %v3271 = vadd.f32 %v3133, %v3270
    %v3272 = vpop.f32.mrf.mxu0
    %3273 = vdwg.mxu0
    %3274 = vmatprep.subr.mxu0 0.0
    %v3275 = vand.u32 %v40, 4294901760
    %3276 = vmatpush1.msra.mxu0 %v3275
    %3277 = vmatprep.subr.mxu0 0.0
    %v3278 = vand.u32 %v39, 4294901760
    %3279 = vmatpush1.msra.mxu0 %v3278
    %3280 = vmatprep.subr.mxu0 0.0
    %v3281 = vand.u32 %v38, 4294901760
    %3282 = vmatpush1.msra.mxu0 %v3281
    %3283 = vmatprep.subr.mxu0 0.0
    %v3284 = vand.u32 %v37, 4294901760
    %3285 = vmatpush1.msra.mxu0 %v3284
    %3286 = vmatprep.subr.mxu0 0.0
    %v3287 = vand.u32 %v36, 4294901760
    %3288 = vmatpush1.msra.mxu0 %v3287
    %3289 = vmatprep.subr.mxu0 0.0
    %v3290 = vand.u32 %v35, 4294901760
    %3291 = vmatpush1.msra.mxu0 %v3290
    %3292 = vmatprep.subr.mxu0 0.0
    %v3293 = vand.u32 %v34, 4294901760
    %3294 = vmatpush1.msra.mxu0 %v3293
    %3295 = vmatprep.subr.mxu0 0.0
    %v3296 = vand.u32 %v33, 4294901760
    %3297 = vmatpush1.msra.mxu0 %v3296
    %3298 = vmatprep.subr.mxu0 0.0
    %v3299 = vand.u32 %v32, 4294901760
    %3300 = vmatpush1.msra.mxu0 %v3299
    %3301 = vmatprep.subr.mxu0 0.0
    %v3302 = vand.u32 %v31, 4294901760
    %3303 = vmatpush1.msra.mxu0 %v3302
    %3304 = vmatprep.subr.mxu0 0.0
    %v3305 = vand.u32 %v30, 4294901760
    %3306 = vmatpush1.msra.mxu0 %v3305
    %3307 = vmatprep.subr.mxu0 0.0
    %v3308 = vand.u32 %v29, 4294901760
    %3309 = vmatpush1.msra.mxu0 %v3308
    %3310 = vmatprep.subr.mxu0 0.0
    %v3311 = vand.u32 %v28, 4294901760
    %3312 = vmatpush1.msra.mxu0 %v3311
    %3313 = vmatprep.subr.mxu0 0.0
    %v3314 = vand.u32 %v27, 4294901760
    %3315 = vmatpush1.msra.mxu0 %v3314
    %3316 = vmatprep.subr.mxu0 0.0
    %v3317 = vand.u32 %v26, 4294901760
    %3318 = vmatpush1.msra.mxu0 %v3317
    %3319 = vmatprep.subr.mxu0 0.0
    %v3320 = vand.u32 %v25, 4294901760
    %3321 = vmatpush1.msra.mxu0 %v3320
    %3322 = vmatprep.subr.mxu0 0.0
    %v3323 = vand.u32 %v56, 4294901760
    %3324 = vmatpush2.msra.mxu0 %v3323
    %3325 = vmatprep.subr.mxu0 0.0
    %v3326 = vand.u32 %v55, 4294901760
    %3327 = vmatpush2.msra.mxu0 %v3326
    %3328 = vmatprep.subr.mxu0 0.0
    %v3329 = vand.u32 %v54, 4294901760
    %3330 = vmatpush2.msra.mxu0 %v3329
    %3331 = vmatprep.subr.mxu0 0.0
    %v3332 = vand.u32 %v53, 4294901760
    %3333 = vmatpush2.msra.mxu0 %v3332
    %3334 = vmatprep.subr.mxu0 0.0
    %v3335 = vand.u32 %v52, 4294901760
    %3336 = vmatpush2.msra.mxu0 %v3335
    %3337 = vmatprep.subr.mxu0 0.0
    %v3338 = vand.u32 %v51, 4294901760
    %3339 = vmatpush2.msra.mxu0 %v3338
    %3340 = vmatprep.subr.mxu0 0.0
    %v3341 = vand.u32 %v50, 4294901760
    %3342 = vmatpush2.msra.mxu0 %v3341
    %3343 = vmatprep.subr.mxu0 0.0
    %v3344 = vand.u32 %v49, 4294901760
    %3345 = vmatpush2.msra.mxu0 %v3344
    %3346 = vmatprep.subr.mxu0 0.0
    %v3347 = vand.u32 %v48, 4294901760
    %3348 = vmatpush2.msra.mxu0 %v3347
    %3349 = vmatprep.subr.mxu0 0.0
    %v3350 = vand.u32 %v47, 4294901760
    %3351 = vmatpush2.msra.mxu0 %v3350
    %3352 = vmatprep.subr.mxu0 0.0
    %v3353 = vand.u32 %v46, 4294901760
    %3354 = vmatpush2.msra.mxu0 %v3353
    %3355 = vmatprep.subr.mxu0 0.0
    %v3356 = vand.u32 %v45, 4294901760
    %3357 = vmatpush2.msra.mxu0 %v3356
    %3358 = vmatprep.subr.mxu0 0.0
    %v3359 = vand.u32 %v44, 4294901760
    %3360 = vmatpush2.msra.mxu0 %v3359
    %3361 = vmatprep.subr.mxu0 0.0
    %v3362 = vand.u32 %v43, 4294901760
    %3363 = vmatpush2.msra.mxu0 %v3362
    %3364 = vmatprep.subr.mxu0 0.0
    %v3365 = vand.u32 %v42, 4294901760
    %3366 = vmatpush2.msra.mxu0 %v3365
    %3367 = vmatprep.subr.mxu0 0.0
    %v3368 = vand.u32 %v41, 4294901760
    %3369 = vmatpush2.msra.mxu0 %v3368
    %v3370 = vand.u32 %v2791, 4294901760
    %v3371 = vsub.f32 %v2791, %v3370
    %v3372 = vand.u32 %v3371, 4294901760
    %3373 = vmatprep.mubr.f32.mxu0 %v3372
    %v3374 = vand.u32 %v2790, 4294901760
    %v3375 = vsub.f32 %v2790, %v3374
    %v3376 = vand.u32 %v3375, 4294901760
    %3377 = vmatmul.mubr.f32.gmra.mxu0 %v3376
    %v3378 = vpop.f32.mrf.mxu0
    %v3379 = vadd.f32 %v3271, %v3378
    %v3380 = vpop.f32.mrf.mxu0
    %3381 = vdwg.mxu0
    %3382 = vmatprep.subr.mxu0 0.0
    %v3383 = vand.u32 %v40, 4294901760
    %v3384 = vsub.f32 %v40, %v3383
    %v3385 = vand.u32 %v3384, 4294901760
    %3386 = vmatpush1.msra.mxu0 %v3385
    %3387 = vmatprep.subr.mxu0 0.0
    %v3388 = vand.u32 %v39, 4294901760
    %v3389 = vsub.f32 %v39, %v3388
    %v3390 = vand.u32 %v3389, 4294901760
    %3391 = vmatpush1.msra.mxu0 %v3390
    %3392 = vmatprep.subr.mxu0 0.0
    %v3393 = vand.u32 %v38, 4294901760
    %v3394 = vsub.f32 %v38, %v3393
    %v3395 = vand.u32 %v3394, 4294901760
    %3396 = vmatpush1.msra.mxu0 %v3395
    %3397 = vmatprep.subr.mxu0 0.0
    %v3398 = vand.u32 %v37, 4294901760
    %v3399 = vsub.f32 %v37, %v3398
    %v3400 = vand.u32 %v3399, 4294901760
    %3401 = vmatpush1.msra.mxu0 %v3400
    %3402 = vmatprep.subr.mxu0 0.0
    %v3403 = vand.u32 %v36, 4294901760
    %v3404 = vsub.f32 %v36, %v3403
    %v3405 = vand.u32 %v3404, 4294901760
    %3406 = vmatpush1.msra.mxu0 %v3405
    %3407 = vmatprep.subr.mxu0 0.0
    %v3408 = vand.u32 %v35, 4294901760
    %v3409 = vsub.f32 %v35, %v3408
    %v3410 = vand.u32 %v3409, 4294901760
    %3411 = vmatpush1.msra.mxu0 %v3410
    %3412 = vmatprep.subr.mxu0 0.0
    %v3413 = vand.u32 %v34, 4294901760
    %v3414 = vsub.f32 %v34, %v3413
    %v3415 = vand.u32 %v3414, 4294901760
    %3416 = vmatpush1.msra.mxu0 %v3415
    %3417 = vmatprep.subr.mxu0 0.0
    %v3418 = vand.u32 %v33, 4294901760
    %v3419 = vsub.f32 %v33, %v3418
    %v3420 = vand.u32 %v3419, 4294901760
    %3421 = vmatpush1.msra.mxu0 %v3420
    %3422 = vmatprep.subr.mxu0 0.0
    %v3423 = vand.u32 %v32, 4294901760
    %v3424 = vsub.f32 %v32, %v3423
    %v3425 = vand.u32 %v3424, 4294901760
    %3426 = vmatpush1.msra.mxu0 %v3425
    %3427 = vmatprep.subr.mxu0 0.0
    %v3428 = vand.u32 %v31, 4294901760
    %v3429 = vsub.f32 %v31, %v3428
    %v3430 = vand.u32 %v3429, 4294901760
    %3431 = vmatpush1.msra.mxu0 %v3430
    %3432 = vmatprep.subr.mxu0 0.0
    %v3433 = vand.u32 %v30, 4294901760
    %v3434 = vsub.f32 %v30, %v3433
    %v3435 = vand.u32 %v3434, 4294901760
    %3436 = vmatpush1.msra.mxu0 %v3435
    %3437 = vmatprep.subr.mxu0 0.0
    %v3438 = vand.u32 %v29, 4294901760
    %v3439 = vsub.f32 %v29, %v3438
    %v3440 = vand.u32 %v3439, 4294901760
    %3441 = vmatpush1.msra.mxu0 %v3440
    %3442 = vmatprep.subr.mxu0 0.0
    %v3443 = vand.u32 %v28, 4294901760
    %v3444 = vsub.f32 %v28, %v3443
    %v3445 = vand.u32 %v3444, 4294901760
    %3446 = vmatpush1.msra.mxu0 %v3445
    %3447 = vmatprep.subr.mxu0 0.0
    %v3448 = vand.u32 %v27, 4294901760
    %v3449 = vsub.f32 %v27, %v3448
    %v3450 = vand.u32 %v3449, 4294901760
    %3451 = vmatpush1.msra.mxu0 %v3450
    %3452 = vmatprep.subr.mxu0 0.0
    %v3453 = vand.u32 %v26, 4294901760
    %v3454 = vsub.f32 %v26, %v3453
    %v3455 = vand.u32 %v3454, 4294901760
    %3456 = vmatpush1.msra.mxu0 %v3455
    %3457 = vmatprep.subr.mxu0 0.0
    %v3458 = vand.u32 %v25, 4294901760
    %v3459 = vsub.f32 %v25, %v3458
    %v3460 = vand.u32 %v3459, 4294901760
    %3461 = vmatpush1.msra.mxu0 %v3460
    %3462 = vmatprep.subr.mxu0 0.0
    %v3463 = vand.u32 %v56, 4294901760
    %v3464 = vsub.f32 %v56, %v3463
    %v3465 = vand.u32 %v3464, 4294901760
    %3466 = vmatpush2.msra.mxu0 %v3465
    %3467 = vmatprep.subr.mxu0 0.0
    %v3468 = vand.u32 %v55, 4294901760
    %v3469 = vsub.f32 %v55, %v3468
    %v3470 = vand.u32 %v3469, 4294901760
    %3471 = vmatpush2.msra.mxu0 %v3470
    %3472 = vmatprep.subr.mxu0 0.0
    %v3473 = vand.u32 %v54, 4294901760
    %v3474 = vsub.f32 %v54, %v3473
    %v3475 = vand.u32 %v3474, 4294901760
    %3476 = vmatpush2.msra.mxu0 %v3475
    %3477 = vmatprep.subr.mxu0 0.0
    %v3478 = vand.u32 %v53, 4294901760
    %v3479 = vsub.f32 %v53, %v3478
    %v3480 = vand.u32 %v3479, 4294901760
    %3481 = vmatpush2.msra.mxu0 %v3480
    %3482 = vmatprep.subr.mxu0 0.0
    %v3483 = vand.u32 %v52, 4294901760
    %v3484 = vsub.f32 %v52, %v3483
    %v3485 = vand.u32 %v3484, 4294901760
    %3486 = vmatpush2.msra.mxu0 %v3485
    %3487 = vmatprep.subr.mxu0 0.0
    %v3488 = vand.u32 %v51, 4294901760
    %v3489 = vsub.f32 %v51, %v3488
    %v3490 = vand.u32 %v3489, 4294901760
    %3491 = vmatpush2.msra.mxu0 %v3490
    %3492 = vmatprep.subr.mxu0 0.0
    %v3493 = vand.u32 %v50, 4294901760
    %v3494 = vsub.f32 %v50, %v3493
    %v3495 = vand.u32 %v3494, 4294901760
    %3496 = vmatpush2.msra.mxu0 %v3495
    %3497 = vmatprep.subr.mxu0 0.0
    %v3498 = vand.u32 %v49, 4294901760
    %v3499 = vsub.f32 %v49, %v3498
    %v3500 = vand.u32 %v3499, 4294901760
    %3501 = vmatpush2.msra.mxu0 %v3500
    %3502 = vmatprep.subr.mxu0 0.0
    %v3503 = vand.u32 %v48, 4294901760
    %v3504 = vsub.f32 %v48, %v3503
    %v3505 = vand.u32 %v3504, 4294901760
    %3506 = vmatpush2.msra.mxu0 %v3505
    %3507 = vmatprep.subr.mxu0 0.0
    %v3508 = vand.u32 %v47, 4294901760
    %v3509 = vsub.f32 %v47, %v3508
    %v3510 = vand.u32 %v3509, 4294901760
    %3511 = vmatpush2.msra.mxu0 %v3510
    %3512 = vmatprep.subr.mxu0 0.0
    %v3513 = vand.u32 %v46, 4294901760
    %v3514 = vsub.f32 %v46, %v3513
    %v3515 = vand.u32 %v3514, 4294901760
    %3516 = vmatpush2.msra.mxu0 %v3515
    %3517 = vmatprep.subr.mxu0 0.0
    %v3518 = vand.u32 %v45, 4294901760
    %v3519 = vsub.f32 %v45, %v3518
    %v3520 = vand.u32 %v3519, 4294901760
    %3521 = vmatpush2.msra.mxu0 %v3520
    %3522 = vmatprep.subr.mxu0 0.0
    %v3523 = vand.u32 %v44, 4294901760
    %v3524 = vsub.f32 %v44, %v3523
    %v3525 = vand.u32 %v3524, 4294901760
    %3526 = vmatpush2.msra.mxu0 %v3525
    %3527 = vmatprep.subr.mxu0 0.0
    %v3528 = vand.u32 %v43, 4294901760
    %v3529 = vsub.f32 %v43, %v3528
    %v3530 = vand.u32 %v3529, 4294901760
    %3531 = vmatpush2.msra.mxu0 %v3530
    %3532 = vmatprep.subr.mxu0 0.0
    %v3533 = vand.u32 %v42, 4294901760
    %v3534 = vsub.f32 %v42, %v3533
    %v3535 = vand.u32 %v3534, 4294901760
    %3536 = vmatpush2.msra.mxu0 %v3535
    %3537 = vmatprep.subr.mxu0 0.0
    %v3538 = vand.u32 %v41, 4294901760
    %v3539 = vsub.f32 %v41, %v3538
    %v3540 = vand.u32 %v3539, 4294901760
    %3541 = vmatpush2.msra.mxu0 %v3540
    %v3542 = vand.u32 %v2791, 4294901760
    %3543 = vmatprep.mubr.f32.mxu0 %v3542
    %v3544 = vand.u32 %v2790, 4294901760
    %3545 = vmatmul.mubr.f32.gmra.mxu0 %v3544
    %v3546 = vpop.f32.mrf.mxu0
    %v3547 = vadd.f32 %v3379, %v3546
    %v3548 = vpop.f32.mrf.mxu0
    %3549 = vdwg.mxu0
    %3550 = vmatprep.subr.mxu0 0.0
    %v3551 = vand.u32 %v40, 4294901760
    %3552 = vmatpush1.msra.mxu0 %v3551
    %3553 = vmatprep.subr.mxu0 0.0
    %v3554 = vand.u32 %v39, 4294901760
    %3555 = vmatpush1.msra.mxu0 %v3554
    %3556 = vmatprep.subr.mxu0 0.0
    %v3557 = vand.u32 %v38, 4294901760
    %3558 = vmatpush1.msra.mxu0 %v3557
    %3559 = vmatprep.subr.mxu0 0.0
    %v3560 = vand.u32 %v37, 4294901760
    %3561 = vmatpush1.msra.mxu0 %v3560
    %3562 = vmatprep.subr.mxu0 0.0
    %v3563 = vand.u32 %v36, 4294901760
    %3564 = vmatpush1.msra.mxu0 %v3563
    %3565 = vmatprep.subr.mxu0 0.0
    %v3566 = vand.u32 %v35, 4294901760
    %3567 = vmatpush1.msra.mxu0 %v3566
    %3568 = vmatprep.subr.mxu0 0.0
    %v3569 = vand.u32 %v34, 4294901760
    %3570 = vmatpush1.msra.mxu0 %v3569
    %3571 = vmatprep.subr.mxu0 0.0
    %v3572 = vand.u32 %v33, 4294901760
    %3573 = vmatpush1.msra.mxu0 %v3572
    %3574 = vmatprep.subr.mxu0 0.0
    %v3575 = vand.u32 %v32, 4294901760
    %3576 = vmatpush1.msra.mxu0 %v3575
    %3577 = vmatprep.subr.mxu0 0.0
    %v3578 = vand.u32 %v31, 4294901760
    %3579 = vmatpush1.msra.mxu0 %v3578
    %3580 = vmatprep.subr.mxu0 0.0
    %v3581 = vand.u32 %v30, 4294901760
    %3582 = vmatpush1.msra.mxu0 %v3581
    %3583 = vmatprep.subr.mxu0 0.0
    %v3584 = vand.u32 %v29, 4294901760
    %3585 = vmatpush1.msra.mxu0 %v3584
    %3586 = vmatprep.subr.mxu0 0.0
    %v3587 = vand.u32 %v28, 4294901760
    %3588 = vmatpush1.msra.mxu0 %v3587
    %3589 = vmatprep.subr.mxu0 0.0
    %v3590 = vand.u32 %v27, 4294901760
    %3591 = vmatpush1.msra.mxu0 %v3590
    %3592 = vmatprep.subr.mxu0 0.0
    %v3593 = vand.u32 %v26, 4294901760
    %3594 = vmatpush1.msra.mxu0 %v3593
    %3595 = vmatprep.subr.mxu0 0.0
    %v3596 = vand.u32 %v25, 4294901760
    %3597 = vmatpush1.msra.mxu0 %v3596
    %3598 = vmatprep.subr.mxu0 0.0
    %v3599 = vand.u32 %v56, 4294901760
    %3600 = vmatpush2.msra.mxu0 %v3599
    %3601 = vmatprep.subr.mxu0 0.0
    %v3602 = vand.u32 %v55, 4294901760
    %3603 = vmatpush2.msra.mxu0 %v3602
    %3604 = vmatprep.subr.mxu0 0.0
    %v3605 = vand.u32 %v54, 4294901760
    %3606 = vmatpush2.msra.mxu0 %v3605
    %3607 = vmatprep.subr.mxu0 0.0
    %v3608 = vand.u32 %v53, 4294901760
    %3609 = vmatpush2.msra.mxu0 %v3608
    %3610 = vmatprep.subr.mxu0 0.0
    %v3611 = vand.u32 %v52, 4294901760
    %3612 = vmatpush2.msra.mxu0 %v3611
    %3613 = vmatprep.subr.mxu0 0.0
    %v3614 = vand.u32 %v51, 4294901760
    %3615 = vmatpush2.msra.mxu0 %v3614
    %3616 = vmatprep.subr.mxu0 0.0
    %v3617 = vand.u32 %v50, 4294901760
    %3618 = vmatpush2.msra.mxu0 %v3617
    %3619 = vmatprep.subr.mxu0 0.0
    %v3620 = vand.u32 %v49, 4294901760
    %3621 = vmatpush2.msra.mxu0 %v3620
    %3622 = vmatprep.subr.mxu0 0.0
    %v3623 = vand.u32 %v48, 4294901760
    %3624 = vmatpush2.msra.mxu0 %v3623
    %3625 = vmatprep.subr.mxu0 0.0
    %v3626 = vand.u32 %v47, 4294901760
    %3627 = vmatpush2.msra.mxu0 %v3626
    %3628 = vmatprep.subr.mxu0 0.0
    %v3629 = vand.u32 %v46, 4294901760
    %3630 = vmatpush2.msra.mxu0 %v3629
    %3631 = vmatprep.subr.mxu0 0.0
    %v3632 = vand.u32 %v45, 4294901760
    %3633 = vmatpush2.msra.mxu0 %v3632
    %3634 = vmatprep.subr.mxu0 0.0
    %v3635 = vand.u32 %v44, 4294901760
    %3636 = vmatpush2.msra.mxu0 %v3635
    %3637 = vmatprep.subr.mxu0 0.0
    %v3638 = vand.u32 %v43, 4294901760
    %3639 = vmatpush2.msra.mxu0 %v3638
    %3640 = vmatprep.subr.mxu0 0.0
    %v3641 = vand.u32 %v42, 4294901760
    %3642 = vmatpush2.msra.mxu0 %v3641
    %3643 = vmatprep.subr.mxu0 0.0
    %v3644 = vand.u32 %v41, 4294901760
    %3645 = vmatpush2.msra.mxu0 %v3644
    %v3646 = vand.u32 %v2791, 4294901760
    %3647 = vmatprep.mubr.f32.mxu0 %v3646
    %v3648 = vand.u32 %v2790, 4294901760
    %3649 = vmatmul.mubr.f32.gmra.mxu0 %v3648
    %v3650 = vpop.f32.mrf.mxu0
    %v3651 = vadd.f32 %v3547, %v3650
    %v3652 = vpop.f32.mrf.mxu0
    %3653 = vdwg.mxu0
    %vm3654 = vcmp.ge.s32.totalorder %v59, 96
    %vm3655 = vcmp.lt.s32.totalorder %v59, 128
    %vm3656 = vmand %vm3654, %vm3655
    %3657 = vrot.lane.b32.xlu0 %v3651, 96
    %v3658 = vpop.permute.xlu0 %3657
    %3659 = vset.pattern.permute.xlu0 3
    %3660 = vperm.xlu0 %3659, %v938
    %v3661 = vpop.permute.xlu0 %3660
    %vm3662 = vcmp.eq.s32.totalorder %v3661, 1
    %vm3663 = vmand %vm3656, %vm3662
    %v3664 = vsel %vm3663, %v3658, %v2782
    %3665 = vrot.lane.b32.xlu0 %v3651, 64
    %v3666 = vpop.permute.xlu0 %3665
    %3667 = vset.pattern.permute.xlu0 3
    %3668 = vperm.xlu0 %3667, %v948
    %v3669 = vpop.permute.xlu0 %3668
    %vm3670 = vcmp.eq.s32.totalorder %v3669, 1
    %vm3671 = vmand %vm3656, %vm3670
    %v3672 = vsel %vm3671, %v3666, %v3664
    %3673 = vrot.lane.b32.xlu0 %v3651, 32
    %v3674 = vpop.permute.xlu0 %3673
    %3675 = vset.pattern.permute.xlu0 3
    %3676 = vperm.xlu0 %3675, %v958
    %v3677 = vpop.permute.xlu0 %3676
    %vm3678 = vcmp.eq.s32.totalorder %v3677, 1
    %vm3679 = vmand %vm3656, %vm3678
    %v3680 = vsel %vm3679, %v3674, %v3672
    %3681 = vset.pattern.permute.xlu0 3
    %3682 = vperm.xlu0 %3681, %v968
    %v3683 = vpop.permute.xlu0 %3682
    %vm3684 = vcmp.eq.s32.totalorder %v3683, 1
    %vm3685 = vmand %vm3656, %vm3684
    %v3686 = vsel %vm3685, %v3651, %v3680
    %3687 = vst [vmem:[%s2] sm:$0xff] %v3686
    // Predicated region
    $region14: #{_forward_impl.1} parent=1 // pred_check
      _
    $region15: #{_forward_impl.1} parent=1 // pred_check_branch
      %3689 = sbr.rel (0) target = $region17
    $region16: #{_forward_impl.1} parent=1 // pred_region
      _
    $region17: #{_forward_impl.1} parent=1 // pred_fallthru
      _
    // Predicated region
    $region18: #{_forward_impl.1} parent=1 // pred_check
      _
    $region19: #{_forward_impl.1} parent=1 // pred_check_branch
      %3691 = sbr.rel (0) target = $region21
    $region20: #{_forward_impl.1} parent=1 // pred_region
      _
    $region21: #{_forward_impl.1} parent=1 // pred_fallthru
      _
    %3692 = vsyncpa [#allocation3], 1

</llo_original>
